<compile_context>
chip_gen: v6e
topology: v6e:2x2x1
jax: 0.10.0
libtpu: 0.0.40
codegen_flags: <defaults>
</compile_context>

<pallas_src>
import jax
import jax.numpy as jnp
from jax.experimental import pallas as pl
from jax.experimental.pallas import tpu as pltpu


def _h_swish(x):
    # x * relu6(x + 3) / 6
    return x * (jnp.clip(x + 3.0, 0.0, 6.0) * (1.0 / 6.0))


def _h_sigmoid(x):
    return jnp.clip(x + 3.0, 0.0, 6.0) * (1.0 / 6.0)


def _round_up(v, m):
    return ((v + m - 1) // m) * m


# ----------------------------------------------------------------------------
# Fused kernel (grid over batch): expansion + h_swish + depthwise 3x3 + h_swish
#                                 + SE gate + projection + residual
# BN scales are pre-folded into the weights; only the shifts remain in-kernel.
# ----------------------------------------------------------------------------
def lff_fused_kernel(x_ref, w1_ref, b1_ref, wdw_ref, b2_ref,
                     wse1_ref, bse1_ref, wse2_ref, bse2_ref,
                     w3_ref, b3_ref, o_ref, ybuf_ref):
    H, W, _ = x_ref.shape
    Chid = w1_ref.shape[1]
    Cout = w3_ref.shape[1]

    x = x_ref[...]                                          # (H, W, Cin) f32

    # --- 1x1 expansion conv (BN1 scale folded into w1) + shift + h_swish ---
    y1 = jnp.dot(x.reshape(H * W, -1).astype(jnp.bfloat16), w1_ref[...],
                 preferred_element_type=jnp.float32)
    y1 = _h_swish(y1 + b1_ref[...])                         # (H*W, Chid)

    # Persistent padded buffer: rows 1..H hold y1, rows 0 / H+1 are the halo.
    # (Halo rows rewritten every step -> correct even when the batch axis is
    #  split across TensorCores.)
    zrow = jnp.zeros((1, W, Chid), jnp.float32)
    ybuf_ref[pl.ds(0, 1), :, :] = zrow
    ybuf_ref[pl.ds(H + 1, 1), :, :] = zrow
    ybuf_ref[pl.ds(1, H), :, :] = y1.reshape(H, W, Chid)

    # --- depthwise 3x3 conv, stride 1, pad 1 (BN2 scale folded into taps) ---
    wdw = wdw_ref[...]                                      # (9, Chid)
    wcol = jax.lax.broadcasted_iota(jnp.int32, (1, W, Chid), 1)
    mask_l = (wcol > 0).astype(jnp.float32)                 # zero wrapped col 0
    mask_r = (wcol < W - 1).astype(jnp.float32)             # zero wrapped col W-1

    # centre column taps (dx = 1): slice rows straight from the scratch;
    # accumulator initialised from the first tap product (no zero-fill pass).
    acc = None
    for dy in range(3):
        term = ybuf_ref[pl.ds(dy, H), :, :] * wdw[dy * 3 + 1][None, None, :]
        acc = term if acc is None else acc + term
    # left neighbour (dx = 0): column w-1 via XLU roll, mask the wrapped column.
    ysh = pltpu.roll(ybuf_ref[...], shift=1, axis=1) * mask_l
    for dy in range(3):
        acc = acc + ysh[dy:dy + H] * wdw[dy * 3 + 0][None, None, :]
    # right neighbour (dx = 2): column w+1 via XLU roll, mask the wrapped column.
    ysh = pltpu.roll(ybuf_ref[...], shift=W - 1, axis=1) * mask_r
    for dy in range(3):
        acc = acc + ysh[dy:dy + H] * wdw[dy * 3 + 2][None, None, :]

    y2 = _h_swish(acc + b2_ref[0])                          # (H, W, Chid)

    # --- SE: global avg-pool -> FC -> ReLU -> FC -> h_sigmoid ---
    pooled = (jnp.sum(y2, axis=(0, 1)) * (1.0 / (H * W))).reshape(1, Chid)
    z = jnp.maximum(
        jnp.dot(pooled, wse1_ref[...], preferred_element_type=jnp.float32)
        + bse1_ref[...], 0.0)
    g = _h_sigmoid(
        jnp.dot(z, wse2_ref[...], preferred_element_type=jnp.float32)
        + bse2_ref[...])                                    # (1, Chid)

    # --- 1x1 projection: SE gate + BN3 scale folded into the weight ---
    w3g = (w3_ref[...] * g.reshape(Chid, 1)).astype(jnp.bfloat16)
    out = jnp.dot(y2.reshape(H * W, Chid).astype(jnp.bfloat16), w3g,
                  preferred_element_type=jnp.float32)
    out = out + b3_ref[...]
    o_ref[...] = out.reshape(H, W, Cout) + x                # residual (Cin==Cout)


# ----------------------------------------------------------------------------
# Wrapper: fold BN scales, pad channel dims to 128 lanes, launch fused kernel.
# ----------------------------------------------------------------------------
def locality_feed_forward(x, params):
    """x: (B, H, W, Cin) float32, NHWC layout."""
    B, H, W, Cin = x.shape
    Chid = params["w1"].shape[1]
    Cout = params["w3"].shape[1]
    Red = params["wse1"].shape[1]
    assert Cin == Cout, "module requires in_dim == out_dim for the residual"
    assert W % 8 == 0, "W must be sublane aligned"

    LANE = 128
    Cin_p = _round_up(Cin, LANE)
    Chid_p = _round_up(Chid, LANE)
    Cout_p = _round_up(Cout, LANE)
    Red_p = _round_up(Red, LANE)

    def padc(a, axis, new):
        widths = [(0, 0)] * a.ndim
        widths[axis] = (0, new - a.shape[axis])
        return jnp.pad(a, widths)

    # Fold BN scales into the conv weights (per-channel) and pad every channel
    # axis to a multiple of 128 lanes.  Padded rows/cols are zero, so padded
    # hidden/output channels stay exactly zero through every stage.
    w1f = padc(padc(params["w1"] * params["s1"], 0, Cin_p), 1, Chid_p)
    w1f = w1f.astype(jnp.bfloat16)                          # pure-MXU weight
    wdwf = padc(params["wdw"] * params["s2"], 1, Chid_p).astype(jnp.float32)
    w3f = padc(padc(params["w3"] * params["s3"], 0, Chid_p), 1, Cout_p)
    w3f = w3f.astype(jnp.float32)                           # gated in-kernel
    b1 = padc(params["b1"], 1, Chid_p).astype(jnp.float32)
    b2 = padc(params["b2"], 1, Chid_p).astype(jnp.float32)
    b3 = padc(params["b3"], 1, Cout_p).astype(jnp.float32)
    wse1 = padc(padc(params["wse1"], 0, Chid_p), 1, Red_p).astype(jnp.float32)
    bse1 = padc(params["bse1"], 1, Red_p).astype(jnp.float32)
    wse2 = padc(padc(params["wse2"], 0, Red_p), 1, Chid_p).astype(jnp.float32)
    bse2 = padc(params["bse2"], 1, Chid_p).astype(jnp.float32)
    x_p = padc(x, 3, Cin_p).astype(jnp.float32)

    prepped = (w1f, b1, wdwf, b2, wse1, bse1, wse2, bse2, w3f, b3)
    param_bytes = sum(int(p.size) * p.dtype.itemsize for p in prepped)

    # advisory cost estimate for XLA scheduling
    flops = B * H * W * (2 * Cin_p * Chid_p + 18 * Chid_p + 16 * Chid_p
                         + 2 * Chid_p * Cout_p)
    flops += B * (2 * Chid_p * Red_p + 2 * Red_p * Chid_p)
    bytes_accessed = 4 * (int(x_p.size) + B * H * W * Cout_p) + param_bytes
    ce = pl.CostEstimate(flops=int(flops), transcendentals=0,
                         bytes_accessed=int(bytes_accessed))

    # VMEM budget: tight per-step estimate + 25% headroom, clamped below ~85%
    # of physical capacity (v7x has only 64 MiB).
    act = H * W * 4
    est = (2 * act * Cin_p + 2 * act * Cout_p      # double-buffered I/O blocks
           + (H + 2) * W * Chid_p * 4              # persistent padded-y1 scratch
           + 4 * act * Chid_p                      # ~4 live full-size f32 temps
           + 2 * param_bytes)                      # (double-buffered) params
    try:
        vmem_cap = int(pltpu.get_tpu_info().vmem_capacity_bytes)
    except Exception:
        vmem_cap = 64 * 2 ** 20                    # v7x physical floor
    vmem_limit = int(min(int(0.85 * vmem_cap),
                         max(32 * 2 ** 20, int(1.25 * est))))

    cmap = lambda b: (0, 0)
    out_p = pl.pallas_call(
        lff_fused_kernel,
        out_shape=jax.ShapeDtypeStruct((B, H, W, Cout_p), jnp.float32),
        grid=(B,),
        in_specs=[
            pl.BlockSpec((None, H, W, Cin_p), lambda b: (b, 0, 0, 0)),
            pl.BlockSpec(w1f.shape, cmap),
            pl.BlockSpec(b1.shape, cmap),
            pl.BlockSpec(wdwf.shape, cmap),
            pl.BlockSpec(b2.shape, cmap),
            pl.BlockSpec(wse1.shape, cmap),
            pl.BlockSpec(bse1.shape, cmap),
            pl.BlockSpec(wse2.shape, cmap),
            pl.BlockSpec(bse2.shape, cmap),
            pl.BlockSpec(w3f.shape, cmap),
            pl.BlockSpec(b3.shape, cmap),
        ],
        out_specs=pl.BlockSpec((None, H, W, Cout_p), lambda b: (b, 0, 0, 0)),
        scratch_shapes=[pltpu.VMEM((H + 2, W, Chid_p), jnp.float32)],
        compiler_params=pltpu.CompilerParams(
            dimension_semantics=("parallel",),
            vmem_limit_bytes=vmem_limit),
        cost_estimate=ce,
    )(x_p, w1f, b1, wdwf, b2, wse1, bse1, wse2, bse2, w3f, b3)

    return out_p[..., :Cout]


# ----------------------------------------------------------------------------
# Deterministic parameter construction (synthetic, no checkpoint)
# ----------------------------------------------------------------------------
def make_params(key, in_dim, out_dim, expand_ratio=4, reduction=4, eps=1e-5):
    hidden = int(in_dim * expand_ratio)
    red = hidden // reduction
    ks = jax.random.split(key, 16)

    def bn(kg, kb, km, kv, c):
        gamma = 1.0 + 0.1 * jax.random.normal(kg, (c,), jnp.float32)
        beta = 0.1 * jax.random.normal(kb, (c,), jnp.float32)
        mean = 0.1 * jax.random.normal(km, (c,), jnp.float32)
        var = jnp.abs(jax.random.normal(kv, (c,), jnp.float32)) + 0.5
        scale = gamma / jnp.sqrt(var + eps)
        shift = beta - mean * scale
        return scale.reshape(1, c), shift.reshape(1, c)

    s1, b1 = bn(ks[0], ks[1], ks[2], ks[3], hidden)
    s2, b2 = bn(ks[4], ks[5], ks[6], ks[7], hidden)
    s3, b3 = bn(ks[8], ks[9], ks[10], ks[11], out_dim)

    params = dict(
        w1=0.2 * jax.random.normal(ks[12], (in_dim, hidden), jnp.float32),
        wdw=0.2 * jax.random.normal(ks[13], (9, hidden), jnp.float32),
        w3=0.2 * jax.random.normal(ks[14], (hidden, out_dim), jnp.float32),
        wse1=0.2 * jax.random.normal(ks[15], (hidden, red), jnp.float32),
        bse1=jnp.zeros((1, red), jnp.float32) + 0.05,
        wse2=0.2 * jax.random.normal(jax.random.fold_in(key, 99),
                                     (red, hidden), jnp.float32),
        bse2=jnp.zeros((1, hidden), jnp.float32) + 0.05,
        s1=s1, b1=b1, s2=s2, b2=b2, s3=s3, b3=b3,
    )
    return params


# ----------------------------------------------------------------------------
# Pure-JAX reference (lax convolutions, HIGHEST precision) for correctness
# ----------------------------------------------------------------------------
def reference(x, params):
    B, H, W, Cin = x.shape
    Chid = params["w1"].shape[1]
    Cout = params["w3"].shape[1]
    dn = ("NHWC", "HWIO", "NHWC")
    hp = jax.lax.Precision.HIGHEST

    y = jax.lax.conv_general_dilated(
        x, params["w1"].reshape(1, 1, Cin, Chid), (1, 1), "VALID",
        dimension_numbers=dn, precision=hp)
    y = _h_swish(y * params["s1"][0] + params["b1"][0])

    wdw = params["wdw"].reshape(3, 3, 1, Chid)
    y2 = jax.lax.conv_general_dilated(
        y, wdw, (1, 1), "SAME", dimension_numbers=dn,
        feature_group_count=Chid, precision=hp)
    y2 = _h_swish(y2 * params["s2"][0] + params["b2"][0])

    pooled = jnp.mean(y2, axis=(1, 2))                               # (B, Chid)
    z = jnp.maximum(pooled @ params["wse1"] + params["bse1"], 0.0)
    g = _h_sigmoid(z @ params["wse2"] + params["bse2"])              # (B, Chid)
    y3 = y2 * g[:, None, None, :]

    out = jax.lax.conv_general_dilated(
        y3, params["w3"].reshape(1, 1, Chid, Cout), (1, 1), "VALID",
        dimension_numbers=dn, precision=hp)
    out = out * params["s3"][0] + params["b3"][0]
    return x + out


if __name__ == "__main__":
    B, C, H, W = 2, 4, 16, 16          # in_dim = out_dim = 4, hidden = 16
    key = jax.random.PRNGKey(0)
    kx, kp = jax.random.split(key)
    x = jax.random.normal(kx, (B, H, W, C), jnp.float32)   # NHWC
    params = make_params(kp, in_dim=C, out_dim=C)

    out = jax.block_until_ready(locality_feed_forward(x, params))
    ref = jax.block_until_ready(reference(x, params))
    assert out.shape == (B, H, W, C)
    # Kernel runs the matmuls with single-pass bf16 MXU operands (f32
    # accumulation) vs the f32 HIGHEST-precision reference -> few-% tolerance.
    err = float(jnp.max(jnp.abs(out - ref)))
    assert jnp.allclose(out, ref, rtol=3e-2, atol=5e-2), err
    print("KERNEL_OK")
</pallas_src>

<mosaic_0001>
module attributes {stable_mosaic.version = 11 : i64} {
  func.func @lff_fused_kernel(%arg0: i32, %arg1: memref<1x16x16x128xf32, #tpu.memory_space<vmem>>, %arg2: memref<128x128xbf16, #tpu.memory_space<vmem>>, %arg3: memref<1x128xf32, #tpu.memory_space<vmem>>, %arg4: memref<9x128xf32, #tpu.memory_space<vmem>>, %arg5: memref<1x128xf32, #tpu.memory_space<vmem>>, %arg6: memref<128x128xf32, #tpu.memory_space<vmem>>, %arg7: memref<1x128xf32, #tpu.memory_space<vmem>>, %arg8: memref<128x128xf32, #tpu.memory_space<vmem>>, %arg9: memref<1x128xf32, #tpu.memory_space<vmem>>, %arg10: memref<128x128xf32, #tpu.memory_space<vmem>>, %arg11: memref<1x128xf32, #tpu.memory_space<vmem>>, %arg12: memref<1x16x16x128xf32, #tpu.memory_space<vmem>>, %arg13: memref<18x16x128xf32, #tpu.memory_space<vmem>>) attributes {dimension_semantics = [#tpu.dimension_semantics<parallel>], iteration_bounds = array<i64: 2>, scalar_prefetch = 0 : i64, scratch_operands = 1 : i64, tpu.core_type = #tpu.core_type<tc>, window_params = [{transform_indices = @transform_0, window_bounds = array<i64: 1, 16, 16, 128>}, {pipeline_mode = #tpu.pipeline_mode<synchronous>, transform_indices = @transform_1, window_bounds = array<i64: 128, 128>}, {pipeline_mode = #tpu.pipeline_mode<synchronous>, transform_indices = @transform_2, window_bounds = array<i64: 1, 128>}, {pipeline_mode = #tpu.pipeline_mode<synchronous>, transform_indices = @transform_3, window_bounds = array<i64: 9, 128>}, {pipeline_mode = #tpu.pipeline_mode<synchronous>, transform_indices = @transform_4, window_bounds = array<i64: 1, 128>}, {pipeline_mode = #tpu.pipeline_mode<synchronous>, transform_indices = @transform_5, window_bounds = array<i64: 128, 128>}, {pipeline_mode = #tpu.pipeline_mode<synchronous>, transform_indices = @transform_6, window_bounds = array<i64: 1, 128>}, {pipeline_mode = #tpu.pipeline_mode<synchronous>, transform_indices = @transform_7, window_bounds = array<i64: 128, 128>}, {pipeline_mode = #tpu.pipeline_mode<synchronous>, transform_indices = @transform_8, window_bounds = array<i64: 1, 128>}, {pipeline_mode = #tpu.pipeline_mode<synchronous>, transform_indices = @transform_9, window_bounds = array<i64: 128, 128>}, {pipeline_mode = #tpu.pipeline_mode<synchronous>, transform_indices = @transform_10, window_bounds = array<i64: 1, 128>}, {transform_indices = @transform_11, window_bounds = array<i64: 1, 16, 16, 128>}]} {
    %c0 = arith.constant 0 : index
    %c0_0 = arith.constant 0 : index
    %c0_1 = arith.constant 0 : index
    %c0_2 = arith.constant 0 : index
    %0 = vector.load %arg1[%c0, %c0_0, %c0_1, %c0_2] : memref<1x16x16x128xf32, #tpu.memory_space<vmem>>, vector<1x16x16x128xf32>
    %1 = vector.shape_cast %0 : vector<1x16x16x128xf32> to vector<16x16x128xf32>
    %2 = vector.shape_cast %1 : vector<16x16x128xf32> to vector<256x128xf32>
    %3 = arith.truncf %2 : vector<256x128xf32> to vector<256x128xbf16>
    %c0_3 = arith.constant 0 : index
    %c0_4 = arith.constant 0 : index
    %4 = vector.load %arg2[%c0_3, %c0_4] : memref<128x128xbf16, #tpu.memory_space<vmem>>, vector<128x128xbf16>
    %cst = arith.constant dense<0.000000e+00> : vector<256x128xf32>
    %5 = tpu.matmul %3, %4, %cst {dimension_numbers = #tpu.dot_dimension_numbers<[1], [0], [0], [1], [0, 0, 1, 1], [], []>} : vector<256x128xbf16>, vector<128x128xbf16>, vector<256x128xf32> -> vector<256x128xf32>
    %c0_5 = arith.constant 0 : index
    %c0_6 = arith.constant 0 : index
    %6 = vector.load %arg3[%c0_5, %c0_6] : memref<1x128xf32, #tpu.memory_space<vmem>>, vector<1x128xf32>
    %7 = vector.broadcast %6 : vector<1x128xf32> to vector<256x128xf32>
    %8 = arith.addf %5, %7 : vector<256x128xf32>
    %cst_7 = arith.constant 3.000000e+00 : f32
    %9 = vector.broadcast %cst_7 : f32 to vector<256x128xf32>
    %10 = arith.addf %8, %9 : vector<256x128xf32>
    %cst_8 = arith.constant 0.000000e+00 : f32
    %cst_9 = arith.constant 6.000000e+00 : f32
    %11 = vector.broadcast %cst_8 : f32 to vector<256x128xf32>
    %12 = arith.maximumf %11, %10 : vector<256x128xf32>
    %13 = vector.broadcast %cst_9 : f32 to vector<256x128xf32>
    %14 = arith.minimumf %13, %12 : vector<256x128xf32>
    %cst_10 = arith.constant 0.166666672 : f32
    %15 = vector.broadcast %cst_10 : f32 to vector<256x128xf32>
    %16 = arith.mulf %14, %15 : vector<256x128xf32>
    %17 = arith.mulf %8, %16 : vector<256x128xf32>
    %cst_11 = arith.constant 0.000000e+00 : f32
    %18 = vector.broadcast %cst_11 : f32 to vector<1x16x128xf32>
    %c0_12 = arith.constant 0 : index
    %c0_13 = arith.constant 0 : index
    %c0_14 = arith.constant 0 : index
    %19 = vector.load %arg13[%c0_12, %c0_13, %c0_14] : memref<18x16x128xf32, #tpu.memory_space<vmem>>, vector<1x16x128xf32>
    tpu.vector_store %arg13[%c0_12, %c0_13, %c0_14], %18 {strides = array<i32>} : memref<18x16x128xf32, #tpu.memory_space<vmem>>, vector<1x16x128xf32>,
    %c17 = arith.constant 17 : index
    %c0_15 = arith.constant 0 : index
    %c0_16 = arith.constant 0 : index
    %20 = vector.load %arg13[%c17, %c0_15, %c0_16] : memref<18x16x128xf32, #tpu.memory_space<vmem>>, vector<1x16x128xf32>
    tpu.vector_store %arg13[%c17, %c0_15, %c0_16], %18 {strides = array<i32>} : memref<18x16x128xf32, #tpu.memory_space<vmem>>, vector<1x16x128xf32>,
    %21 = vector.shape_cast %17 : vector<256x128xf32> to vector<16x16x128xf32>
    %c1 = arith.constant 1 : index
    %c0_17 = arith.constant 0 : index
    %c0_18 = arith.constant 0 : index
    %22 = vector.load %arg13[%c1, %c0_17, %c0_18] : memref<18x16x128xf32, #tpu.memory_space<vmem>>, vector<16x16x128xf32>
    tpu.vector_store %arg13[%c1, %c0_17, %c0_18], %21 {strides = array<i32>} : memref<18x16x128xf32, #tpu.memory_space<vmem>>, vector<16x16x128xf32>,
    %c0_19 = arith.constant 0 : index
    %c0_20 = arith.constant 0 : index
    %23 = vector.load %arg4[%c0_19, %c0_20] : memref<9x128xf32, #tpu.memory_space<vmem>>, vector<9x128xf32>
    %24 = tpu.iota {dimensions = array<i32: 1>} : vector<1x16x128xi32>
    %c0_i32 = arith.constant 0 : i32
    %25 = vector.broadcast %c0_i32 : i32 to vector<1x16x128xi32>
    %26 = arith.cmpi sgt, %24, %25 : vector<1x16x128xi32>
    %27 = arith.extui %26 : vector<1x16x128xi1> to vector<1x16x128xi32>
    %28 = arith.sitofp %27 : vector<1x16x128xi32> to vector<1x16x128xf32>
    %c15_i32 = arith.constant 15 : i32
    %29 = vector.broadcast %c15_i32 : i32 to vector<1x16x128xi32>
    %30 = arith.cmpi slt, %24, %29 : vector<1x16x128xi32>
    %31 = arith.extui %30 : vector<1x16x128xi1> to vector<1x16x128xi32>
    %32 = arith.sitofp %31 : vector<1x16x128xi32> to vector<1x16x128xf32>
    %c0_21 = arith.constant 0 : index
    %c0_22 = arith.constant 0 : index
    %c0_23 = arith.constant 0 : index
    %33 = vector.load %arg13[%c0_21, %c0_22, %c0_23] : memref<18x16x128xf32, #tpu.memory_space<vmem>>, vector<16x16x128xf32>
    %34 = vector.extract_strided_slice %23 {offsets = [1, 0], sizes = [1, 128], strides = [1, 1]} : vector<9x128xf32> to vector<1x128xf32>
    %35 = vector.shape_cast %34 : vector<1x128xf32> to vector<128xf32>
    %36 = vector.shape_cast %35 : vector<128xf32> to vector<1x1x128xf32>
    %37 = vector.broadcast %36 : vector<1x1x128xf32> to vector<16x16x128xf32>
    %38 = arith.mulf %33, %37 : vector<16x16x128xf32>
    %c1_24 = arith.constant 1 : index
    %c0_25 = arith.constant 0 : index
    %c0_26 = arith.constant 0 : index
    %39 = vector.load %arg13[%c1_24, %c0_25, %c0_26] : memref<18x16x128xf32, #tpu.memory_space<vmem>>, vector<16x16x128xf32>
    %40 = vector.extract_strided_slice %23 {offsets = [4, 0], sizes = [1, 128], strides = [1, 1]} : vector<9x128xf32> to vector<1x128xf32>
    %41 = vector.shape_cast %40 : vector<1x128xf32> to vector<128xf32>
    %42 = vector.shape_cast %41 : vector<128xf32> to vector<1x1x128xf32>
    %43 = vector.broadcast %42 : vector<1x1x128xf32> to vector<16x16x128xf32>
    %44 = arith.mulf %39, %43 : vector<16x16x128xf32>
    %45 = arith.addf %38, %44 : vector<16x16x128xf32>
    %c2 = arith.constant 2 : index
    %c0_27 = arith.constant 0 : index
    %c0_28 = arith.constant 0 : index
    %46 = vector.load %arg13[%c2, %c0_27, %c0_28] : memref<18x16x128xf32, #tpu.memory_space<vmem>>, vector<16x16x128xf32>
    %47 = vector.extract_strided_slice %23 {offsets = [7, 0], sizes = [1, 128], strides = [1, 1]} : vector<9x128xf32> to vector<1x128xf32>
    %48 = vector.shape_cast %47 : vector<1x128xf32> to vector<128xf32>
    %49 = vector.shape_cast %48 : vector<128xf32> to vector<1x1x128xf32>
    %50 = vector.broadcast %49 : vector<1x1x128xf32> to vector<16x16x128xf32>
    %51 = arith.mulf %46, %50 : vector<16x16x128xf32>
    %52 = arith.addf %45, %51 : vector<16x16x128xf32>
    %c0_29 = arith.constant 0 : index
    %c0_30 = arith.constant 0 : index
    %c0_31 = arith.constant 0 : index
    %53 = vector.load %arg13[%c0_29, %c0_30, %c0_31] : memref<18x16x128xf32, #tpu.memory_space<vmem>>, vector<18x16x128xf32>
    %c1_i32 = arith.constant 1 : i32
    %54 = tpu.dynamic_rotate %53 by %c1_i32 dim 1 : vector<18x16x128xf32>, i32 -> vector<18x16x128xf32>
    %55 = vector.broadcast %28 : vector<1x16x128xf32> to vector<18x16x128xf32>
    %56 = arith.mulf %54, %55 : vector<18x16x128xf32>
    %57 = vector.extract_strided_slice %56 {offsets = [0, 0, 0], sizes = [16, 16, 128], strides = [1, 1, 1]} : vector<18x16x128xf32> to vector<16x16x128xf32>
    %58 = vector.extract_strided_slice %23 {offsets = [0, 0], sizes = [1, 128], strides = [1, 1]} : vector<9x128xf32> to vector<1x128xf32>
    %59 = vector.shape_cast %58 : vector<1x128xf32> to vector<128xf32>
    %60 = vector.shape_cast %59 : vector<128xf32> to vector<1x1x128xf32>
    %61 = vector.broadcast %60 : vector<1x1x128xf32> to vector<16x16x128xf32>
    %62 = arith.mulf %57, %61 : vector<16x16x128xf32>
    %63 = arith.addf %52, %62 : vector<16x16x128xf32>
    %64 = vector.extract_strided_slice %56 {offsets = [1, 0, 0], sizes = [16, 16, 128], strides = [1, 1, 1]} : vector<18x16x128xf32> to vector<16x16x128xf32>
    %65 = vector.extract_strided_slice %23 {offsets = [3, 0], sizes = [1, 128], strides = [1, 1]} : vector<9x128xf32> to vector<1x128xf32>
    %66 = vector.shape_cast %65 : vector<1x128xf32> to vector<128xf32>
    %67 = vector.shape_cast %66 : vector<128xf32> to vector<1x1x128xf32>
    %68 = vector.broadcast %67 : vector<1x1x128xf32> to vector<16x16x128xf32>
    %69 = arith.mulf %64, %68 : vector<16x16x128xf32>
    %70 = arith.addf %63, %69 : vector<16x16x128xf32>
    %71 = vector.extract_strided_slice %56 {offsets = [2, 0, 0], sizes = [16, 16, 128], strides = [1, 1, 1]} : vector<18x16x128xf32> to vector<16x16x128xf32>
    %72 = vector.extract_strided_slice %23 {offsets = [6, 0], sizes = [1, 128], strides = [1, 1]} : vector<9x128xf32> to vector<1x128xf32>
    %73 = vector.shape_cast %72 : vector<1x128xf32> to vector<128xf32>
    %74 = vector.shape_cast %73 : vector<128xf32> to vector<1x1x128xf32>
    %75 = vector.broadcast %74 : vector<1x1x128xf32> to vector<16x16x128xf32>
    %76 = arith.mulf %71, %75 : vector<16x16x128xf32>
    %77 = arith.addf %70, %76 : vector<16x16x128xf32>
    %c0_32 = arith.constant 0 : index
    %c0_33 = arith.constant 0 : index
    %c0_34 = arith.constant 0 : index
    %78 = vector.load %arg13[%c0_32, %c0_33, %c0_34] : memref<18x16x128xf32, #tpu.memory_space<vmem>>, vector<18x16x128xf32>
    %c15_i32_35 = arith.constant 15 : i32
    %79 = tpu.dynamic_rotate %78 by %c15_i32_35 dim 1 : vector<18x16x128xf32>, i32 -> vector<18x16x128xf32>
    %80 = vector.broadcast %32 : vector<1x16x128xf32> to vector<18x16x128xf32>
    %81 = arith.mulf %79, %80 : vector<18x16x128xf32>
    %82 = vector.extract_strided_slice %81 {offsets = [0, 0, 0], sizes = [16, 16, 128], strides = [1, 1, 1]} : vector<18x16x128xf32> to vector<16x16x128xf32>
    %83 = vector.extract_strided_slice %23 {offsets = [2, 0], sizes = [1, 128], strides = [1, 1]} : vector<9x128xf32> to vector<1x128xf32>
    %84 = vector.shape_cast %83 : vector<1x128xf32> to vector<128xf32>
    %85 = vector.shape_cast %84 : vector<128xf32> to vector<1x1x128xf32>
    %86 = vector.broadcast %85 : vector<1x1x128xf32> to vector<16x16x128xf32>
    %87 = arith.mulf %82, %86 : vector<16x16x128xf32>
    %88 = arith.addf %77, %87 : vector<16x16x128xf32>
    %89 = vector.extract_strided_slice %81 {offsets = [1, 0, 0], sizes = [16, 16, 128], strides = [1, 1, 1]} : vector<18x16x128xf32> to vector<16x16x128xf32>
    %90 = vector.extract_strided_slice %23 {offsets = [5, 0], sizes = [1, 128], strides = [1, 1]} : vector<9x128xf32> to vector<1x128xf32>
    %91 = vector.shape_cast %90 : vector<1x128xf32> to vector<128xf32>
    %92 = vector.shape_cast %91 : vector<128xf32> to vector<1x1x128xf32>
    %93 = vector.broadcast %92 : vector<1x1x128xf32> to vector<16x16x128xf32>
    %94 = arith.mulf %89, %93 : vector<16x16x128xf32>
    %95 = arith.addf %88, %94 : vector<16x16x128xf32>
    %96 = vector.extract_strided_slice %81 {offsets = [2, 0, 0], sizes = [16, 16, 128], strides = [1, 1, 1]} : vector<18x16x128xf32> to vector<16x16x128xf32>
    %97 = vector.extract_strided_slice %23 {offsets = [8, 0], sizes = [1, 128], strides = [1, 1]} : vector<9x128xf32> to vector<1x128xf32>
    %98 = vector.shape_cast %97 : vector<1x128xf32> to vector<128xf32>
    %99 = vector.shape_cast %98 : vector<128xf32> to vector<1x1x128xf32>
    %100 = vector.broadcast %99 : vector<1x1x128xf32> to vector<16x16x128xf32>
    %101 = arith.mulf %96, %100 : vector<16x16x128xf32>
    %102 = arith.addf %95, %101 : vector<16x16x128xf32>
    %c0_36 = arith.constant 0 : index
    %c0_37 = arith.constant 0 : index
    %103 = vector.load %arg5[%c0_36, %c0_37] : memref<1x128xf32, #tpu.memory_space<vmem>>, vector<1x128xf32>
    %104 = vector.shape_cast %103 : vector<1x128xf32> to vector<128xf32>
    %105 = vector.shape_cast %104 : vector<128xf32> to vector<1x1x128xf32>
    %106 = vector.broadcast %105 : vector<1x1x128xf32> to vector<16x16x128xf32>
    %107 = arith.addf %102, %106 : vector<16x16x128xf32>
    %cst_38 = arith.constant 3.000000e+00 : f32
    %108 = vector.broadcast %cst_38 : f32 to vector<16x16x128xf32>
    %109 = arith.addf %107, %108 : vector<16x16x128xf32>
    %cst_39 = arith.constant 0.000000e+00 : f32
    %cst_40 = arith.constant 6.000000e+00 : f32
    %110 = vector.broadcast %cst_39 : f32 to vector<16x16x128xf32>
    %111 = arith.maximumf %110, %109 : vector<16x16x128xf32>
    %112 = vector.broadcast %cst_40 : f32 to vector<16x16x128xf32>
    %113 = arith.minimumf %112, %111 : vector<16x16x128xf32>
    %cst_41 = arith.constant 0.166666672 : f32
    %114 = vector.broadcast %cst_41 : f32 to vector<16x16x128xf32>
    %115 = arith.mulf %113, %114 : vector<16x16x128xf32>
    %116 = arith.mulf %107, %115 : vector<16x16x128xf32>
    %cst_42 = arith.constant dense<0.000000e+00> : vector<128xf32>
    %117 = vector.multi_reduction <add>, %116, %cst_42 [0, 1] : vector<16x16x128xf32> to vector<128xf32>
    %cst_43 = arith.constant 3.906250e-03 : f32
    %118 = vector.broadcast %cst_43 : f32 to vector<128xf32>
    %119 = arith.mulf %117, %118 : vector<128xf32>
    %120 = vector.shape_cast %119 : vector<128xf32> to vector<1x128xf32>
    %c0_44 = arith.constant 0 : index
    %c0_45 = arith.constant 0 : index
    %121 = vector.load %arg6[%c0_44, %c0_45] : memref<128x128xf32, #tpu.memory_space<vmem>>, vector<128x128xf32>
    %cst_46 = arith.constant dense<0.000000e+00> : vector<1x128xf32>
    %122 = tpu.matmul %120, %121, %cst_46 {dimension_numbers = #tpu.dot_dimension_numbers<[1], [0], [0], [1], [0, 0, 1, 1], [], []>} : vector<1x128xf32>, vector<128x128xf32>, vector<1x128xf32> -> vector<1x128xf32>
    %c0_47 = arith.constant 0 : index
    %c0_48 = arith.constant 0 : index
    %123 = vector.load %arg7[%c0_47, %c0_48] : memref<1x128xf32, #tpu.memory_space<vmem>>, vector<1x128xf32>
    %124 = arith.addf %122, %123 : vector<1x128xf32>
    %cst_49 = arith.constant 0.000000e+00 : f32
    %125 = vector.broadcast %cst_49 : f32 to vector<1x128xf32>
    %126 = arith.maximumf %124, %125 : vector<1x128xf32>
    %c0_50 = arith.constant 0 : index
    %c0_51 = arith.constant 0 : index
    %127 = vector.load %arg8[%c0_50, %c0_51] : memref<128x128xf32, #tpu.memory_space<vmem>>, vector<128x128xf32>
    %cst_52 = arith.constant dense<0.000000e+00> : vector<1x128xf32>
    %128 = tpu.matmul %126, %127, %cst_52 {dimension_numbers = #tpu.dot_dimension_numbers<[1], [0], [0], [1], [0, 0, 1, 1], [], []>} : vector<1x128xf32>, vector<128x128xf32>, vector<1x128xf32> -> vector<1x128xf32>
    %c0_53 = arith.constant 0 : index
    %c0_54 = arith.constant 0 : index
    %129 = vector.load %arg9[%c0_53, %c0_54] : memref<1x128xf32, #tpu.memory_space<vmem>>, vector<1x128xf32>
    %130 = arith.addf %128, %129 : vector<1x128xf32>
    %cst_55 = arith.constant 3.000000e+00 : f32
    %131 = vector.broadcast %cst_55 : f32 to vector<1x128xf32>
    %132 = arith.addf %130, %131 : vector<1x128xf32>
    %cst_56 = arith.constant 0.000000e+00 : f32
    %cst_57 = arith.constant 6.000000e+00 : f32
    %133 = vector.broadcast %cst_56 : f32 to vector<1x128xf32>
    %134 = arith.maximumf %133, %132 : vector<1x128xf32>
    %135 = vector.broadcast %cst_57 : f32 to vector<1x128xf32>
    %136 = arith.minimumf %135, %134 : vector<1x128xf32>
    %cst_58 = arith.constant 0.166666672 : f32
    %137 = vector.broadcast %cst_58 : f32 to vector<1x128xf32>
    %138 = arith.mulf %136, %137 : vector<1x128xf32>
    %c0_59 = arith.constant 0 : index
    %c0_60 = arith.constant 0 : index
    %139 = vector.load %arg10[%c0_59, %c0_60] : memref<128x128xf32, #tpu.memory_space<vmem>>, vector<128x128xf32>
    %140 = vector.shape_cast %138 : vector<1x128xf32> to vector<128x1xf32>
    %141 = vector.broadcast %140 : vector<128x1xf32> to vector<128x128xf32>
    %142 = arith.mulf %139, %141 : vector<128x128xf32>
    %143 = arith.truncf %142 : vector<128x128xf32> to vector<128x128xbf16>
    %144 = vector.shape_cast %116 : vector<16x16x128xf32> to vector<256x128xf32>
    %145 = arith.truncf %144 : vector<256x128xf32> to vector<256x128xbf16>
    %cst_61 = arith.constant dense<0.000000e+00> : vector<256x128xf32>
    %146 = tpu.matmul %145, %143, %cst_61 {dimension_numbers = #tpu.dot_dimension_numbers<[1], [0], [0], [1], [0, 0, 1, 1], [], []>} : vector<256x128xbf16>, vector<128x128xbf16>, vector<256x128xf32> -> vector<256x128xf32>
    %c0_62 = arith.constant 0 : index
    %c0_63 = arith.constant 0 : index
    %147 = vector.load %arg11[%c0_62, %c0_63] : memref<1x128xf32, #tpu.memory_space<vmem>>, vector<1x128xf32>
    %148 = vector.broadcast %147 : vector<1x128xf32> to vector<256x128xf32>
    %149 = arith.addf %146, %148 : vector<256x128xf32>
    %150 = vector.shape_cast %149 : vector<256x128xf32> to vector<16x16x128xf32>
    %151 = arith.addf %150, %1 : vector<16x16x128xf32>
    %c0_64 = arith.constant 0 : index
    %c0_65 = arith.constant 0 : index
    %c0_66 = arith.constant 0 : index
    %c0_67 = arith.constant 0 : index
    %152 = vector.load %arg12[%c0_64, %c0_65, %c0_66, %c0_67] : memref<1x16x16x128xf32, #tpu.memory_space<vmem>>, vector<1x16x16x128xf32>
    %153 = vector.shape_cast %152 : vector<1x16x16x128xf32> to vector<16x16x128xf32>
    %154 = vector.shape_cast %151 : vector<16x16x128xf32> to vector<1x16x16x128xf32>
    tpu.vector_store %arg12[%c0_64, %c0_65, %c0_66, %c0_67], %154 {strides = array<i32>} : memref<1x16x16x128xf32, #tpu.memory_space<vmem>>, vector<1x16x16x128xf32>,
    return
  }
  func.func @transform_0(%arg0: i32) -> (i32, i32, i32, i32) {
    %c0_i32 = arith.constant 0 : i32
    %c0_i32_0 = arith.constant 0 : i32
    %c0_i32_1 = arith.constant 0 : i32
    %c0_i32_2 = arith.constant 0 : i32
    return %arg0, %c0_i32, %c0_i32_0, %c0_i32_1 : i32, i32, i32, i32
  }
  func.func @transform_1(%arg0: i32) -> (i32, i32) {
    %c0_i32 = arith.constant 0 : i32
    %c0_i32_0 = arith.constant 0 : i32
    %c0_i32_1 = arith.constant 0 : i32
    return %c0_i32, %c0_i32_0 : i32, i32
  }
  func.func @transform_2(%arg0: i32) -> (i32, i32) {
    %c0_i32 = arith.constant 0 : i32
    %c0_i32_0 = arith.constant 0 : i32
    %c0_i32_1 = arith.constant 0 : i32
    return %c0_i32, %c0_i32_0 : i32, i32
  }
  func.func @transform_3(%arg0: i32) -> (i32, i32) {
    %c0_i32 = arith.constant 0 : i32
    %c0_i32_0 = arith.constant 0 : i32
    %c0_i32_1 = arith.constant 0 : i32
    return %c0_i32, %c0_i32_0 : i32, i32
  }
  func.func @transform_4(%arg0: i32) -> (i32, i32) {
    %c0_i32 = arith.constant 0 : i32
    %c0_i32_0 = arith.constant 0 : i32
    %c0_i32_1 = arith.constant 0 : i32
    return %c0_i32, %c0_i32_0 : i32, i32
  }
  func.func @transform_5(%arg0: i32) -> (i32, i32) {
    %c0_i32 = arith.constant 0 : i32
    %c0_i32_0 = arith.constant 0 : i32
    %c0_i32_1 = arith.constant 0 : i32
    return %c0_i32, %c0_i32_0 : i32, i32
  }
  func.func @transform_6(%arg0: i32) -> (i32, i32) {
    %c0_i32 = arith.constant 0 : i32
    %c0_i32_0 = arith.constant 0 : i32
    %c0_i32_1 = arith.constant 0 : i32
    return %c0_i32, %c0_i32_0 : i32, i32
  }
  func.func @transform_7(%arg0: i32) -> (i32, i32) {
    %c0_i32 = arith.constant 0 : i32
    %c0_i32_0 = arith.constant 0 : i32
    %c0_i32_1 = arith.constant 0 : i32
    return %c0_i32, %c0_i32_0 : i32, i32
  }
  func.func @transform_8(%arg0: i32) -> (i32, i32) {
    %c0_i32 = arith.constant 0 : i32
    %c0_i32_0 = arith.constant 0 : i32
    %c0_i32_1 = arith.constant 0 : i32
    return %c0_i32, %c0_i32_0 : i32, i32
  }
  func.func @transform_9(%arg0: i32) -> (i32, i32) {
    %c0_i32 = arith.constant 0 : i32
    %c0_i32_0 = arith.constant 0 : i32
    %c0_i32_1 = arith.constant 0 : i32
    return %c0_i32, %c0_i32_0 : i32, i32
  }
  func.func @transform_10(%arg0: i32) -> (i32, i32) {
    %c0_i32 = arith.constant 0 : i32
    %c0_i32_0 = arith.constant 0 : i32
    %c0_i32_1 = arith.constant 0 : i32
    return %c0_i32, %c0_i32_0 : i32, i32
  }
  func.func @transform_11(%arg0: i32) -> (i32, i32, i32, i32) {
    %c0_i32 = arith.constant 0 : i32
    %c0_i32_0 = arith.constant 0 : i32
    %c0_i32_1 = arith.constant 0 : i32
    %c0_i32_2 = arith.constant 0 : i32
    return %arg0, %c0_i32, %c0_i32_0, %c0_i32_1 : i32, i32, i32, i32
  }
}

</mosaic_0001>

<llo_original>
// kernel: tpu_custom_call.1
$region0: #{tpu_custom_call.1}
  #allocation0 [shape = 'u32[]', space=smem, size = 0x4, offset = 0x4, fixed_abs, tag = 'smem constant byte address 0x4 - core index']
  #allocation1 [shape = 'u32[144,128]{1,0:T(1,128)}', space=vmem, size = 0x12000, scoped, tag = 'internal scratch']
  #allocation2 [shape = 'f32[18,16,128]{2,1,0:T(8,128)}', space=vmem, size = 0x24000, scoped, tag = 'scratch operand']
  %s0 = inlined_call_operand.hbm [shape: f32[2,16,16,128], index: 0, kind: input, shape index: {}]
  %s1 = inlined_call_operand.hbm [shape: bf16[128,128], index: 1, kind: input, shape index: {}]
  %s2 = inlined_call_operand.vmem [shape: f32[1,128], index: 2, kind: input, shape index: {}]
  %s3 = inlined_call_operand.hbm [shape: f32[9,128], index: 3, kind: input, shape index: {}]
  %s4 = inlined_call_operand.vmem [shape: f32[1,128], index: 4, kind: input, shape index: {}]
  %s5 = inlined_call_operand.hbm [shape: f32[128,128], index: 5, kind: input, shape index: {}]
  %s6 = inlined_call_operand.vmem [shape: f32[1,128], index: 6, kind: input, shape index: {}]
  %s7 = inlined_call_operand.hbm [shape: f32[128,128], index: 7, kind: input, shape index: {}]
  %s8 = inlined_call_operand.vmem [shape: f32[1,128], index: 8, kind: input, shape index: {}]
  %s9 = inlined_call_operand.hbm [shape: f32[128,128], index: 9, kind: input, shape index: {}]
  %s10 = inlined_call_operand.vmem [shape: f32[1,128], index: 10, kind: input, shape index: {}]
  %s11 = inlined_call_operand.hbm [shape: f32[2,16,16,128], index: 11, kind: output, shape index: {}]
  %s12 = sld [smem:[#allocation0]]
  $region101: #{tpu_custom_call.1} parent=0
    _
  %s14 = ssub.s32 1, %s12
  %s15 = scalar_select 0, %s14, %s12
  $region1: #{tpu_custom_call.1} parent=0
    #allocation3 [shape = 'u8[262144]{0}', space=vmem, size = 0x40000, scoped, tag = 'input window, operand 0']
    #allocation4 [shape = 's32[2]{0}', space=sflag, size = 0x8, scoped, tag = 'scoped memory for tpu_custom_call.1']
    #allocation5 [shape = 's32[2]{0}', space=sflag, size = 0x8, scoped, tag = 'scoped memory for tpu_custom_call.1']
    #allocation6 [shape = 'u8[32768]{0}', space=vmem, size = 0x8000, scoped, tag = 'input window, operand 1, single buffered']
    #allocation7 [shape = 's32[1]{0}', space=sflag, size = 0x4, scoped, tag = 'scoped memory for tpu_custom_call.1']
    #allocation8 [shape = 'u8[8192]{0}', space=vmem, size = 0x2000, scoped, tag = 'input window, operand 3, single buffered']
    #allocation9 [shape = 'u8[65536]{0}', space=vmem, size = 0x10000, scoped, tag = 'input window, operand 5, single buffered']
    #allocation10 [shape = 's32[1]{0}', space=sflag, size = 0x4, scoped, tag = 'scoped memory for tpu_custom_call.1']
    #allocation11 [shape = 'u8[65536]{0}', space=vmem, size = 0x10000, scoped, tag = 'input window, operand 7, single buffered']
    #allocation12 [shape = 'u8[65536]{0}', space=vmem, size = 0x10000, scoped, tag = 'input window, operand 9, single buffered']
    #allocation13 [shape = 's32[1]{0}', space=sflag, size = 0x4, scoped, tag = 'scoped memory for tpu_custom_call.1']
    #allocation14 [shape = 'u8[262144]{0}', space=vmem, size = 0x40000, scoped, tag = 'output window, operand 0']
    %16 = vsyncpa [#allocation4], 0
    %s17 = scalar_lea.sflag [#allocation4], 1
    %18 = vsyncpa %s17, 0
    %19 = vsyncpa [#allocation7], 0
    %20 = vsyncpa [#allocation10], 0
    %21 = vsyncpa [#allocation13], 0
    %22 = vsyncpa [#allocation5], 0
    %s23 = scalar_lea.sflag [#allocation5], 1
    %24 = vsyncpa %s23, 0
    loop: start=0, step=1, limit=4
    $region2: #{tpu_custom_call.1} parent=1 // loop_pre_header
      _
    $region3: #{tpu_custom_call.1} parent=1 // loop_header
      %s26 = sphi 0, %s30
      %p27 = scmp.ge.s32.totalorder %s26, 4
      %s36 = sphi 0, %s38
      %s39 = sphi 0, %s36
      %s40 = sphi 0, %s39
      %s56 = sphi 0, %s40
      %s60 = sphi 0, %s60
      %s62 = sphi 0, %s60
      %s63 = sphi 0, %s62
      %s77 = sphi 0, %s63
      %s81 = sphi 0, %s81
      %s83 = sphi 0, %s81
      %s84 = sphi 0, %s83
      %s98 = sphi 0, %s84
      %s102 = sphi 0, %s102
      %s104 = sphi 0, %s102
      %s105 = sphi 0, %s104
      %s119 = sphi 0, %s105
      %s123 = sphi 0, %s123
      %s125 = sphi 0, %s123
      %s126 = sphi 0, %s125
      %s140 = sphi 0, %s126
      %s144 = sphi 0, %s144
      %s146 = sphi 0, %s144
      %s147 = sphi 0, %s146
      %s161 = sphi 0, %s147
      %s165 = sphi 0, %s165
      %s167 = sphi 0, %s165
      %s168 = sphi 0, %s167
      %s182 = sphi 0, %s168
      %s186 = sphi 0, %s186
      %s188 = sphi 0, %s186
      %s189 = sphi 0, %s188
      %s203 = sphi 0, %s189
      %s207 = sphi 0, %s207
      %s209 = sphi 0, %s207
      %s210 = sphi 0, %s209
      %s224 = sphi 0, %s210
      %s228 = sphi 0, %s228
      %s230 = sphi 0, %s228
      %s231 = sphi 0, %s230
      %s245 = sphi 0, %s231
      %s249 = sphi 0, %s249
      %s251 = sphi 0, %s249
      %s252 = sphi 0, %s251
      %s266 = sphi 0, %s252
      %s272 = sphi 0, %s274
      %s275 = sphi 0, %s272
      %s276 = sphi 0, %s275
      %s292 = sphi 0, %s276
    $region4: #{tpu_custom_call.1} parent=1 // loop_header_branch
      %29 = sbr.rel (%p27) target = $region8
    $region5: #{tpu_custom_call.1} parent=1 // loop_body
      %s31 = ssub.s32 %s26, 1
      %s32 = ssub.s32 %s26, 2
      %s33 = sadd.s32 %s26, 1
      %s34 = ssub.s32 %s26, %s33
      %p35 = scmp.eq.s32.totalorder %s34, 0
      %s37 = sadd.s32 %s36, 1
      %s38 = scalar_select %p35, %s36, %s37
      %p41 = pneg %p35
      %p42 = scmp.eq.s32.totalorder %s26, 1
      %p43 = por %p41, %p42
      %p44 = scmp.ne.s32.totalorder %s36, %s39
      %p45 = scmp.eq.s32.totalorder %s26, 0
      %p46 = por %p44, %p45
      %p47 = scmp.ne.s32.totalorder %s36, %s39
      %p48 = scmp.eq.s32.totalorder %s31, 1
      %p49 = por %p47, %p48
      %p50 = scmp.ne.s32.totalorder %s39, %s40
      %p51 = scmp.eq.s32.totalorder %s31, 0
      %p52 = por %p50, %p51
      %p53 = scmp.ne.s32.totalorder %s39, %s40
      %p54 = scmp.eq.s32.totalorder %s32, 1
      %p55 = por %p53, %p54
      %p57 = scmp.ne.s32.totalorder %s40, %s56
      %p58 = scmp.eq.s32.totalorder %s32, 0
      %p59 = por %p57, %p58
      %s61 = sadd.s32 %s60, 1
      %p64 = scmp.eq.s32.totalorder %s26, 1
      %p65 = scmp.ne.s32.totalorder %s60, %s62
      %p66 = scmp.eq.s32.totalorder %s26, 0
      %p67 = por %p65, %p66
      %p68 = scmp.ne.s32.totalorder %s60, %s62
      %p69 = scmp.eq.s32.totalorder %s31, 1
      %p70 = por %p68, %p69
      %p71 = scmp.ne.s32.totalorder %s62, %s63
      %p72 = scmp.eq.s32.totalorder %s31, 0
      %p73 = por %p71, %p72
      %p74 = scmp.ne.s32.totalorder %s62, %s63
      %p75 = scmp.eq.s32.totalorder %s32, 1
      %p76 = por %p74, %p75
      %p78 = scmp.ne.s32.totalorder %s63, %s77
      %p79 = scmp.eq.s32.totalorder %s32, 0
      %p80 = por %p78, %p79
      %s82 = sadd.s32 %s81, 1
      %p85 = scmp.eq.s32.totalorder %s26, 1
      %p86 = scmp.ne.s32.totalorder %s81, %s83
      %p87 = scmp.eq.s32.totalorder %s26, 0
      %p88 = por %p86, %p87
      %p89 = scmp.ne.s32.totalorder %s81, %s83
      %p90 = scmp.eq.s32.totalorder %s31, 1
      %p91 = por %p89, %p90
      %p92 = scmp.ne.s32.totalorder %s83, %s84
      %p93 = scmp.eq.s32.totalorder %s31, 0
      %p94 = por %p92, %p93
      %p95 = scmp.ne.s32.totalorder %s83, %s84
      %p96 = scmp.eq.s32.totalorder %s32, 1
      %p97 = por %p95, %p96
      %p99 = scmp.ne.s32.totalorder %s84, %s98
      %p100 = scmp.eq.s32.totalorder %s32, 0
      %p101 = por %p99, %p100
      %s103 = sadd.s32 %s102, 1
      %p106 = scmp.eq.s32.totalorder %s26, 1
      %p107 = scmp.ne.s32.totalorder %s102, %s104
      %p108 = scmp.eq.s32.totalorder %s26, 0
      %p109 = por %p107, %p108
      %p110 = scmp.ne.s32.totalorder %s102, %s104
      %p111 = scmp.eq.s32.totalorder %s31, 1
      %p112 = por %p110, %p111
      %p113 = scmp.ne.s32.totalorder %s104, %s105
      %p114 = scmp.eq.s32.totalorder %s31, 0
      %p115 = por %p113, %p114
      %p116 = scmp.ne.s32.totalorder %s104, %s105
      %p117 = scmp.eq.s32.totalorder %s32, 1
      %p118 = por %p116, %p117
      %p120 = scmp.ne.s32.totalorder %s105, %s119
      %p121 = scmp.eq.s32.totalorder %s32, 0
      %p122 = por %p120, %p121
      %s124 = sadd.s32 %s123, 1
      %p127 = scmp.eq.s32.totalorder %s26, 1
      %p128 = scmp.ne.s32.totalorder %s123, %s125
      %p129 = scmp.eq.s32.totalorder %s26, 0
      %p130 = por %p128, %p129
      %p131 = scmp.ne.s32.totalorder %s123, %s125
      %p132 = scmp.eq.s32.totalorder %s31, 1
      %p133 = por %p131, %p132
      %p134 = scmp.ne.s32.totalorder %s125, %s126
      %p135 = scmp.eq.s32.totalorder %s31, 0
      %p136 = por %p134, %p135
      %p137 = scmp.ne.s32.totalorder %s125, %s126
      %p138 = scmp.eq.s32.totalorder %s32, 1
      %p139 = por %p137, %p138
      %p141 = scmp.ne.s32.totalorder %s126, %s140
      %p142 = scmp.eq.s32.totalorder %s32, 0
      %p143 = por %p141, %p142
      %s145 = sadd.s32 %s144, 1
      %p148 = scmp.eq.s32.totalorder %s26, 1
      %p149 = scmp.ne.s32.totalorder %s144, %s146
      %p150 = scmp.eq.s32.totalorder %s26, 0
      %p151 = por %p149, %p150
      %p152 = scmp.ne.s32.totalorder %s144, %s146
      %p153 = scmp.eq.s32.totalorder %s31, 1
      %p154 = por %p152, %p153
      %p155 = scmp.ne.s32.totalorder %s146, %s147
      %p156 = scmp.eq.s32.totalorder %s31, 0
      %p157 = por %p155, %p156
      %p158 = scmp.ne.s32.totalorder %s146, %s147
      %p159 = scmp.eq.s32.totalorder %s32, 1
      %p160 = por %p158, %p159
      %p162 = scmp.ne.s32.totalorder %s147, %s161
      %p163 = scmp.eq.s32.totalorder %s32, 0
      %p164 = por %p162, %p163
      %s166 = sadd.s32 %s165, 1
      %p169 = scmp.eq.s32.totalorder %s26, 1
      %p170 = scmp.ne.s32.totalorder %s165, %s167
      %p171 = scmp.eq.s32.totalorder %s26, 0
      %p172 = por %p170, %p171
      %p173 = scmp.ne.s32.totalorder %s165, %s167
      %p174 = scmp.eq.s32.totalorder %s31, 1
      %p175 = por %p173, %p174
      %p176 = scmp.ne.s32.totalorder %s167, %s168
      %p177 = scmp.eq.s32.totalorder %s31, 0
      %p178 = por %p176, %p177
      %p179 = scmp.ne.s32.totalorder %s167, %s168
      %p180 = scmp.eq.s32.totalorder %s32, 1
      %p181 = por %p179, %p180
      %p183 = scmp.ne.s32.totalorder %s168, %s182
      %p184 = scmp.eq.s32.totalorder %s32, 0
      %p185 = por %p183, %p184
      %s187 = sadd.s32 %s186, 1
      %p190 = scmp.eq.s32.totalorder %s26, 1
      %p191 = scmp.ne.s32.totalorder %s186, %s188
      %p192 = scmp.eq.s32.totalorder %s26, 0
      %p193 = por %p191, %p192
      %p194 = scmp.ne.s32.totalorder %s186, %s188
      %p195 = scmp.eq.s32.totalorder %s31, 1
      %p196 = por %p194, %p195
      %p197 = scmp.ne.s32.totalorder %s188, %s189
      %p198 = scmp.eq.s32.totalorder %s31, 0
      %p199 = por %p197, %p198
      %p200 = scmp.ne.s32.totalorder %s188, %s189
      %p201 = scmp.eq.s32.totalorder %s32, 1
      %p202 = por %p200, %p201
      %p204 = scmp.ne.s32.totalorder %s189, %s203
      %p205 = scmp.eq.s32.totalorder %s32, 0
      %p206 = por %p204, %p205
      %s208 = sadd.s32 %s207, 1
      %p211 = scmp.eq.s32.totalorder %s26, 1
      %p212 = scmp.ne.s32.totalorder %s207, %s209
      %p213 = scmp.eq.s32.totalorder %s26, 0
      %p214 = por %p212, %p213
      %p215 = scmp.ne.s32.totalorder %s207, %s209
      %p216 = scmp.eq.s32.totalorder %s31, 1
      %p217 = por %p215, %p216
      %p218 = scmp.ne.s32.totalorder %s209, %s210
      %p219 = scmp.eq.s32.totalorder %s31, 0
      %p220 = por %p218, %p219
      %p221 = scmp.ne.s32.totalorder %s209, %s210
      %p222 = scmp.eq.s32.totalorder %s32, 1
      %p223 = por %p221, %p222
      %p225 = scmp.ne.s32.totalorder %s210, %s224
      %p226 = scmp.eq.s32.totalorder %s32, 0
      %p227 = por %p225, %p226
      %s229 = sadd.s32 %s228, 1
      %p232 = scmp.eq.s32.totalorder %s26, 1
      %p233 = scmp.ne.s32.totalorder %s228, %s230
      %p234 = scmp.eq.s32.totalorder %s26, 0
      %p235 = por %p233, %p234
      %p236 = scmp.ne.s32.totalorder %s228, %s230
      %p237 = scmp.eq.s32.totalorder %s31, 1
      %p238 = por %p236, %p237
      %p239 = scmp.ne.s32.totalorder %s230, %s231
      %p240 = scmp.eq.s32.totalorder %s31, 0
      %p241 = por %p239, %p240
      %p242 = scmp.ne.s32.totalorder %s230, %s231
      %p243 = scmp.eq.s32.totalorder %s32, 1
      %p244 = por %p242, %p243
      %p246 = scmp.ne.s32.totalorder %s231, %s245
      %p247 = scmp.eq.s32.totalorder %s32, 0
      %p248 = por %p246, %p247
      %s250 = sadd.s32 %s249, 1
      %p253 = scmp.eq.s32.totalorder %s26, 1
      %p254 = scmp.ne.s32.totalorder %s249, %s251
      %p255 = scmp.eq.s32.totalorder %s26, 0
      %p256 = por %p254, %p255
      %p257 = scmp.ne.s32.totalorder %s249, %s251
      %p258 = scmp.eq.s32.totalorder %s31, 1
      %p259 = por %p257, %p258
      %p260 = scmp.ne.s32.totalorder %s251, %s252
      %p261 = scmp.eq.s32.totalorder %s31, 0
      %p262 = por %p260, %p261
      %p263 = scmp.ne.s32.totalorder %s251, %s252
      %p264 = scmp.eq.s32.totalorder %s32, 1
      %p265 = por %p263, %p264
      %p267 = scmp.ne.s32.totalorder %s252, %s266
      %p268 = scmp.eq.s32.totalorder %s32, 0
      %p269 = por %p267, %p268
      %s270 = ssub.s32 %s26, %s33
      %p271 = scmp.eq.s32.totalorder %s270, 0
      %s273 = sadd.s32 %s272, 1
      %s274 = scalar_select %p271, %s272, %s273
      %p277 = pneg %p271
      %p278 = scmp.eq.s32.totalorder %s26, 1
      %p279 = por %p277, %p278
      %p280 = scmp.ne.s32.totalorder %s272, %s275
      %p281 = scmp.eq.s32.totalorder %s26, 0
      %p282 = por %p280, %p281
      %p283 = scmp.ne.s32.totalorder %s272, %s275
      %p284 = scmp.eq.s32.totalorder %s31, 1
      %p285 = por %p283, %p284
      %p286 = scmp.ne.s32.totalorder %s275, %s276
      %p287 = scmp.eq.s32.totalorder %s31, 0
      %p288 = por %p286, %p287
      %p289 = scmp.ne.s32.totalorder %s275, %s276
      %p290 = scmp.eq.s32.totalorder %s32, 1
      %p291 = por %p289, %p290
      %p293 = scmp.ne.s32.totalorder %s276, %s292
      %p294 = scmp.eq.s32.totalorder %s32, 0
      %p295 = por %p293, %p294
      %p296 = scmp.le.s32.totalorder 1, %s26
      %p297 = scmp.lt.s32.totalorder %s26, 3
      %p298 = pnand %p296, %p297
      %p299 = pneg %p298
      // Predicated region
      $region9: #{tpu_custom_call.1} parent=5 // pred_check
        _
      $region10: #{tpu_custom_call.1} parent=5 // pred_check_branch
        %301 = sbr.rel (%p298) target = $region12
      $region11: #{tpu_custom_call.1} parent=5 // pred_region
        %s302 = ssub.s32 %s26, 1
        // Predicated region
        $region13: #{tpu_custom_call.1} parent=11 // pred_check
          %p303 = pneg %p73
        $region14: #{tpu_custom_call.1} parent=11 // pred_check_branch
          %305 = sbr.rel (%p303) target = $region16
        $region15: #{tpu_custom_call.1} parent=11 // pred_region
          %s307 = ssub.s32 1024, 1024
          %308 = vsyncadd [#allocation7], %s307
          %s309 = sshll.u32 [#allocation6], 4
          %s310 = int_to_ptr.vmem [resolvable:$true] %s309
          %315 = dma.hbm_to_vmem [thread:$0]  %s1, 1024, %s310, [#allocation7], 64, 64, 4
        $region16: #{tpu_custom_call.1} parent=11 // pred_fallthru
          _
        // Predicated region
        $region17: #{tpu_custom_call.1} parent=11 // pred_check
          %p316 = pneg %p94
        $region18: #{tpu_custom_call.1} parent=11 // pred_check_branch
          %318 = sbr.rel (%p316) target = $region20
        $region19: #{tpu_custom_call.1} parent=11 // pred_region
          _
        $region20: #{tpu_custom_call.1} parent=11 // pred_fallthru
          _
        // Predicated region
        $region21: #{tpu_custom_call.1} parent=11 // pred_check
          %p319 = pneg %p115
        $region22: #{tpu_custom_call.1} parent=11 // pred_check_branch
          %321 = sbr.rel (%p319) target = $region24
        $region23: #{tpu_custom_call.1} parent=11 // pred_region
          %s323 = ssub.s32 256, 256
          %324 = vsyncadd [#allocation7], %s323
          %s325 = sshll.u32 [#allocation8], 4
          %s326 = int_to_ptr.vmem [resolvable:$true] %s325
          %331 = dma.hbm_to_vmem [thread:$0]  %s3, 256, %s326, [#allocation7], 128, 128, 8
        $region24: #{tpu_custom_call.1} parent=11 // pred_fallthru
          _
        // Predicated region
        $region25: #{tpu_custom_call.1} parent=11 // pred_check
          %p332 = pneg %p136
        $region26: #{tpu_custom_call.1} parent=11 // pred_check_branch
          %334 = sbr.rel (%p332) target = $region28
        $region27: #{tpu_custom_call.1} parent=11 // pred_region
          _
        $region28: #{tpu_custom_call.1} parent=11 // pred_fallthru
          _
        // Predicated region
        $region29: #{tpu_custom_call.1} parent=11 // pred_check
          %p335 = pneg %p157
        $region30: #{tpu_custom_call.1} parent=11 // pred_check_branch
          %337 = sbr.rel (%p335) target = $region32
        $region31: #{tpu_custom_call.1} parent=11 // pred_region
          %s339 = ssub.s32 2048, 2048
          %340 = vsyncadd [#allocation10], %s339
          %s341 = sshll.u32 [#allocation9], 4
          %s342 = int_to_ptr.vmem [resolvable:$true] %s341
          %347 = dma.hbm_to_vmem [thread:$0]  %s5, 2048, %s342, [#allocation10], 128, 128, 8
        $region32: #{tpu_custom_call.1} parent=11 // pred_fallthru
          _
        // Predicated region
        $region33: #{tpu_custom_call.1} parent=11 // pred_check
          %p348 = pneg %p178
        $region34: #{tpu_custom_call.1} parent=11 // pred_check_branch
          %350 = sbr.rel (%p348) target = $region36
        $region35: #{tpu_custom_call.1} parent=11 // pred_region
          _
        $region36: #{tpu_custom_call.1} parent=11 // pred_fallthru
          _
        // Predicated region
        $region37: #{tpu_custom_call.1} parent=11 // pred_check
          %p351 = pneg %p199
        $region38: #{tpu_custom_call.1} parent=11 // pred_check_branch
          %353 = sbr.rel (%p351) target = $region40
        $region39: #{tpu_custom_call.1} parent=11 // pred_region
          %s355 = ssub.s32 2048, 2048
          %356 = vsyncadd [#allocation10], %s355
          %s357 = sshll.u32 [#allocation11], 4
          %s358 = int_to_ptr.vmem [resolvable:$true] %s357
          %363 = dma.hbm_to_vmem [thread:$0]  %s7, 2048, %s358, [#allocation10], 128, 128, 8
        $region40: #{tpu_custom_call.1} parent=11 // pred_fallthru
          _
        // Predicated region
        $region41: #{tpu_custom_call.1} parent=11 // pred_check
          %p364 = pneg %p220
        $region42: #{tpu_custom_call.1} parent=11 // pred_check_branch
          %366 = sbr.rel (%p364) target = $region44
        $region43: #{tpu_custom_call.1} parent=11 // pred_region
          _
        $region44: #{tpu_custom_call.1} parent=11 // pred_fallthru
          _
        // Predicated region
        $region45: #{tpu_custom_call.1} parent=11 // pred_check
          %p367 = pneg %p241
        $region46: #{tpu_custom_call.1} parent=11 // pred_check_branch
          %369 = sbr.rel (%p367) target = $region48
        $region47: #{tpu_custom_call.1} parent=11 // pred_region
          %s371 = ssub.s32 2048, 2048
          %372 = vsyncadd [#allocation13], %s371
          %s373 = sshll.u32 [#allocation12], 4
          %s374 = int_to_ptr.vmem [resolvable:$true] %s373
          %379 = dma.hbm_to_vmem [thread:$0]  %s9, 2048, %s374, [#allocation13], 128, 128, 8
        $region48: #{tpu_custom_call.1} parent=11 // pred_fallthru
          _
        // Predicated region
        $region49: #{tpu_custom_call.1} parent=11 // pred_check
          %p380 = pneg %p262
        $region50: #{tpu_custom_call.1} parent=11 // pred_check_branch
          %382 = sbr.rel (%p380) target = $region52
        $region51: #{tpu_custom_call.1} parent=11 // pred_region
          _
        $region52: #{tpu_custom_call.1} parent=11 // pred_fallthru
          _
      $region12: #{tpu_custom_call.1} parent=5 // pred_fallthru
        _
      %p383 = scmp.lt.s32.totalorder %s26, 2
      // Predicated region
      $region53: #{tpu_custom_call.1} parent=5 // pred_check
        %p384 = pneg %p383
      $region54: #{tpu_custom_call.1} parent=5 // pred_check_branch
        %386 = sbr.rel (%p384) target = $region56
      $region55: #{tpu_custom_call.1} parent=5 // pred_region
        // Predicated region
        $region57: #{tpu_custom_call.1} parent=55 // pred_check
          %p387 = pneg %p46
        $region58: #{tpu_custom_call.1} parent=55 // pred_check_branch
          %389 = sbr.rel (%p387) target = $region60
        $region59: #{tpu_custom_call.1} parent=55 // pred_region
          %s390 = sand.u32 %s36, 1
          %s391 = scalar_lea.sflag [#allocation4], %s390
          %s392 = sand.u32 %s36, 1
          %s393 = smul.addr %s392, 256
          %s394 = scalar_lea.vmem [#allocation3], %s393
          %s396 = ssub.s32 4096, 4096
          %397 = vsyncadd %s391, %s396
          %s398 = smul.addr %s26, 32
          %s399 = smul.addr %s398, 128
          %s400 = scalar_lea.hbm %s0, %s399
          %s401 = sshll.u32 %s394, 4
          %s402 = int_to_ptr.vmem [resolvable:$true] %s401
          %407 = dma.hbm_to_vmem [thread:$0]  %s400, 4096, %s402, %s391, 128, 128, 8
        $region60: #{tpu_custom_call.1} parent=55 // pred_fallthru
          _
      $region56: #{tpu_custom_call.1} parent=5 // pred_fallthru
        _
      %p408 = scmp.le.s32.totalorder 1, %s26
      %p409 = scmp.lt.s32.totalorder %s26, 3
      %p410 = pnand %p408, %p409
      %p411 = pneg %p410
      // Predicated region
      $region61: #{tpu_custom_call.1} parent=5 // pred_check
        _
      $region62: #{tpu_custom_call.1} parent=5 // pred_check_branch
        %413 = sbr.rel (%p410) target = $region64
      $region63: #{tpu_custom_call.1} parent=5 // pred_region
        %s414 = ssub.s32 %s26, 1
        %s415 = sand.u32 %s39, 1
        %s416 = scalar_lea.sflag [#allocation4], %s415
        %s417 = sand.u32 %s39, 1
        %s418 = smul.addr %s417, 256
        %s419 = scalar_lea.vmem [#allocation3], %s418
        // Predicated region
        $region65: #{tpu_custom_call.1} parent=63 // pred_check
          %p420 = pneg %p52
        $region66: #{tpu_custom_call.1} parent=63 // pred_check_branch
          %422 = sbr.rel (%p420) target = $region68
        $region67: #{tpu_custom_call.1} parent=63 // pred_region
          %423 = dma.done %s416, 4096
        $region68: #{tpu_custom_call.1} parent=63 // pred_fallthru
          _
        // Predicated region
        $region69: #{tpu_custom_call.1} parent=63 // pred_check
          %p424 = pneg %p73
        $region70: #{tpu_custom_call.1} parent=63 // pred_check_branch
          %426 = sbr.rel (%p424) target = $region72
        $region71: #{tpu_custom_call.1} parent=63 // pred_region
          %427 = dma.done [#allocation7], 1024
        $region72: #{tpu_custom_call.1} parent=63 // pred_fallthru
          _
        // Predicated region
        $region73: #{tpu_custom_call.1} parent=63 // pred_check
          %p428 = pneg %p115
        $region74: #{tpu_custom_call.1} parent=63 // pred_check_branch
          %430 = sbr.rel (%p428) target = $region76
        $region75: #{tpu_custom_call.1} parent=63 // pred_region
          %431 = dma.done [#allocation7], 256
        $region76: #{tpu_custom_call.1} parent=63 // pred_fallthru
          _
        // Predicated region
        $region77: #{tpu_custom_call.1} parent=63 // pred_check
          %p432 = pneg %p157
        $region78: #{tpu_custom_call.1} parent=63 // pred_check_branch
          %434 = sbr.rel (%p432) target = $region80
        $region79: #{tpu_custom_call.1} parent=63 // pred_region
          %435 = dma.done [#allocation10], 2048
        $region80: #{tpu_custom_call.1} parent=63 // pred_fallthru
          _
        // Predicated region
        $region81: #{tpu_custom_call.1} parent=63 // pred_check
          %p436 = pneg %p199
        $region82: #{tpu_custom_call.1} parent=63 // pred_check_branch
          %438 = sbr.rel (%p436) target = $region84
        $region83: #{tpu_custom_call.1} parent=63 // pred_region
          %439 = dma.done [#allocation10], 2048
        $region84: #{tpu_custom_call.1} parent=63 // pred_fallthru
          _
        // Predicated region
        $region85: #{tpu_custom_call.1} parent=63 // pred_check
          %p440 = pneg %p241
        $region86: #{tpu_custom_call.1} parent=63 // pred_check_branch
          %442 = sbr.rel (%p440) target = $region88
        $region87: #{tpu_custom_call.1} parent=63 // pred_region
          %443 = dma.done [#allocation13], 2048
        $region88: #{tpu_custom_call.1} parent=63 // pred_fallthru
          _
        %s444 = sand.u32 %s39, 1
        %s445 = scalar_lea.sflag [#allocation4], %s444
        %s446 = sand.u32 %s39, 1
        %s447 = smul.addr %s446, 256
        %s448 = scalar_lea.vmem [#allocation3], %s447
        %p449 = pneg %p52
        %p450 = pneg %p49
        %p451 = pneg %p73
        %p452 = pneg %p70
        %p453 = pneg %p94
        %p454 = pneg %p91
        %p455 = pneg %p115
        %p456 = pneg %p112
        %p457 = pneg %p136
        %p458 = pneg %p133
        %p459 = pneg %p157
        %p460 = pneg %p154
        %p461 = pneg %p178
        %p462 = pneg %p175
        %p463 = pneg %p199
        %p464 = pneg %p196
        %p465 = pneg %p220
        %p466 = pneg %p217
        %p467 = pneg %p241
        %p468 = pneg %p238
        %p469 = pneg %p262
        %p470 = pneg %p259
        %p471 = pneg %p288
        %p472 = pneg %p285
        %s473 = sand.u32 %s275, 1
        %s474 = scalar_lea.sflag [#allocation5], %s473
        %s475 = sand.u32 %s275, 1
        %s476 = smul.addr %s475, 256
        %s477 = scalar_lea.vmem [#allocation14], %s476
        %v479 = vld [vmem:[%s419] sm:$0xff]
        %v480 = vld [vmem:[%s419 + $0x8] sm:$0xff]
        %v481 = vld [vmem:[%s419 + $0x10] sm:$0xff]
        %v482 = vld [vmem:[%s419 + $0x18] sm:$0xff]
        %v483 = vld [vmem:[%s419 + $0x20] sm:$0xff]
        %v484 = vld [vmem:[%s419 + $0x28] sm:$0xff]
        %v485 = vld [vmem:[%s419 + $0x30] sm:$0xff]
        %v486 = vld [vmem:[%s419 + $0x38] sm:$0xff]
        %v487 = vld [vmem:[%s419 + $0x40] sm:$0xff]
        %v488 = vld [vmem:[%s419 + $0x48] sm:$0xff]
        %v489 = vld [vmem:[%s419 + $0x50] sm:$0xff]
        %v490 = vld [vmem:[%s419 + $0x58] sm:$0xff]
        %v491 = vld [vmem:[%s419 + $0x60] sm:$0xff]
        %v492 = vld [vmem:[%s419 + $0x68] sm:$0xff]
        %v493 = vld [vmem:[%s419 + $0x70] sm:$0xff]
        %v494 = vld [vmem:[%s419 + $0x78] sm:$0xff]
        %v495 = vld [vmem:[%s419 + $0x80] sm:$0xff]
        %v496 = vld [vmem:[%s419 + $0x88] sm:$0xff]
        %v497 = vld [vmem:[%s419 + $0x90] sm:$0xff]
        %v498 = vld [vmem:[%s419 + $0x98] sm:$0xff]
        %v499 = vld [vmem:[%s419 + $0xa0] sm:$0xff]
        %v500 = vld [vmem:[%s419 + $0xa8] sm:$0xff]
        %v501 = vld [vmem:[%s419 + $0xb0] sm:$0xff]
        %v502 = vld [vmem:[%s419 + $0xb8] sm:$0xff]
        %v503 = vld [vmem:[%s419 + $0xc0] sm:$0xff]
        %v504 = vld [vmem:[%s419 + $0xc8] sm:$0xff]
        %v505 = vld [vmem:[%s419 + $0xd0] sm:$0xff]
        %v506 = vld [vmem:[%s419 + $0xd8] sm:$0xff]
        %v507 = vld [vmem:[%s419 + $0xe0] sm:$0xff]
        %v508 = vld [vmem:[%s419 + $0xe8] sm:$0xff]
        %v509 = vld [vmem:[%s419 + $0xf0] sm:$0xff]
        %v510 = vld [vmem:[%s419 + $0xf8] sm:$0xff]
        %v511 = vpack.c.bf16 %v480, %v479
        %v512 = vpack.c.bf16 %v482, %v481
        %v513 = vpack.c.bf16 %v484, %v483
        %v514 = vpack.c.bf16 %v486, %v485
        %v515 = vpack.c.bf16 %v488, %v487
        %v516 = vpack.c.bf16 %v490, %v489
        %v517 = vpack.c.bf16 %v492, %v491
        %v518 = vpack.c.bf16 %v494, %v493
        %v519 = vpack.c.bf16 %v496, %v495
        %v520 = vpack.c.bf16 %v498, %v497
        %v521 = vpack.c.bf16 %v500, %v499
        %v522 = vpack.c.bf16 %v502, %v501
        %v523 = vpack.c.bf16 %v504, %v503
        %v524 = vpack.c.bf16 %v506, %v505
        %v525 = vpack.c.bf16 %v508, %v507
        %v526 = vpack.c.bf16 %v510, %v509
        %v527 = vld [vmem:[#allocation6] sm:$0xf]
        %v528 = vld [vmem:[#allocation6 + $0x4] sm:$0xf]
        %v529 = vld [vmem:[#allocation6 + $0x8] sm:$0xf]
        %v530 = vld [vmem:[#allocation6 + $0xc] sm:$0xf]
        %v531 = vld [vmem:[#allocation6 + $0x10] sm:$0xf]
        %v532 = vld [vmem:[#allocation6 + $0x14] sm:$0xf]
        %v533 = vld [vmem:[#allocation6 + $0x18] sm:$0xf]
        %v534 = vld [vmem:[#allocation6 + $0x1c] sm:$0xf]
        %v535 = vld [vmem:[#allocation6 + $0x20] sm:$0xf]
        %v536 = vld [vmem:[#allocation6 + $0x24] sm:$0xf]
        %v537 = vld [vmem:[#allocation6 + $0x28] sm:$0xf]
        %v538 = vld [vmem:[#allocation6 + $0x2c] sm:$0xf]
        %v539 = vld [vmem:[#allocation6 + $0x30] sm:$0xf]
        %v540 = vld [vmem:[#allocation6 + $0x34] sm:$0xf]
        %v541 = vld [vmem:[#allocation6 + $0x38] sm:$0xf]
        %v542 = vld [vmem:[#allocation6 + $0x3c] sm:$0xf]
        %v543 = vld [vmem:[%s2] sm:$0x1]
        %v545 = vlaneseq
        %v546 = vshrl.u32 %v545, 7
        %v547 = vsub.s32 0, %v546
        %v548 = vrot.slane %v543, %v547
        %v566 = vunpack.c.l.b16 %v527
        %v567 = vunpack.c.l.b16 %v528
        %v568 = vunpack.c.l.b16 %v529
        %v569 = vunpack.c.l.b16 %v530
        %v570 = vunpack.c.l.b16 %v531
        %v571 = vunpack.c.l.b16 %v532
        %v572 = vunpack.c.l.b16 %v533
        %v573 = vunpack.c.l.b16 %v534
        %v574 = vunpack.c.l.b16 %v535
        %v575 = vunpack.c.l.b16 %v536
        %v576 = vunpack.c.l.b16 %v537
        %v577 = vunpack.c.l.b16 %v538
        %v578 = vunpack.c.l.b16 %v539
        %v579 = vunpack.c.l.b16 %v540
        %v580 = vunpack.c.l.b16 %v541
        %v581 = vunpack.c.l.b16 %v542
        %v582 = vpack.c.b16 %v567, %v566
        %v583 = vpack.c.b16 %v569, %v568
        %v584 = vpack.c.b16 %v571, %v570
        %v585 = vpack.c.b16 %v573, %v572
        %v586 = vpack.c.b16 %v575, %v574
        %v587 = vpack.c.b16 %v577, %v576
        %v588 = vpack.c.b16 %v579, %v578
        %v589 = vpack.c.b16 %v581, %v580
        %598 = vmatprep.subr.bf16.mxu0 0
        %599 = vmatpush1.bf16.msra.mxu0 %v589
        %600 = vmatprep.subr.bf16.mxu0 0
        %601 = vmatpush1.bf16.msra.mxu0 %v588
        %602 = vmatprep.subr.bf16.mxu0 0
        %603 = vmatpush1.bf16.msra.mxu0 %v587
        %604 = vmatprep.subr.bf16.mxu0 0
        %605 = vmatpush1.bf16.msra.mxu0 %v586
        %606 = vmatprep.subr.bf16.mxu0 0
        %607 = vmatpush1.bf16.msra.mxu0 %v585
        %608 = vmatprep.subr.bf16.mxu0 0
        %609 = vmatpush1.bf16.msra.mxu0 %v584
        %610 = vmatprep.subr.bf16.mxu0 0
        %611 = vmatpush1.bf16.msra.mxu0 %v583
        %612 = vmatprep.subr.bf16.mxu0 0
        %613 = vmatpush1.bf16.msra.mxu0 %v582
        %614 = vmatprep.subr.bf16.mxu0 0
        %615 = vmatpush2.bf16.msra.mxu0 0
        %616 = vmatprep.subr.bf16.mxu0 0
        %617 = vmatpush2.bf16.msra.mxu0 0
        %618 = vmatprep.subr.bf16.mxu0 0
        %619 = vmatpush2.bf16.msra.mxu0 0
        %620 = vmatprep.subr.bf16.mxu0 0
        %621 = vmatpush2.bf16.msra.mxu0 0
        %622 = vmatprep.subr.bf16.mxu0 0
        %623 = vmatpush2.bf16.msra.mxu0 0
        %624 = vmatprep.subr.bf16.mxu0 0
        %625 = vmatpush2.bf16.msra.mxu0 0
        %626 = vmatprep.subr.bf16.mxu0 0
        %627 = vmatpush2.bf16.msra.mxu0 0
        %628 = vmatprep.subr.bf16.mxu0 0
        %629 = vmatpush2.bf16.msra.mxu0 0
        %630 = vmatprep.mubr.bf16.mxu0 0
        %631 = vmatmul.mubr.bf16.gmra.mxu0 %v511
        %v632 = vpop.f32.mrf.mxu0
        %v633 = vadd.f32 %v548, %v632
        %v634 = vpop.f32.mrf.mxu0
        %v635 = vpop.f32.mrf.mxu0
        %v636 = vadd.f32 %v548, %v635
        %v637 = vpop.f32.mrf.mxu0
        %638 = vmatprep.mubr.bf16.mxu0 0
        %639 = vmatmul.mubr.bf16.gmra.mxu0 %v512
        %v640 = vpop.f32.mrf.mxu0
        %v641 = vadd.f32 %v548, %v640
        %v642 = vpop.f32.mrf.mxu0
        %v643 = vpop.f32.mrf.mxu0
        %v644 = vadd.f32 %v548, %v643
        %v645 = vpop.f32.mrf.mxu0
        %646 = vmatprep.mubr.bf16.mxu0 0
        %647 = vmatmul.mubr.bf16.gmra.mxu0 %v513
        %v648 = vpop.f32.mrf.mxu0
        %v649 = vadd.f32 %v548, %v648
        %v650 = vpop.f32.mrf.mxu0
        %v651 = vpop.f32.mrf.mxu0
        %v652 = vadd.f32 %v548, %v651
        %v653 = vpop.f32.mrf.mxu0
        %654 = vmatprep.mubr.bf16.mxu0 0
        %655 = vmatmul.mubr.bf16.gmra.mxu0 %v514
        %v656 = vpop.f32.mrf.mxu0
        %v657 = vadd.f32 %v548, %v656
        %v658 = vpop.f32.mrf.mxu0
        %v659 = vpop.f32.mrf.mxu0
        %v660 = vadd.f32 %v548, %v659
        %v661 = vpop.f32.mrf.mxu0
        %662 = vmatprep.mubr.bf16.mxu0 0
        %663 = vmatmul.mubr.bf16.gmra.mxu0 %v515
        %v664 = vpop.f32.mrf.mxu0
        %v665 = vadd.f32 %v548, %v664
        %v666 = vpop.f32.mrf.mxu0
        %v667 = vpop.f32.mrf.mxu0
        %v668 = vadd.f32 %v548, %v667
        %v669 = vpop.f32.mrf.mxu0
        %670 = vmatprep.mubr.bf16.mxu0 0
        %671 = vmatmul.mubr.bf16.gmra.mxu0 %v516
        %v672 = vpop.f32.mrf.mxu0
        %v673 = vadd.f32 %v548, %v672
        %v674 = vpop.f32.mrf.mxu0
        %v675 = vpop.f32.mrf.mxu0
        %v676 = vadd.f32 %v548, %v675
        %v677 = vpop.f32.mrf.mxu0
        %678 = vmatprep.mubr.bf16.mxu0 0
        %679 = vmatmul.mubr.bf16.gmra.mxu0 %v517
        %v680 = vpop.f32.mrf.mxu0
        %v681 = vadd.f32 %v548, %v680
        %v682 = vpop.f32.mrf.mxu0
        %v683 = vpop.f32.mrf.mxu0
        %v684 = vadd.f32 %v548, %v683
        %v685 = vpop.f32.mrf.mxu0
        %686 = vmatprep.mubr.bf16.mxu0 0
        %687 = vmatmul.mubr.bf16.gmra.mxu0 %v518
        %v688 = vpop.f32.mrf.mxu0
        %v689 = vadd.f32 %v548, %v688
        %v690 = vpop.f32.mrf.mxu0
        %v691 = vpop.f32.mrf.mxu0
        %v692 = vadd.f32 %v548, %v691
        %v693 = vpop.f32.mrf.mxu0
        %694 = vmatprep.mubr.bf16.mxu0 0
        %695 = vmatmul.mubr.bf16.gmra.mxu0 %v519
        %v696 = vpop.f32.mrf.mxu0
        %v697 = vadd.f32 %v548, %v696
        %v698 = vpop.f32.mrf.mxu0
        %v699 = vpop.f32.mrf.mxu0
        %v700 = vadd.f32 %v548, %v699
        %v701 = vpop.f32.mrf.mxu0
        %702 = vmatprep.mubr.bf16.mxu0 0
        %703 = vmatmul.mubr.bf16.gmra.mxu0 %v520
        %v704 = vpop.f32.mrf.mxu0
        %v705 = vadd.f32 %v548, %v704
        %v706 = vpop.f32.mrf.mxu0
        %v707 = vpop.f32.mrf.mxu0
        %v708 = vadd.f32 %v548, %v707
        %v709 = vpop.f32.mrf.mxu0
        %710 = vmatprep.mubr.bf16.mxu0 0
        %711 = vmatmul.mubr.bf16.gmra.mxu0 %v521
        %v712 = vpop.f32.mrf.mxu0
        %v713 = vadd.f32 %v548, %v712
        %v714 = vpop.f32.mrf.mxu0
        %v715 = vpop.f32.mrf.mxu0
        %v716 = vadd.f32 %v548, %v715
        %v717 = vpop.f32.mrf.mxu0
        %718 = vmatprep.mubr.bf16.mxu0 0
        %719 = vmatmul.mubr.bf16.gmra.mxu0 %v522
        %v720 = vpop.f32.mrf.mxu0
        %v721 = vadd.f32 %v548, %v720
        %v722 = vpop.f32.mrf.mxu0
        %v723 = vpop.f32.mrf.mxu0
        %v724 = vadd.f32 %v548, %v723
        %v725 = vpop.f32.mrf.mxu0
        %726 = vmatprep.mubr.bf16.mxu0 0
        %727 = vmatmul.mubr.bf16.gmra.mxu0 %v523
        %v728 = vpop.f32.mrf.mxu0
        %v729 = vadd.f32 %v548, %v728
        %v730 = vpop.f32.mrf.mxu0
        %v731 = vpop.f32.mrf.mxu0
        %v732 = vadd.f32 %v548, %v731
        %v733 = vpop.f32.mrf.mxu0
        %734 = vmatprep.mubr.bf16.mxu0 0
        %735 = vmatmul.mubr.bf16.gmra.mxu0 %v524
        %v736 = vpop.f32.mrf.mxu0
        %v737 = vadd.f32 %v548, %v736
        %v738 = vpop.f32.mrf.mxu0
        %v739 = vpop.f32.mrf.mxu0
        %v740 = vadd.f32 %v548, %v739
        %v741 = vpop.f32.mrf.mxu0
        %742 = vmatprep.mubr.bf16.mxu0 0
        %743 = vmatmul.mubr.bf16.gmra.mxu0 %v525
        %v744 = vpop.f32.mrf.mxu0
        %v745 = vadd.f32 %v548, %v744
        %v746 = vpop.f32.mrf.mxu0
        %v747 = vpop.f32.mrf.mxu0
        %v748 = vadd.f32 %v548, %v747
        %v749 = vpop.f32.mrf.mxu0
        %750 = vmatprep.mubr.bf16.mxu0 0
        %751 = vmatmul.mubr.bf16.gmra.mxu0 %v526
        %v752 = vpop.f32.mrf.mxu0
        %v753 = vadd.f32 %v548, %v752
        %v754 = vpop.f32.mrf.mxu0
        %v755 = vpop.f32.mrf.mxu0
        %v756 = vadd.f32 %v548, %v755
        %v757 = vpop.f32.mrf.mxu0
        %758 = vdwg.mxu0
        %v759 = vadd.f32 %v633, 3.0
        %v760 = vadd.f32 %v636, 3.0
        %v761 = vadd.f32 %v641, 3.0
        %v762 = vadd.f32 %v644, 3.0
        %v763 = vadd.f32 %v649, 3.0
        %v764 = vadd.f32 %v652, 3.0
        %v765 = vadd.f32 %v657, 3.0
        %v766 = vadd.f32 %v660, 3.0
        %v767 = vadd.f32 %v665, 3.0
        %v768 = vadd.f32 %v668, 3.0
        %v769 = vadd.f32 %v673, 3.0
        %v770 = vadd.f32 %v676, 3.0
        %v771 = vadd.f32 %v681, 3.0
        %v772 = vadd.f32 %v684, 3.0
        %v773 = vadd.f32 %v689, 3.0
        %v774 = vadd.f32 %v692, 3.0
        %v775 = vadd.f32 %v697, 3.0
        %v776 = vadd.f32 %v700, 3.0
        %v777 = vadd.f32 %v705, 3.0
        %v778 = vadd.f32 %v708, 3.0
        %v779 = vadd.f32 %v713, 3.0
        %v780 = vadd.f32 %v716, 3.0
        %v781 = vadd.f32 %v721, 3.0
        %v782 = vadd.f32 %v724, 3.0
        %v783 = vadd.f32 %v729, 3.0
        %v784 = vadd.f32 %v732, 3.0
        %v785 = vadd.f32 %v737, 3.0
        %v786 = vadd.f32 %v740, 3.0
        %v787 = vadd.f32 %v745, 3.0
        %v788 = vadd.f32 %v748, 3.0
        %v789 = vadd.f32 %v753, 3.0
        %v790 = vadd.f32 %v756, 3.0
        %v791 = vmax.f32 %v759, 0.0
        %v792 = vmax.f32 %v760, 0.0
        %v793 = vmax.f32 %v761, 0.0
        %v794 = vmax.f32 %v762, 0.0
        %v795 = vmax.f32 %v763, 0.0
        %v796 = vmax.f32 %v764, 0.0
        %v797 = vmax.f32 %v765, 0.0
        %v798 = vmax.f32 %v766, 0.0
        %v799 = vmax.f32 %v767, 0.0
        %v800 = vmax.f32 %v768, 0.0
        %v801 = vmax.f32 %v769, 0.0
        %v802 = vmax.f32 %v770, 0.0
        %v803 = vmax.f32 %v771, 0.0
        %v804 = vmax.f32 %v772, 0.0
        %v805 = vmax.f32 %v773, 0.0
        %v806 = vmax.f32 %v774, 0.0
        %v807 = vmax.f32 %v775, 0.0
        %v808 = vmax.f32 %v776, 0.0
        %v809 = vmax.f32 %v777, 0.0
        %v810 = vmax.f32 %v778, 0.0
        %v811 = vmax.f32 %v779, 0.0
        %v812 = vmax.f32 %v780, 0.0
        %v813 = vmax.f32 %v781, 0.0
        %v814 = vmax.f32 %v782, 0.0
        %v815 = vmax.f32 %v783, 0.0
        %v816 = vmax.f32 %v784, 0.0
        %v817 = vmax.f32 %v785, 0.0
        %v818 = vmax.f32 %v786, 0.0
        %v819 = vmax.f32 %v787, 0.0
        %v820 = vmax.f32 %v788, 0.0
        %v821 = vmax.f32 %v789, 0.0
        %v822 = vmax.f32 %v790, 0.0
        %v823 = vmin.f32 %v791, 6.0
        %v824 = vmin.f32 %v792, 6.0
        %v825 = vmin.f32 %v793, 6.0
        %v826 = vmin.f32 %v794, 6.0
        %v827 = vmin.f32 %v795, 6.0
        %v828 = vmin.f32 %v796, 6.0
        %v829 = vmin.f32 %v797, 6.0
        %v830 = vmin.f32 %v798, 6.0
        %v831 = vmin.f32 %v799, 6.0
        %v832 = vmin.f32 %v800, 6.0
        %v833 = vmin.f32 %v801, 6.0
        %v834 = vmin.f32 %v802, 6.0
        %v835 = vmin.f32 %v803, 6.0
        %v836 = vmin.f32 %v804, 6.0
        %v837 = vmin.f32 %v805, 6.0
        %v838 = vmin.f32 %v806, 6.0
        %v839 = vmin.f32 %v807, 6.0
        %v840 = vmin.f32 %v808, 6.0
        %v841 = vmin.f32 %v809, 6.0
        %v842 = vmin.f32 %v810, 6.0
        %v843 = vmin.f32 %v811, 6.0
        %v844 = vmin.f32 %v812, 6.0
        %v845 = vmin.f32 %v813, 6.0
        %v846 = vmin.f32 %v814, 6.0
        %v847 = vmin.f32 %v815, 6.0
        %v848 = vmin.f32 %v816, 6.0
        %v849 = vmin.f32 %v817, 6.0
        %v850 = vmin.f32 %v818, 6.0
        %v851 = vmin.f32 %v819, 6.0
        %v852 = vmin.f32 %v820, 6.0
        %v853 = vmin.f32 %v821, 6.0
        %v854 = vmin.f32 %v822, 6.0
        %v855 = vmul.f32 %v823, 0.16666667
        %v856 = vmul.f32 %v824, 0.16666667
        %v857 = vmul.f32 %v825, 0.16666667
        %v858 = vmul.f32 %v826, 0.16666667
        %v859 = vmul.f32 %v827, 0.16666667
        %v860 = vmul.f32 %v828, 0.16666667
        %v861 = vmul.f32 %v829, 0.16666667
        %v862 = vmul.f32 %v830, 0.16666667
        %v863 = vmul.f32 %v831, 0.16666667
        %v864 = vmul.f32 %v832, 0.16666667
        %v865 = vmul.f32 %v833, 0.16666667
        %v866 = vmul.f32 %v834, 0.16666667
        %v867 = vmul.f32 %v835, 0.16666667
        %v868 = vmul.f32 %v836, 0.16666667
        %v869 = vmul.f32 %v837, 0.16666667
        %v870 = vmul.f32 %v838, 0.16666667
        %v871 = vmul.f32 %v839, 0.16666667
        %v872 = vmul.f32 %v840, 0.16666667
        %v873 = vmul.f32 %v841, 0.16666667
        %v874 = vmul.f32 %v842, 0.16666667
        %v875 = vmul.f32 %v843, 0.16666667
        %v876 = vmul.f32 %v844, 0.16666667
        %v877 = vmul.f32 %v845, 0.16666667
        %v878 = vmul.f32 %v846, 0.16666667
        %v879 = vmul.f32 %v847, 0.16666667
        %v880 = vmul.f32 %v848, 0.16666667
        %v881 = vmul.f32 %v849, 0.16666667
        %v882 = vmul.f32 %v850, 0.16666667
        %v883 = vmul.f32 %v851, 0.16666667
        %v884 = vmul.f32 %v852, 0.16666667
        %v885 = vmul.f32 %v853, 0.16666667
        %v886 = vmul.f32 %v854, 0.16666667
        %v887 = vmul.f32 %v633, %v855
        %v888 = vmul.f32 %v636, %v856
        %v889 = vmul.f32 %v641, %v857
        %v890 = vmul.f32 %v644, %v858
        %v891 = vmul.f32 %v649, %v859
        %v892 = vmul.f32 %v652, %v860
        %v893 = vmul.f32 %v657, %v861
        %v894 = vmul.f32 %v660, %v862
        %v895 = vmul.f32 %v665, %v863
        %v896 = vmul.f32 %v668, %v864
        %v897 = vmul.f32 %v673, %v865
        %v898 = vmul.f32 %v676, %v866
        %v899 = vmul.f32 %v681, %v867
        %v900 = vmul.f32 %v684, %v868
        %v901 = vmul.f32 %v689, %v869
        %v902 = vmul.f32 %v692, %v870
        %v903 = vmul.f32 %v697, %v871
        %v904 = vmul.f32 %v700, %v872
        %v905 = vmul.f32 %v705, %v873
        %v906 = vmul.f32 %v708, %v874
        %v907 = vmul.f32 %v713, %v875
        %v908 = vmul.f32 %v716, %v876
        %v909 = vmul.f32 %v721, %v877
        %v910 = vmul.f32 %v724, %v878
        %v911 = vmul.f32 %v729, %v879
        %v912 = vmul.f32 %v732, %v880
        %v913 = vmul.f32 %v737, %v881
        %v914 = vmul.f32 %v740, %v882
        %v915 = vmul.f32 %v745, %v883
        %v916 = vmul.f32 %v748, %v884
        %v917 = vmul.f32 %v753, %v885
        %v918 = vmul.f32 %v756, %v886
        %919 = vst [vmem:[#allocation2] sm:$0xff] 0.0
        %920 = vst [vmem:[#allocation2 + $0x8] sm:$0xff] 0.0
        %s921 = scalar_lea.vmem [#allocation2], 272
        %922 = vst [vmem:[%s921] sm:$0xff] 0.0
        %923 = vst [vmem:[%s921 + $0x8] sm:$0xff] 0.0
        %s924 = scalar_lea.vmem [#allocation2], 16
        %925 = vst [vmem:[%s924] sm:$0xff] %v887
        %926 = vst [vmem:[%s924 + $0x8] sm:$0xff] %v888
        %927 = vst [vmem:[%s924 + $0x10] sm:$0xff] %v889
        %928 = vst [vmem:[%s924 + $0x18] sm:$0xff] %v890
        %929 = vst [vmem:[%s924 + $0x20] sm:$0xff] %v891
        %930 = vst [vmem:[%s924 + $0x28] sm:$0xff] %v892
        %931 = vst [vmem:[%s924 + $0x30] sm:$0xff] %v893
        %932 = vst [vmem:[%s924 + $0x38] sm:$0xff] %v894
        %933 = vst [vmem:[%s924 + $0x40] sm:$0xff] %v895
        %934 = vst [vmem:[%s924 + $0x48] sm:$0xff] %v896
        %935 = vst [vmem:[%s924 + $0x50] sm:$0xff] %v897
        %936 = vst [vmem:[%s924 + $0x58] sm:$0xff] %v898
        %937 = vst [vmem:[%s924 + $0x60] sm:$0xff] %v899
        %938 = vst [vmem:[%s924 + $0x68] sm:$0xff] %v900
        %939 = vst [vmem:[%s924 + $0x70] sm:$0xff] %v901
        %940 = vst [vmem:[%s924 + $0x78] sm:$0xff] %v902
        %941 = vst [vmem:[%s924 + $0x80] sm:$0xff] %v903
        %942 = vst [vmem:[%s924 + $0x88] sm:$0xff] %v904
        %943 = vst [vmem:[%s924 + $0x90] sm:$0xff] %v905
        %944 = vst [vmem:[%s924 + $0x98] sm:$0xff] %v906
        %945 = vst [vmem:[%s924 + $0xa0] sm:$0xff] %v907
        %946 = vst [vmem:[%s924 + $0xa8] sm:$0xff] %v908
        %947 = vst [vmem:[%s924 + $0xb0] sm:$0xff] %v909
        %948 = vst [vmem:[%s924 + $0xb8] sm:$0xff] %v910
        %949 = vst [vmem:[%s924 + $0xc0] sm:$0xff] %v911
        %950 = vst [vmem:[%s924 + $0xc8] sm:$0xff] %v912
        %951 = vst [vmem:[%s924 + $0xd0] sm:$0xff] %v913
        %952 = vst [vmem:[%s924 + $0xd8] sm:$0xff] %v914
        %953 = vst [vmem:[%s924 + $0xe0] sm:$0xff] %v915
        %954 = vst [vmem:[%s924 + $0xe8] sm:$0xff] %v916
        %955 = vst [vmem:[%s924 + $0xf0] sm:$0xff] %v917
        %956 = vst [vmem:[%s924 + $0xf8] sm:$0xff] %v918
        %v957 = vld [vmem:[#allocation8] sm:$0xff]
        %v958 = vld [vmem:[#allocation8 + $0x8] sm:$0x1]
        %v959 = vlaneseq
        %v960 = vshrl.u32 %v959, 7
        %v961 = vadd.s32 %v960, 8
        %vm962 = vcmp.gt.s32.totalorder %v960, 0
        %vm963 = vcmp.gt.s32.totalorder %v961, 0
        %v964 = vsel %vm962, 1, 0
        %v965 = vsel %vm963, 1, 0
        %v966 = vcvt.s32.f32 %v964
        %v967 = vcvt.s32.f32 %v965
        %vm968 = vcmp.lt.s32.totalorder %v960, 15
        %vm969 = vcmp.lt.s32.totalorder %v961, 15
        %v970 = vsel %vm968, 1, 0
        %v971 = vsel %vm969, 1, 0
        %v972 = vcvt.s32.f32 %v970
        %v973 = vcvt.s32.f32 %v971
        %v974 = vld [vmem:[#allocation2] sm:$0xff]
        %v975 = vld [vmem:[#allocation2 + $0x8] sm:$0xff]
        %v976 = vld [vmem:[#allocation2 + $0x10] sm:$0xff]
        %v977 = vld [vmem:[#allocation2 + $0x18] sm:$0xff]
        %v978 = vld [vmem:[#allocation2 + $0x20] sm:$0xff]
        %v979 = vld [vmem:[#allocation2 + $0x28] sm:$0xff]
        %v980 = vld [vmem:[#allocation2 + $0x30] sm:$0xff]
        %v981 = vld [vmem:[#allocation2 + $0x38] sm:$0xff]
        %v982 = vld [vmem:[#allocation2 + $0x40] sm:$0xff]
        %v983 = vld [vmem:[#allocation2 + $0x48] sm:$0xff]
        %v984 = vld [vmem:[#allocation2 + $0x50] sm:$0xff]
        %v985 = vld [vmem:[#allocation2 + $0x58] sm:$0xff]
        %v986 = vld [vmem:[#allocation2 + $0x60] sm:$0xff]
        %v987 = vld [vmem:[#allocation2 + $0x68] sm:$0xff]
        %v988 = vld [vmem:[#allocation2 + $0x70] sm:$0xff]
        %v989 = vld [vmem:[#allocation2 + $0x78] sm:$0xff]
        %v990 = vld [vmem:[#allocation2 + $0x80] sm:$0xff]
        %v991 = vld [vmem:[#allocation2 + $0x88] sm:$0xff]
        %v992 = vld [vmem:[#allocation2 + $0x90] sm:$0xff]
        %v993 = vld [vmem:[#allocation2 + $0x98] sm:$0xff]
        %v994 = vld [vmem:[#allocation2 + $0xa0] sm:$0xff]
        %v995 = vld [vmem:[#allocation2 + $0xa8] sm:$0xff]
        %v996 = vld [vmem:[#allocation2 + $0xb0] sm:$0xff]
        %v997 = vld [vmem:[#allocation2 + $0xb8] sm:$0xff]
        %v998 = vld [vmem:[#allocation2 + $0xc0] sm:$0xff]
        %v999 = vld [vmem:[#allocation2 + $0xc8] sm:$0xff]
        %v1000 = vld [vmem:[#allocation2 + $0xd0] sm:$0xff]
        %v1001 = vld [vmem:[#allocation2 + $0xd8] sm:$0xff]
        %v1002 = vld [vmem:[#allocation2 + $0xe0] sm:$0xff]
        %v1003 = vld [vmem:[#allocation2 + $0xe8] sm:$0xff]
        %v1004 = vld [vmem:[#allocation2 + $0xf0] sm:$0xff]
        %v1005 = vld [vmem:[#allocation2 + $0xf8] sm:$0xff]
        %v1006 = vlaneseq
        %v1007 = vshrl.u32 %v1006, 7
        %v1008 = vsub.s32 1, %v1007
        %v1009 = vrot.slane %v957, %v1008
        %v1010 = vmul.f32 %v974, %v1009
        %v1011 = vmul.f32 %v975, %v1009
        %v1012 = vmul.f32 %v976, %v1009
        %v1013 = vmul.f32 %v977, %v1009
        %v1014 = vmul.f32 %v978, %v1009
        %v1015 = vmul.f32 %v979, %v1009
        %v1016 = vmul.f32 %v980, %v1009
        %v1017 = vmul.f32 %v981, %v1009
        %v1018 = vmul.f32 %v982, %v1009
        %v1019 = vmul.f32 %v983, %v1009
        %v1020 = vmul.f32 %v984, %v1009
        %v1021 = vmul.f32 %v985, %v1009
        %v1022 = vmul.f32 %v986, %v1009
        %v1023 = vmul.f32 %v987, %v1009
        %v1024 = vmul.f32 %v988, %v1009
        %v1025 = vmul.f32 %v989, %v1009
        %v1026 = vmul.f32 %v990, %v1009
        %v1027 = vmul.f32 %v991, %v1009
        %v1028 = vmul.f32 %v992, %v1009
        %v1029 = vmul.f32 %v993, %v1009
        %v1030 = vmul.f32 %v994, %v1009
        %v1031 = vmul.f32 %v995, %v1009
        %v1032 = vmul.f32 %v996, %v1009
        %v1033 = vmul.f32 %v997, %v1009
        %v1034 = vmul.f32 %v998, %v1009
        %v1035 = vmul.f32 %v999, %v1009
        %v1036 = vmul.f32 %v1000, %v1009
        %v1037 = vmul.f32 %v1001, %v1009
        %v1038 = vmul.f32 %v1002, %v1009
        %v1039 = vmul.f32 %v1003, %v1009
        %v1040 = vmul.f32 %v1004, %v1009
        %v1041 = vmul.f32 %v1005, %v1009
        %v1042 = vld [vmem:[%s924] sm:$0xff]
        %v1043 = vld [vmem:[%s924 + $0x8] sm:$0xff]
        %v1044 = vld [vmem:[%s924 + $0x10] sm:$0xff]
        %v1045 = vld [vmem:[%s924 + $0x18] sm:$0xff]
        %v1046 = vld [vmem:[%s924 + $0x20] sm:$0xff]
        %v1047 = vld [vmem:[%s924 + $0x28] sm:$0xff]
        %v1048 = vld [vmem:[%s924 + $0x30] sm:$0xff]
        %v1049 = vld [vmem:[%s924 + $0x38] sm:$0xff]
        %v1050 = vld [vmem:[%s924 + $0x40] sm:$0xff]
        %v1051 = vld [vmem:[%s924 + $0x48] sm:$0xff]
        %v1052 = vld [vmem:[%s924 + $0x50] sm:$0xff]
        %v1053 = vld [vmem:[%s924 + $0x58] sm:$0xff]
        %v1054 = vld [vmem:[%s924 + $0x60] sm:$0xff]
        %v1055 = vld [vmem:[%s924 + $0x68] sm:$0xff]
        %v1056 = vld [vmem:[%s924 + $0x70] sm:$0xff]
        %v1057 = vld [vmem:[%s924 + $0x78] sm:$0xff]
        %v1058 = vld [vmem:[%s924 + $0x80] sm:$0xff]
        %v1059 = vld [vmem:[%s924 + $0x88] sm:$0xff]
        %v1060 = vld [vmem:[%s924 + $0x90] sm:$0xff]
        %v1061 = vld [vmem:[%s924 + $0x98] sm:$0xff]
        %v1062 = vld [vmem:[%s924 + $0xa0] sm:$0xff]
        %v1063 = vld [vmem:[%s924 + $0xa8] sm:$0xff]
        %v1064 = vld [vmem:[%s924 + $0xb0] sm:$0xff]
        %v1065 = vld [vmem:[%s924 + $0xb8] sm:$0xff]
        %v1066 = vld [vmem:[%s924 + $0xc0] sm:$0xff]
        %v1067 = vld [vmem:[%s924 + $0xc8] sm:$0xff]
        %v1068 = vld [vmem:[%s924 + $0xd0] sm:$0xff]
        %v1069 = vld [vmem:[%s924 + $0xd8] sm:$0xff]
        %v1070 = vld [vmem:[%s924 + $0xe0] sm:$0xff]
        %v1071 = vld [vmem:[%s924 + $0xe8] sm:$0xff]
        %v1072 = vld [vmem:[%s924 + $0xf0] sm:$0xff]
        %v1073 = vld [vmem:[%s924 + $0xf8] sm:$0xff]
        %v1074 = vlaneseq
        %v1075 = vshrl.u32 %v1074, 7
        %v1076 = vsub.s32 4, %v1075
        %v1077 = vrot.slane %v957, %v1076
        %v1078 = vmul.f32 %v1042, %v1077
        %v1079 = vmul.f32 %v1043, %v1077
        %v1080 = vmul.f32 %v1044, %v1077
        %v1081 = vmul.f32 %v1045, %v1077
        %v1082 = vmul.f32 %v1046, %v1077
        %v1083 = vmul.f32 %v1047, %v1077
        %v1084 = vmul.f32 %v1048, %v1077
        %v1085 = vmul.f32 %v1049, %v1077
        %v1086 = vmul.f32 %v1050, %v1077
        %v1087 = vmul.f32 %v1051, %v1077
        %v1088 = vmul.f32 %v1052, %v1077
        %v1089 = vmul.f32 %v1053, %v1077
        %v1090 = vmul.f32 %v1054, %v1077
        %v1091 = vmul.f32 %v1055, %v1077
        %v1092 = vmul.f32 %v1056, %v1077
        %v1093 = vmul.f32 %v1057, %v1077
        %v1094 = vmul.f32 %v1058, %v1077
        %v1095 = vmul.f32 %v1059, %v1077
        %v1096 = vmul.f32 %v1060, %v1077
        %v1097 = vmul.f32 %v1061, %v1077
        %v1098 = vmul.f32 %v1062, %v1077
        %v1099 = vmul.f32 %v1063, %v1077
        %v1100 = vmul.f32 %v1064, %v1077
        %v1101 = vmul.f32 %v1065, %v1077
        %v1102 = vmul.f32 %v1066, %v1077
        %v1103 = vmul.f32 %v1067, %v1077
        %v1104 = vmul.f32 %v1068, %v1077
        %v1105 = vmul.f32 %v1069, %v1077
        %v1106 = vmul.f32 %v1070, %v1077
        %v1107 = vmul.f32 %v1071, %v1077
        %v1108 = vmul.f32 %v1072, %v1077
        %v1109 = vmul.f32 %v1073, %v1077
        %v1110 = vadd.f32 %v1010, %v1078
        %v1111 = vadd.f32 %v1011, %v1079
        %v1112 = vadd.f32 %v1012, %v1080
        %v1113 = vadd.f32 %v1013, %v1081
        %v1114 = vadd.f32 %v1014, %v1082
        %v1115 = vadd.f32 %v1015, %v1083
        %v1116 = vadd.f32 %v1016, %v1084
        %v1117 = vadd.f32 %v1017, %v1085
        %v1118 = vadd.f32 %v1018, %v1086
        %v1119 = vadd.f32 %v1019, %v1087
        %v1120 = vadd.f32 %v1020, %v1088
        %v1121 = vadd.f32 %v1021, %v1089
        %v1122 = vadd.f32 %v1022, %v1090
        %v1123 = vadd.f32 %v1023, %v1091
        %v1124 = vadd.f32 %v1024, %v1092
        %v1125 = vadd.f32 %v1025, %v1093
        %v1126 = vadd.f32 %v1026, %v1094
        %v1127 = vadd.f32 %v1027, %v1095
        %v1128 = vadd.f32 %v1028, %v1096
        %v1129 = vadd.f32 %v1029, %v1097
        %v1130 = vadd.f32 %v1030, %v1098
        %v1131 = vadd.f32 %v1031, %v1099
        %v1132 = vadd.f32 %v1032, %v1100
        %v1133 = vadd.f32 %v1033, %v1101
        %v1134 = vadd.f32 %v1034, %v1102
        %v1135 = vadd.f32 %v1035, %v1103
        %v1136 = vadd.f32 %v1036, %v1104
        %v1137 = vadd.f32 %v1037, %v1105
        %v1138 = vadd.f32 %v1038, %v1106
        %v1139 = vadd.f32 %v1039, %v1107
        %v1140 = vadd.f32 %v1040, %v1108
        %v1141 = vadd.f32 %v1041, %v1109
        %s1142 = scalar_lea.vmem [#allocation2], 32
        %v1143 = vld [vmem:[%s1142] sm:$0xff]
        %v1144 = vld [vmem:[%s1142 + $0x8] sm:$0xff]
        %v1145 = vld [vmem:[%s1142 + $0x10] sm:$0xff]
        %v1146 = vld [vmem:[%s1142 + $0x18] sm:$0xff]
        %v1147 = vld [vmem:[%s1142 + $0x20] sm:$0xff]
        %v1148 = vld [vmem:[%s1142 + $0x28] sm:$0xff]
        %v1149 = vld [vmem:[%s1142 + $0x30] sm:$0xff]
        %v1150 = vld [vmem:[%s1142 + $0x38] sm:$0xff]
        %v1151 = vld [vmem:[%s1142 + $0x40] sm:$0xff]
        %v1152 = vld [vmem:[%s1142 + $0x48] sm:$0xff]
        %v1153 = vld [vmem:[%s1142 + $0x50] sm:$0xff]
        %v1154 = vld [vmem:[%s1142 + $0x58] sm:$0xff]
        %v1155 = vld [vmem:[%s1142 + $0x60] sm:$0xff]
        %v1156 = vld [vmem:[%s1142 + $0x68] sm:$0xff]
        %v1157 = vld [vmem:[%s1142 + $0x70] sm:$0xff]
        %v1158 = vld [vmem:[%s1142 + $0x78] sm:$0xff]
        %v1159 = vld [vmem:[%s1142 + $0x80] sm:$0xff]
        %v1160 = vld [vmem:[%s1142 + $0x88] sm:$0xff]
        %v1161 = vld [vmem:[%s1142 + $0x90] sm:$0xff]
        %v1162 = vld [vmem:[%s1142 + $0x98] sm:$0xff]
        %v1163 = vld [vmem:[%s1142 + $0xa0] sm:$0xff]
        %v1164 = vld [vmem:[%s1142 + $0xa8] sm:$0xff]
        %v1165 = vld [vmem:[%s1142 + $0xb0] sm:$0xff]
        %v1166 = vld [vmem:[%s1142 + $0xb8] sm:$0xff]
        %v1167 = vld [vmem:[%s1142 + $0xc0] sm:$0xff]
        %v1168 = vld [vmem:[%s1142 + $0xc8] sm:$0xff]
        %v1169 = vld [vmem:[%s1142 + $0xd0] sm:$0xff]
        %v1170 = vld [vmem:[%s1142 + $0xd8] sm:$0xff]
        %v1171 = vld [vmem:[%s1142 + $0xe0] sm:$0xff]
        %v1172 = vld [vmem:[%s1142 + $0xe8] sm:$0xff]
        %v1173 = vld [vmem:[%s1142 + $0xf0] sm:$0xff]
        %v1174 = vld [vmem:[%s1142 + $0xf8] sm:$0xff]
        %v1175 = vlaneseq
        %v1176 = vshrl.u32 %v1175, 7
        %v1177 = vsub.s32 7, %v1176
        %v1178 = vrot.slane %v957, %v1177
        %v1179 = vmul.f32 %v1143, %v1178
        %v1180 = vmul.f32 %v1144, %v1178
        %v1181 = vmul.f32 %v1145, %v1178
        %v1182 = vmul.f32 %v1146, %v1178
        %v1183 = vmul.f32 %v1147, %v1178
        %v1184 = vmul.f32 %v1148, %v1178
        %v1185 = vmul.f32 %v1149, %v1178
        %v1186 = vmul.f32 %v1150, %v1178
        %v1187 = vmul.f32 %v1151, %v1178
        %v1188 = vmul.f32 %v1152, %v1178
        %v1189 = vmul.f32 %v1153, %v1178
        %v1190 = vmul.f32 %v1154, %v1178
        %v1191 = vmul.f32 %v1155, %v1178
        %v1192 = vmul.f32 %v1156, %v1178
        %v1193 = vmul.f32 %v1157, %v1178
        %v1194 = vmul.f32 %v1158, %v1178
        %v1195 = vmul.f32 %v1159, %v1178
        %v1196 = vmul.f32 %v1160, %v1178
        %v1197 = vmul.f32 %v1161, %v1178
        %v1198 = vmul.f32 %v1162, %v1178
        %v1199 = vmul.f32 %v1163, %v1178
        %v1200 = vmul.f32 %v1164, %v1178
        %v1201 = vmul.f32 %v1165, %v1178
        %v1202 = vmul.f32 %v1166, %v1178
        %v1203 = vmul.f32 %v1167, %v1178
        %v1204 = vmul.f32 %v1168, %v1178
        %v1205 = vmul.f32 %v1169, %v1178
        %v1206 = vmul.f32 %v1170, %v1178
        %v1207 = vmul.f32 %v1171, %v1178
        %v1208 = vmul.f32 %v1172, %v1178
        %v1209 = vmul.f32 %v1173, %v1178
        %v1210 = vmul.f32 %v1174, %v1178
        %v1211 = vadd.f32 %v1110, %v1179
        %v1212 = vadd.f32 %v1111, %v1180
        %v1213 = vadd.f32 %v1112, %v1181
        %v1214 = vadd.f32 %v1113, %v1182
        %v1215 = vadd.f32 %v1114, %v1183
        %v1216 = vadd.f32 %v1115, %v1184
        %v1217 = vadd.f32 %v1116, %v1185
        %v1218 = vadd.f32 %v1117, %v1186
        %v1219 = vadd.f32 %v1118, %v1187
        %v1220 = vadd.f32 %v1119, %v1188
        %v1221 = vadd.f32 %v1120, %v1189
        %v1222 = vadd.f32 %v1121, %v1190
        %v1223 = vadd.f32 %v1122, %v1191
        %v1224 = vadd.f32 %v1123, %v1192
        %v1225 = vadd.f32 %v1124, %v1193
        %v1226 = vadd.f32 %v1125, %v1194
        %v1227 = vadd.f32 %v1126, %v1195
        %v1228 = vadd.f32 %v1127, %v1196
        %v1229 = vadd.f32 %v1128, %v1197
        %v1230 = vadd.f32 %v1129, %v1198
        %v1231 = vadd.f32 %v1130, %v1199
        %v1232 = vadd.f32 %v1131, %v1200
        %v1233 = vadd.f32 %v1132, %v1201
        %v1234 = vadd.f32 %v1133, %v1202
        %v1235 = vadd.f32 %v1134, %v1203
        %v1236 = vadd.f32 %v1135, %v1204
        %v1237 = vadd.f32 %v1136, %v1205
        %v1238 = vadd.f32 %v1137, %v1206
        %v1239 = vadd.f32 %v1138, %v1207
        %v1240 = vadd.f32 %v1139, %v1208
        %v1241 = vadd.f32 %v1140, %v1209
        %v1242 = vadd.f32 %v1141, %v1210
        %v1243 = vld [vmem:[#allocation2] sm:$0xff]
        %v1244 = vld [vmem:[#allocation2 + $0x8] sm:$0xff]
        %v1245 = vld [vmem:[#allocation2 + $0x10] sm:$0xff]
        %v1246 = vld [vmem:[#allocation2 + $0x18] sm:$0xff]
        %v1247 = vld [vmem:[#allocation2 + $0x20] sm:$0xff]
        %v1248 = vld [vmem:[#allocation2 + $0x28] sm:$0xff]
        %v1249 = vld [vmem:[#allocation2 + $0x30] sm:$0xff]
        %v1250 = vld [vmem:[#allocation2 + $0x38] sm:$0xff]
        %v1251 = vld [vmem:[#allocation2 + $0x40] sm:$0xff]
        %v1252 = vld [vmem:[#allocation2 + $0x48] sm:$0xff]
        %v1253 = vld [vmem:[#allocation2 + $0x50] sm:$0xff]
        %v1254 = vld [vmem:[#allocation2 + $0x58] sm:$0xff]
        %v1255 = vld [vmem:[#allocation2 + $0x60] sm:$0xff]
        %v1256 = vld [vmem:[#allocation2 + $0x68] sm:$0xff]
        %v1257 = vld [vmem:[#allocation2 + $0x70] sm:$0xff]
        %v1258 = vld [vmem:[#allocation2 + $0x78] sm:$0xff]
        %v1259 = vld [vmem:[#allocation2 + $0x80] sm:$0xff]
        %v1260 = vld [vmem:[#allocation2 + $0x88] sm:$0xff]
        %v1261 = vld [vmem:[#allocation2 + $0x90] sm:$0xff]
        %v1262 = vld [vmem:[#allocation2 + $0x98] sm:$0xff]
        %v1263 = vld [vmem:[#allocation2 + $0xa0] sm:$0xff]
        %v1264 = vld [vmem:[#allocation2 + $0xa8] sm:$0xff]
        %v1265 = vld [vmem:[#allocation2 + $0xb0] sm:$0xff]
        %v1266 = vld [vmem:[#allocation2 + $0xb8] sm:$0xff]
        %v1267 = vld [vmem:[#allocation2 + $0xc0] sm:$0xff]
        %v1268 = vld [vmem:[#allocation2 + $0xc8] sm:$0xff]
        %v1269 = vld [vmem:[#allocation2 + $0xd0] sm:$0xff]
        %v1270 = vld [vmem:[#allocation2 + $0xd8] sm:$0xff]
        %v1271 = vld [vmem:[#allocation2 + $0xe0] sm:$0xff]
        %v1272 = vld [vmem:[#allocation2 + $0xe8] sm:$0xff]
        %v1273 = vld [vmem:[#allocation2 + $0xf0] sm:$0xff]
        %v1274 = vld [vmem:[#allocation2 + $0xf8] sm:$0xff]
        %v1275 = vld [vmem:[#allocation2 + $0x100] sm:$0xff]
        %v1276 = vld [vmem:[#allocation2 + $0x108] sm:$0xff]
        %v1277 = vld [vmem:[#allocation2 + $0x110] sm:$0xff]
        %v1278 = vld [vmem:[#allocation2 + $0x118] sm:$0xff]
        %v1279 = vrot.slane %v1243, 7
        %v1280 = vrot.slane %v1245, 7
        %v1281 = vrot.slane %v1247, 7
        %v1282 = vrot.slane %v1249, 7
        %v1283 = vrot.slane %v1251, 7
        %v1284 = vrot.slane %v1253, 7
        %v1285 = vrot.slane %v1255, 7
        %v1286 = vrot.slane %v1257, 7
        %v1287 = vrot.slane %v1259, 7
        %v1288 = vrot.slane %v1261, 7
        %v1289 = vrot.slane %v1263, 7
        %v1290 = vrot.slane %v1265, 7
        %v1291 = vrot.slane %v1267, 7
        %v1292 = vrot.slane %v1269, 7
        %v1293 = vrot.slane %v1271, 7
        %v1294 = vrot.slane %v1273, 7
        %v1295 = vrot.slane %v1275, 7
        %v1296 = vrot.slane %v1277, 7
        %v1297 = vrot.slane %v1244, 7
        %v1298 = vrot.slane %v1246, 7
        %v1299 = vrot.slane %v1248, 7
        %v1300 = vrot.slane %v1250, 7
        %v1301 = vrot.slane %v1252, 7
        %v1302 = vrot.slane %v1254, 7
        %v1303 = vrot.slane %v1256, 7
        %v1304 = vrot.slane %v1258, 7
        %v1305 = vrot.slane %v1260, 7
        %v1306 = vrot.slane %v1262, 7
        %v1307 = vrot.slane %v1264, 7
        %v1308 = vrot.slane %v1266, 7
        %v1309 = vrot.slane %v1268, 7
        %v1310 = vrot.slane %v1270, 7
        %v1311 = vrot.slane %v1272, 7
        %v1312 = vrot.slane %v1274, 7
        %v1313 = vrot.slane %v1276, 7
        %v1314 = vrot.slane %v1278, 7
        %vm1315 = vcmp.lt.s32.totalorder %v960, 1
        %v1316 = vsel %vm1315, %v1279, %v1297
        %v1317 = vsel %vm1315, %v1280, %v1298
        %v1318 = vsel %vm1315, %v1281, %v1299
        %v1319 = vsel %vm1315, %v1282, %v1300
        %v1320 = vsel %vm1315, %v1283, %v1301
        %v1321 = vsel %vm1315, %v1284, %v1302
        %v1322 = vsel %vm1315, %v1285, %v1303
        %v1323 = vsel %vm1315, %v1286, %v1304
        %v1324 = vsel %vm1315, %v1287, %v1305
        %v1325 = vsel %vm1315, %v1288, %v1306
        %v1326 = vsel %vm1315, %v1289, %v1307
        %v1327 = vsel %vm1315, %v1290, %v1308
        %v1328 = vsel %vm1315, %v1291, %v1309
        %v1329 = vsel %vm1315, %v1292, %v1310
        %v1330 = vsel %vm1315, %v1293, %v1311
        %v1331 = vsel %vm1315, %v1294, %v1312
        %v1332 = vsel %vm1315, %v1295, %v1313
        %v1333 = vsel %vm1315, %v1296, %v1314
        %v1334 = vsel %vm1315, %v1297, %v1279
        %v1335 = vsel %vm1315, %v1298, %v1280
        %v1336 = vsel %vm1315, %v1299, %v1281
        %v1337 = vsel %vm1315, %v1300, %v1282
        %v1338 = vsel %vm1315, %v1301, %v1283
        %v1339 = vsel %vm1315, %v1302, %v1284
        %v1340 = vsel %vm1315, %v1303, %v1285
        %v1341 = vsel %vm1315, %v1304, %v1286
        %v1342 = vsel %vm1315, %v1305, %v1287
        %v1343 = vsel %vm1315, %v1306, %v1288
        %v1344 = vsel %vm1315, %v1307, %v1289
        %v1345 = vsel %vm1315, %v1308, %v1290
        %v1346 = vsel %vm1315, %v1309, %v1291
        %v1347 = vsel %vm1315, %v1310, %v1292
        %v1348 = vsel %vm1315, %v1311, %v1293
        %v1349 = vsel %vm1315, %v1312, %v1294
        %v1350 = vsel %vm1315, %v1313, %v1295
        %v1351 = vsel %vm1315, %v1314, %v1296
        %v1352 = vmul.f32 %v1334, %v966
        %v1353 = vmul.f32 %v1316, %v967
        %v1354 = vmul.f32 %v1335, %v966
        %v1355 = vmul.f32 %v1317, %v967
        %v1356 = vmul.f32 %v1336, %v966
        %v1357 = vmul.f32 %v1318, %v967
        %v1358 = vmul.f32 %v1337, %v966
        %v1359 = vmul.f32 %v1319, %v967
        %v1360 = vmul.f32 %v1338, %v966
        %v1361 = vmul.f32 %v1320, %v967
        %v1362 = vmul.f32 %v1339, %v966
        %v1363 = vmul.f32 %v1321, %v967
        %v1364 = vmul.f32 %v1340, %v966
        %v1365 = vmul.f32 %v1322, %v967
        %v1366 = vmul.f32 %v1341, %v966
        %v1367 = vmul.f32 %v1323, %v967
        %v1368 = vmul.f32 %v1342, %v966
        %v1369 = vmul.f32 %v1324, %v967
        %v1370 = vmul.f32 %v1343, %v966
        %v1371 = vmul.f32 %v1325, %v967
        %v1372 = vmul.f32 %v1344, %v966
        %v1373 = vmul.f32 %v1326, %v967
        %v1374 = vmul.f32 %v1345, %v966
        %v1375 = vmul.f32 %v1327, %v967
        %v1376 = vmul.f32 %v1346, %v966
        %v1377 = vmul.f32 %v1328, %v967
        %v1378 = vmul.f32 %v1347, %v966
        %v1379 = vmul.f32 %v1329, %v967
        %v1380 = vmul.f32 %v1348, %v966
        %v1381 = vmul.f32 %v1330, %v967
        %v1382 = vmul.f32 %v1349, %v966
        %v1383 = vmul.f32 %v1331, %v967
        %v1384 = vmul.f32 %v1350, %v966
        %v1385 = vmul.f32 %v1332, %v967
        %v1386 = vmul.f32 %v1351, %v966
        %v1387 = vmul.f32 %v1333, %v967
        %v1388 = vlaneseq
        %v1389 = vshrl.u32 %v1388, 7
        %v1390 = vsub.s32 0, %v1389
        %v1391 = vrot.slane %v957, %v1390
        %v1392 = vmul.f32 %v1352, %v1391
        %v1393 = vmul.f32 %v1353, %v1391
        %v1394 = vmul.f32 %v1354, %v1391
        %v1395 = vmul.f32 %v1355, %v1391
        %v1396 = vmul.f32 %v1356, %v1391
        %v1397 = vmul.f32 %v1357, %v1391
        %v1398 = vmul.f32 %v1358, %v1391
        %v1399 = vmul.f32 %v1359, %v1391
        %v1400 = vmul.f32 %v1360, %v1391
        %v1401 = vmul.f32 %v1361, %v1391
        %v1402 = vmul.f32 %v1362, %v1391
        %v1403 = vmul.f32 %v1363, %v1391
        %v1404 = vmul.f32 %v1364, %v1391
        %v1405 = vmul.f32 %v1365, %v1391
        %v1406 = vmul.f32 %v1366, %v1391
        %v1407 = vmul.f32 %v1367, %v1391
        %v1408 = vmul.f32 %v1368, %v1391
        %v1409 = vmul.f32 %v1369, %v1391
        %v1410 = vmul.f32 %v1370, %v1391
        %v1411 = vmul.f32 %v1371, %v1391
        %v1412 = vmul.f32 %v1372, %v1391
        %v1413 = vmul.f32 %v1373, %v1391
        %v1414 = vmul.f32 %v1374, %v1391
        %v1415 = vmul.f32 %v1375, %v1391
        %v1416 = vmul.f32 %v1376, %v1391
        %v1417 = vmul.f32 %v1377, %v1391
        %v1418 = vmul.f32 %v1378, %v1391
        %v1419 = vmul.f32 %v1379, %v1391
        %v1420 = vmul.f32 %v1380, %v1391
        %v1421 = vmul.f32 %v1381, %v1391
        %v1422 = vmul.f32 %v1382, %v1391
        %v1423 = vmul.f32 %v1383, %v1391
        %v1424 = vadd.f32 %v1211, %v1392
        %v1425 = vadd.f32 %v1212, %v1393
        %v1426 = vadd.f32 %v1213, %v1394
        %v1427 = vadd.f32 %v1214, %v1395
        %v1428 = vadd.f32 %v1215, %v1396
        %v1429 = vadd.f32 %v1216, %v1397
        %v1430 = vadd.f32 %v1217, %v1398
        %v1431 = vadd.f32 %v1218, %v1399
        %v1432 = vadd.f32 %v1219, %v1400
        %v1433 = vadd.f32 %v1220, %v1401
        %v1434 = vadd.f32 %v1221, %v1402
        %v1435 = vadd.f32 %v1222, %v1403
        %v1436 = vadd.f32 %v1223, %v1404
        %v1437 = vadd.f32 %v1224, %v1405
        %v1438 = vadd.f32 %v1225, %v1406
        %v1439 = vadd.f32 %v1226, %v1407
        %v1440 = vadd.f32 %v1227, %v1408
        %v1441 = vadd.f32 %v1228, %v1409
        %v1442 = vadd.f32 %v1229, %v1410
        %v1443 = vadd.f32 %v1230, %v1411
        %v1444 = vadd.f32 %v1231, %v1412
        %v1445 = vadd.f32 %v1232, %v1413
        %v1446 = vadd.f32 %v1233, %v1414
        %v1447 = vadd.f32 %v1234, %v1415
        %v1448 = vadd.f32 %v1235, %v1416
        %v1449 = vadd.f32 %v1236, %v1417
        %v1450 = vadd.f32 %v1237, %v1418
        %v1451 = vadd.f32 %v1238, %v1419
        %v1452 = vadd.f32 %v1239, %v1420
        %v1453 = vadd.f32 %v1240, %v1421
        %v1454 = vadd.f32 %v1241, %v1422
        %v1455 = vadd.f32 %v1242, %v1423
        %v1456 = vlaneseq
        %v1457 = vshrl.u32 %v1456, 7
        %v1458 = vsub.s32 3, %v1457
        %v1459 = vrot.slane %v957, %v1458
        %v1460 = vmul.f32 %v1354, %v1459
        %v1461 = vmul.f32 %v1355, %v1459
        %v1462 = vmul.f32 %v1356, %v1459
        %v1463 = vmul.f32 %v1357, %v1459
        %v1464 = vmul.f32 %v1358, %v1459
        %v1465 = vmul.f32 %v1359, %v1459
        %v1466 = vmul.f32 %v1360, %v1459
        %v1467 = vmul.f32 %v1361, %v1459
        %v1468 = vmul.f32 %v1362, %v1459
        %v1469 = vmul.f32 %v1363, %v1459
        %v1470 = vmul.f32 %v1364, %v1459
        %v1471 = vmul.f32 %v1365, %v1459
        %v1472 = vmul.f32 %v1366, %v1459
        %v1473 = vmul.f32 %v1367, %v1459
        %v1474 = vmul.f32 %v1368, %v1459
        %v1475 = vmul.f32 %v1369, %v1459
        %v1476 = vmul.f32 %v1370, %v1459
        %v1477 = vmul.f32 %v1371, %v1459
        %v1478 = vmul.f32 %v1372, %v1459
        %v1479 = vmul.f32 %v1373, %v1459
        %v1480 = vmul.f32 %v1374, %v1459
        %v1481 = vmul.f32 %v1375, %v1459
        %v1482 = vmul.f32 %v1376, %v1459
        %v1483 = vmul.f32 %v1377, %v1459
        %v1484 = vmul.f32 %v1378, %v1459
        %v1485 = vmul.f32 %v1379, %v1459
        %v1486 = vmul.f32 %v1380, %v1459
        %v1487 = vmul.f32 %v1381, %v1459
        %v1488 = vmul.f32 %v1382, %v1459
        %v1489 = vmul.f32 %v1383, %v1459
        %v1490 = vmul.f32 %v1384, %v1459
        %v1491 = vmul.f32 %v1385, %v1459
        %v1492 = vadd.f32 %v1424, %v1460
        %v1493 = vadd.f32 %v1425, %v1461
        %v1494 = vadd.f32 %v1426, %v1462
        %v1495 = vadd.f32 %v1427, %v1463
        %v1496 = vadd.f32 %v1428, %v1464
        %v1497 = vadd.f32 %v1429, %v1465
        %v1498 = vadd.f32 %v1430, %v1466
        %v1499 = vadd.f32 %v1431, %v1467
        %v1500 = vadd.f32 %v1432, %v1468
        %v1501 = vadd.f32 %v1433, %v1469
        %v1502 = vadd.f32 %v1434, %v1470
        %v1503 = vadd.f32 %v1435, %v1471
        %v1504 = vadd.f32 %v1436, %v1472
        %v1505 = vadd.f32 %v1437, %v1473
        %v1506 = vadd.f32 %v1438, %v1474
        %v1507 = vadd.f32 %v1439, %v1475
        %v1508 = vadd.f32 %v1440, %v1476
        %v1509 = vadd.f32 %v1441, %v1477
        %v1510 = vadd.f32 %v1442, %v1478
        %v1511 = vadd.f32 %v1443, %v1479
        %v1512 = vadd.f32 %v1444, %v1480
        %v1513 = vadd.f32 %v1445, %v1481
        %v1514 = vadd.f32 %v1446, %v1482
        %v1515 = vadd.f32 %v1447, %v1483
        %v1516 = vadd.f32 %v1448, %v1484
        %v1517 = vadd.f32 %v1449, %v1485
        %v1518 = vadd.f32 %v1450, %v1486
        %v1519 = vadd.f32 %v1451, %v1487
        %v1520 = vadd.f32 %v1452, %v1488
        %v1521 = vadd.f32 %v1453, %v1489
        %v1522 = vadd.f32 %v1454, %v1490
        %v1523 = vadd.f32 %v1455, %v1491
        %v1524 = vlaneseq
        %v1525 = vshrl.u32 %v1524, 7
        %v1526 = vsub.s32 6, %v1525
        %v1527 = vrot.slane %v957, %v1526
        %v1528 = vmul.f32 %v1356, %v1527
        %v1529 = vmul.f32 %v1357, %v1527
        %v1530 = vmul.f32 %v1358, %v1527
        %v1531 = vmul.f32 %v1359, %v1527
        %v1532 = vmul.f32 %v1360, %v1527
        %v1533 = vmul.f32 %v1361, %v1527
        %v1534 = vmul.f32 %v1362, %v1527
        %v1535 = vmul.f32 %v1363, %v1527
        %v1536 = vmul.f32 %v1364, %v1527
        %v1537 = vmul.f32 %v1365, %v1527
        %v1538 = vmul.f32 %v1366, %v1527
        %v1539 = vmul.f32 %v1367, %v1527
        %v1540 = vmul.f32 %v1368, %v1527
        %v1541 = vmul.f32 %v1369, %v1527
        %v1542 = vmul.f32 %v1370, %v1527
        %v1543 = vmul.f32 %v1371, %v1527
        %v1544 = vmul.f32 %v1372, %v1527
        %v1545 = vmul.f32 %v1373, %v1527
        %v1546 = vmul.f32 %v1374, %v1527
        %v1547 = vmul.f32 %v1375, %v1527
        %v1548 = vmul.f32 %v1376, %v1527
        %v1549 = vmul.f32 %v1377, %v1527
        %v1550 = vmul.f32 %v1378, %v1527
        %v1551 = vmul.f32 %v1379, %v1527
        %v1552 = vmul.f32 %v1380, %v1527
        %v1553 = vmul.f32 %v1381, %v1527
        %v1554 = vmul.f32 %v1382, %v1527
        %v1555 = vmul.f32 %v1383, %v1527
        %v1556 = vmul.f32 %v1384, %v1527
        %v1557 = vmul.f32 %v1385, %v1527
        %v1558 = vmul.f32 %v1386, %v1527
        %v1559 = vmul.f32 %v1387, %v1527
        %v1560 = vadd.f32 %v1492, %v1528
        %v1561 = vadd.f32 %v1493, %v1529
        %v1562 = vadd.f32 %v1494, %v1530
        %v1563 = vadd.f32 %v1495, %v1531
        %v1564 = vadd.f32 %v1496, %v1532
        %v1565 = vadd.f32 %v1497, %v1533
        %v1566 = vadd.f32 %v1498, %v1534
        %v1567 = vadd.f32 %v1499, %v1535
        %v1568 = vadd.f32 %v1500, %v1536
        %v1569 = vadd.f32 %v1501, %v1537
        %v1570 = vadd.f32 %v1502, %v1538
        %v1571 = vadd.f32 %v1503, %v1539
        %v1572 = vadd.f32 %v1504, %v1540
        %v1573 = vadd.f32 %v1505, %v1541
        %v1574 = vadd.f32 %v1506, %v1542
        %v1575 = vadd.f32 %v1507, %v1543
        %v1576 = vadd.f32 %v1508, %v1544
        %v1577 = vadd.f32 %v1509, %v1545
        %v1578 = vadd.f32 %v1510, %v1546
        %v1579 = vadd.f32 %v1511, %v1547
        %v1580 = vadd.f32 %v1512, %v1548
        %v1581 = vadd.f32 %v1513, %v1549
        %v1582 = vadd.f32 %v1514, %v1550
        %v1583 = vadd.f32 %v1515, %v1551
        %v1584 = vadd.f32 %v1516, %v1552
        %v1585 = vadd.f32 %v1517, %v1553
        %v1586 = vadd.f32 %v1518, %v1554
        %v1587 = vadd.f32 %v1519, %v1555
        %v1588 = vadd.f32 %v1520, %v1556
        %v1589 = vadd.f32 %v1521, %v1557
        %v1590 = vadd.f32 %v1522, %v1558
        %v1591 = vadd.f32 %v1523, %v1559
        %v1592 = vrot.slane %v1243, 1
        %v1593 = vrot.slane %v1245, 1
        %v1594 = vrot.slane %v1247, 1
        %v1595 = vrot.slane %v1249, 1
        %v1596 = vrot.slane %v1251, 1
        %v1597 = vrot.slane %v1253, 1
        %v1598 = vrot.slane %v1255, 1
        %v1599 = vrot.slane %v1257, 1
        %v1600 = vrot.slane %v1259, 1
        %v1601 = vrot.slane %v1261, 1
        %v1602 = vrot.slane %v1263, 1
        %v1603 = vrot.slane %v1265, 1
        %v1604 = vrot.slane %v1267, 1
        %v1605 = vrot.slane %v1269, 1
        %v1606 = vrot.slane %v1271, 1
        %v1607 = vrot.slane %v1273, 1
        %v1608 = vrot.slane %v1275, 1
        %v1609 = vrot.slane %v1277, 1
        %v1610 = vrot.slane %v1244, 1
        %v1611 = vrot.slane %v1246, 1
        %v1612 = vrot.slane %v1248, 1
        %v1613 = vrot.slane %v1250, 1
        %v1614 = vrot.slane %v1252, 1
        %v1615 = vrot.slane %v1254, 1
        %v1616 = vrot.slane %v1256, 1
        %v1617 = vrot.slane %v1258, 1
        %v1618 = vrot.slane %v1260, 1
        %v1619 = vrot.slane %v1262, 1
        %v1620 = vrot.slane %v1264, 1
        %v1621 = vrot.slane %v1266, 1
        %v1622 = vrot.slane %v1268, 1
        %v1623 = vrot.slane %v1270, 1
        %v1624 = vrot.slane %v1272, 1
        %v1625 = vrot.slane %v1274, 1
        %v1626 = vrot.slane %v1276, 1
        %v1627 = vrot.slane %v1278, 1
        %vm1628 = vcmp.lt.s32.totalorder %v960, 7
        %v1629 = vsel %vm1628, %v1592, %v1610
        %v1630 = vsel %vm1628, %v1593, %v1611
        %v1631 = vsel %vm1628, %v1594, %v1612
        %v1632 = vsel %vm1628, %v1595, %v1613
        %v1633 = vsel %vm1628, %v1596, %v1614
        %v1634 = vsel %vm1628, %v1597, %v1615
        %v1635 = vsel %vm1628, %v1598, %v1616
        %v1636 = vsel %vm1628, %v1599, %v1617
        %v1637 = vsel %vm1628, %v1600, %v1618
        %v1638 = vsel %vm1628, %v1601, %v1619
        %v1639 = vsel %vm1628, %v1602, %v1620
        %v1640 = vsel %vm1628, %v1603, %v1621
        %v1641 = vsel %vm1628, %v1604, %v1622
        %v1642 = vsel %vm1628, %v1605, %v1623
        %v1643 = vsel %vm1628, %v1606, %v1624
        %v1644 = vsel %vm1628, %v1607, %v1625
        %v1645 = vsel %vm1628, %v1608, %v1626
        %v1646 = vsel %vm1628, %v1609, %v1627
        %v1647 = vsel %vm1628, %v1610, %v1592
        %v1648 = vsel %vm1628, %v1611, %v1593
        %v1649 = vsel %vm1628, %v1612, %v1594
        %v1650 = vsel %vm1628, %v1613, %v1595
        %v1651 = vsel %vm1628, %v1614, %v1596
        %v1652 = vsel %vm1628, %v1615, %v1597
        %v1653 = vsel %vm1628, %v1616, %v1598
        %v1654 = vsel %vm1628, %v1617, %v1599
        %v1655 = vsel %vm1628, %v1618, %v1600
        %v1656 = vsel %vm1628, %v1619, %v1601
        %v1657 = vsel %vm1628, %v1620, %v1602
        %v1658 = vsel %vm1628, %v1621, %v1603
        %v1659 = vsel %vm1628, %v1622, %v1604
        %v1660 = vsel %vm1628, %v1623, %v1605
        %v1661 = vsel %vm1628, %v1624, %v1606
        %v1662 = vsel %vm1628, %v1625, %v1607
        %v1663 = vsel %vm1628, %v1626, %v1608
        %v1664 = vsel %vm1628, %v1627, %v1609
        %v1665 = vmul.f32 %v1629, %v972
        %v1666 = vmul.f32 %v1647, %v973
        %v1667 = vmul.f32 %v1630, %v972
        %v1668 = vmul.f32 %v1648, %v973
        %v1669 = vmul.f32 %v1631, %v972
        %v1670 = vmul.f32 %v1649, %v973
        %v1671 = vmul.f32 %v1632, %v972
        %v1672 = vmul.f32 %v1650, %v973
        %v1673 = vmul.f32 %v1633, %v972
        %v1674 = vmul.f32 %v1651, %v973
        %v1675 = vmul.f32 %v1634, %v972
        %v1676 = vmul.f32 %v1652, %v973
        %v1677 = vmul.f32 %v1635, %v972
        %v1678 = vmul.f32 %v1653, %v973
        %v1679 = vmul.f32 %v1636, %v972
        %v1680 = vmul.f32 %v1654, %v973
        %v1681 = vmul.f32 %v1637, %v972
        %v1682 = vmul.f32 %v1655, %v973
        %v1683 = vmul.f32 %v1638, %v972
        %v1684 = vmul.f32 %v1656, %v973
        %v1685 = vmul.f32 %v1639, %v972
        %v1686 = vmul.f32 %v1657, %v973
        %v1687 = vmul.f32 %v1640, %v972
        %v1688 = vmul.f32 %v1658, %v973
        %v1689 = vmul.f32 %v1641, %v972
        %v1690 = vmul.f32 %v1659, %v973
        %v1691 = vmul.f32 %v1642, %v972
        %v1692 = vmul.f32 %v1660, %v973
        %v1693 = vmul.f32 %v1643, %v972
        %v1694 = vmul.f32 %v1661, %v973
        %v1695 = vmul.f32 %v1644, %v972
        %v1696 = vmul.f32 %v1662, %v973
        %v1697 = vmul.f32 %v1645, %v972
        %v1698 = vmul.f32 %v1663, %v973
        %v1699 = vmul.f32 %v1646, %v972
        %v1700 = vmul.f32 %v1664, %v973
        %v1701 = vlaneseq
        %v1702 = vshrl.u32 %v1701, 7
        %v1703 = vsub.s32 2, %v1702
        %v1704 = vrot.slane %v957, %v1703
        %v1705 = vmul.f32 %v1665, %v1704
        %v1706 = vmul.f32 %v1666, %v1704
        %v1707 = vmul.f32 %v1667, %v1704
        %v1708 = vmul.f32 %v1668, %v1704
        %v1709 = vmul.f32 %v1669, %v1704
        %v1710 = vmul.f32 %v1670, %v1704
        %v1711 = vmul.f32 %v1671, %v1704
        %v1712 = vmul.f32 %v1672, %v1704
        %v1713 = vmul.f32 %v1673, %v1704
        %v1714 = vmul.f32 %v1674, %v1704
        %v1715 = vmul.f32 %v1675, %v1704
        %v1716 = vmul.f32 %v1676, %v1704
        %v1717 = vmul.f32 %v1677, %v1704
        %v1718 = vmul.f32 %v1678, %v1704
        %v1719 = vmul.f32 %v1679, %v1704
        %v1720 = vmul.f32 %v1680, %v1704
        %v1721 = vmul.f32 %v1681, %v1704
        %v1722 = vmul.f32 %v1682, %v1704
        %v1723 = vmul.f32 %v1683, %v1704
        %v1724 = vmul.f32 %v1684, %v1704
        %v1725 = vmul.f32 %v1685, %v1704
        %v1726 = vmul.f32 %v1686, %v1704
        %v1727 = vmul.f32 %v1687, %v1704
        %v1728 = vmul.f32 %v1688, %v1704
        %v1729 = vmul.f32 %v1689, %v1704
        %v1730 = vmul.f32 %v1690, %v1704
        %v1731 = vmul.f32 %v1691, %v1704
        %v1732 = vmul.f32 %v1692, %v1704
        %v1733 = vmul.f32 %v1693, %v1704
        %v1734 = vmul.f32 %v1694, %v1704
        %v1735 = vmul.f32 %v1695, %v1704
        %v1736 = vmul.f32 %v1696, %v1704
        %v1737 = vadd.f32 %v1560, %v1705
        %v1738 = vadd.f32 %v1561, %v1706
        %v1739 = vadd.f32 %v1562, %v1707
        %v1740 = vadd.f32 %v1563, %v1708
        %v1741 = vadd.f32 %v1564, %v1709
        %v1742 = vadd.f32 %v1565, %v1710
        %v1743 = vadd.f32 %v1566, %v1711
        %v1744 = vadd.f32 %v1567, %v1712
        %v1745 = vadd.f32 %v1568, %v1713
        %v1746 = vadd.f32 %v1569, %v1714
        %v1747 = vadd.f32 %v1570, %v1715
        %v1748 = vadd.f32 %v1571, %v1716
        %v1749 = vadd.f32 %v1572, %v1717
        %v1750 = vadd.f32 %v1573, %v1718
        %v1751 = vadd.f32 %v1574, %v1719
        %v1752 = vadd.f32 %v1575, %v1720
        %v1753 = vadd.f32 %v1576, %v1721
        %v1754 = vadd.f32 %v1577, %v1722
        %v1755 = vadd.f32 %v1578, %v1723
        %v1756 = vadd.f32 %v1579, %v1724
        %v1757 = vadd.f32 %v1580, %v1725
        %v1758 = vadd.f32 %v1581, %v1726
        %v1759 = vadd.f32 %v1582, %v1727
        %v1760 = vadd.f32 %v1583, %v1728
        %v1761 = vadd.f32 %v1584, %v1729
        %v1762 = vadd.f32 %v1585, %v1730
        %v1763 = vadd.f32 %v1586, %v1731
        %v1764 = vadd.f32 %v1587, %v1732
        %v1765 = vadd.f32 %v1588, %v1733
        %v1766 = vadd.f32 %v1589, %v1734
        %v1767 = vadd.f32 %v1590, %v1735
        %v1768 = vadd.f32 %v1591, %v1736
        %v1769 = vlaneseq
        %v1770 = vshrl.u32 %v1769, 7
        %v1771 = vsub.s32 5, %v1770
        %v1772 = vrot.slane %v957, %v1771
        %v1773 = vmul.f32 %v1667, %v1772
        %v1774 = vmul.f32 %v1668, %v1772
        %v1775 = vmul.f32 %v1669, %v1772
        %v1776 = vmul.f32 %v1670, %v1772
        %v1777 = vmul.f32 %v1671, %v1772
        %v1778 = vmul.f32 %v1672, %v1772
        %v1779 = vmul.f32 %v1673, %v1772
        %v1780 = vmul.f32 %v1674, %v1772
        %v1781 = vmul.f32 %v1675, %v1772
        %v1782 = vmul.f32 %v1676, %v1772
        %v1783 = vmul.f32 %v1677, %v1772
        %v1784 = vmul.f32 %v1678, %v1772
        %v1785 = vmul.f32 %v1679, %v1772
        %v1786 = vmul.f32 %v1680, %v1772
        %v1787 = vmul.f32 %v1681, %v1772
        %v1788 = vmul.f32 %v1682, %v1772
        %v1789 = vmul.f32 %v1683, %v1772
        %v1790 = vmul.f32 %v1684, %v1772
        %v1791 = vmul.f32 %v1685, %v1772
        %v1792 = vmul.f32 %v1686, %v1772
        %v1793 = vmul.f32 %v1687, %v1772
        %v1794 = vmul.f32 %v1688, %v1772
        %v1795 = vmul.f32 %v1689, %v1772
        %v1796 = vmul.f32 %v1690, %v1772
        %v1797 = vmul.f32 %v1691, %v1772
        %v1798 = vmul.f32 %v1692, %v1772
        %v1799 = vmul.f32 %v1693, %v1772
        %v1800 = vmul.f32 %v1694, %v1772
        %v1801 = vmul.f32 %v1695, %v1772
        %v1802 = vmul.f32 %v1696, %v1772
        %v1803 = vmul.f32 %v1697, %v1772
        %v1804 = vmul.f32 %v1698, %v1772
        %v1805 = vadd.f32 %v1737, %v1773
        %v1806 = vadd.f32 %v1738, %v1774
        %v1807 = vadd.f32 %v1739, %v1775
        %v1808 = vadd.f32 %v1740, %v1776
        %v1809 = vadd.f32 %v1741, %v1777
        %v1810 = vadd.f32 %v1742, %v1778
        %v1811 = vadd.f32 %v1743, %v1779
        %v1812 = vadd.f32 %v1744, %v1780
        %v1813 = vadd.f32 %v1745, %v1781
        %v1814 = vadd.f32 %v1746, %v1782
        %v1815 = vadd.f32 %v1747, %v1783
        %v1816 = vadd.f32 %v1748, %v1784
        %v1817 = vadd.f32 %v1749, %v1785
        %v1818 = vadd.f32 %v1750, %v1786
        %v1819 = vadd.f32 %v1751, %v1787
        %v1820 = vadd.f32 %v1752, %v1788
        %v1821 = vadd.f32 %v1753, %v1789
        %v1822 = vadd.f32 %v1754, %v1790
        %v1823 = vadd.f32 %v1755, %v1791
        %v1824 = vadd.f32 %v1756, %v1792
        %v1825 = vadd.f32 %v1757, %v1793
        %v1826 = vadd.f32 %v1758, %v1794
        %v1827 = vadd.f32 %v1759, %v1795
        %v1828 = vadd.f32 %v1760, %v1796
        %v1829 = vadd.f32 %v1761, %v1797
        %v1830 = vadd.f32 %v1762, %v1798
        %v1831 = vadd.f32 %v1763, %v1799
        %v1832 = vadd.f32 %v1764, %v1800
        %v1833 = vadd.f32 %v1765, %v1801
        %v1834 = vadd.f32 %v1766, %v1802
        %v1835 = vadd.f32 %v1767, %v1803
        %v1836 = vadd.f32 %v1768, %v1804
        %v1837 = vlaneseq
        %v1838 = vshrl.u32 %v1837, 7
        %v1839 = vsub.s32 0, %v1838
        %v1840 = vrot.slane %v958, %v1839
        %v1841 = vmul.f32 %v1669, %v1840
        %v1842 = vmul.f32 %v1670, %v1840
        %v1843 = vmul.f32 %v1671, %v1840
        %v1844 = vmul.f32 %v1672, %v1840
        %v1845 = vmul.f32 %v1673, %v1840
        %v1846 = vmul.f32 %v1674, %v1840
        %v1847 = vmul.f32 %v1675, %v1840
        %v1848 = vmul.f32 %v1676, %v1840
        %v1849 = vmul.f32 %v1677, %v1840
        %v1850 = vmul.f32 %v1678, %v1840
        %v1851 = vmul.f32 %v1679, %v1840
        %v1852 = vmul.f32 %v1680, %v1840
        %v1853 = vmul.f32 %v1681, %v1840
        %v1854 = vmul.f32 %v1682, %v1840
        %v1855 = vmul.f32 %v1683, %v1840
        %v1856 = vmul.f32 %v1684, %v1840
        %v1857 = vmul.f32 %v1685, %v1840
        %v1858 = vmul.f32 %v1686, %v1840
        %v1859 = vmul.f32 %v1687, %v1840
        %v1860 = vmul.f32 %v1688, %v1840
        %v1861 = vmul.f32 %v1689, %v1840
        %v1862 = vmul.f32 %v1690, %v1840
        %v1863 = vmul.f32 %v1691, %v1840
        %v1864 = vmul.f32 %v1692, %v1840
        %v1865 = vmul.f32 %v1693, %v1840
        %v1866 = vmul.f32 %v1694, %v1840
        %v1867 = vmul.f32 %v1695, %v1840
        %v1868 = vmul.f32 %v1696, %v1840
        %v1869 = vmul.f32 %v1697, %v1840
        %v1870 = vmul.f32 %v1698, %v1840
        %v1871 = vmul.f32 %v1699, %v1840
        %v1872 = vmul.f32 %v1700, %v1840
        %v1873 = vadd.f32 %v1805, %v1841
        %v1874 = vadd.f32 %v1806, %v1842
        %v1875 = vadd.f32 %v1807, %v1843
        %v1876 = vadd.f32 %v1808, %v1844
        %v1877 = vadd.f32 %v1809, %v1845
        %v1878 = vadd.f32 %v1810, %v1846
        %v1879 = vadd.f32 %v1811, %v1847
        %v1880 = vadd.f32 %v1812, %v1848
        %v1881 = vadd.f32 %v1813, %v1849
        %v1882 = vadd.f32 %v1814, %v1850
        %v1883 = vadd.f32 %v1815, %v1851
        %v1884 = vadd.f32 %v1816, %v1852
        %v1885 = vadd.f32 %v1817, %v1853
        %v1886 = vadd.f32 %v1818, %v1854
        %v1887 = vadd.f32 %v1819, %v1855
        %v1888 = vadd.f32 %v1820, %v1856
        %v1889 = vadd.f32 %v1821, %v1857
        %v1890 = vadd.f32 %v1822, %v1858
        %v1891 = vadd.f32 %v1823, %v1859
        %v1892 = vadd.f32 %v1824, %v1860
        %v1893 = vadd.f32 %v1825, %v1861
        %v1894 = vadd.f32 %v1826, %v1862
        %v1895 = vadd.f32 %v1827, %v1863
        %v1896 = vadd.f32 %v1828, %v1864
        %v1897 = vadd.f32 %v1829, %v1865
        %v1898 = vadd.f32 %v1830, %v1866
        %v1899 = vadd.f32 %v1831, %v1867
        %v1900 = vadd.f32 %v1832, %v1868
        %v1901 = vadd.f32 %v1833, %v1869
        %v1902 = vadd.f32 %v1834, %v1870
        %v1903 = vadd.f32 %v1835, %v1871
        %v1904 = vadd.f32 %v1836, %v1872
        %v1905 = vld [vmem:[%s4] sm:$0x1]
        %v1907 = vlaneseq
        %v1908 = vshrl.u32 %v1907, 7
        %v1909 = vsub.s32 0, %v1908
        %v1910 = vrot.slane %v1905, %v1909
        %v1912 = vadd.f32 %v1873, %v1910
        %v1913 = vadd.f32 %v1874, %v1910
        %v1914 = vadd.f32 %v1875, %v1910
        %v1915 = vadd.f32 %v1876, %v1910
        %v1916 = vadd.f32 %v1877, %v1910
        %v1917 = vadd.f32 %v1878, %v1910
        %v1918 = vadd.f32 %v1879, %v1910
        %v1919 = vadd.f32 %v1880, %v1910
        %v1920 = vadd.f32 %v1881, %v1910
        %v1921 = vadd.f32 %v1882, %v1910
        %v1922 = vadd.f32 %v1883, %v1910
        %v1923 = vadd.f32 %v1884, %v1910
        %v1924 = vadd.f32 %v1885, %v1910
        %v1925 = vadd.f32 %v1886, %v1910
        %v1926 = vadd.f32 %v1887, %v1910
        %v1927 = vadd.f32 %v1888, %v1910
        %v1928 = vadd.f32 %v1889, %v1910
        %v1929 = vadd.f32 %v1890, %v1910
        %v1930 = vadd.f32 %v1891, %v1910
        %v1931 = vadd.f32 %v1892, %v1910
        %v1932 = vadd.f32 %v1893, %v1910
        %v1933 = vadd.f32 %v1894, %v1910
        %v1934 = vadd.f32 %v1895, %v1910
        %v1935 = vadd.f32 %v1896, %v1910
        %v1936 = vadd.f32 %v1897, %v1910
        %v1937 = vadd.f32 %v1898, %v1910
        %v1938 = vadd.f32 %v1899, %v1910
        %v1939 = vadd.f32 %v1900, %v1910
        %v1940 = vadd.f32 %v1901, %v1910
        %v1941 = vadd.f32 %v1902, %v1910
        %v1942 = vadd.f32 %v1903, %v1910
        %v1943 = vadd.f32 %v1904, %v1910
        %v1944 = vadd.f32 %v1912, 3.0
        %v1945 = vadd.f32 %v1913, 3.0
        %v1946 = vadd.f32 %v1914, 3.0
        %v1947 = vadd.f32 %v1915, 3.0
        %v1948 = vadd.f32 %v1916, 3.0
        %v1949 = vadd.f32 %v1917, 3.0
        %v1950 = vadd.f32 %v1918, 3.0
        %v1951 = vadd.f32 %v1919, 3.0
        %v1952 = vadd.f32 %v1920, 3.0
        %v1953 = vadd.f32 %v1921, 3.0
        %v1954 = vadd.f32 %v1922, 3.0
        %v1955 = vadd.f32 %v1923, 3.0
        %v1956 = vadd.f32 %v1924, 3.0
        %v1957 = vadd.f32 %v1925, 3.0
        %v1958 = vadd.f32 %v1926, 3.0
        %v1959 = vadd.f32 %v1927, 3.0
        %v1960 = vadd.f32 %v1928, 3.0
        %v1961 = vadd.f32 %v1929, 3.0
        %v1962 = vadd.f32 %v1930, 3.0
        %v1963 = vadd.f32 %v1931, 3.0
        %v1964 = vadd.f32 %v1932, 3.0
        %v1965 = vadd.f32 %v1933, 3.0
        %v1966 = vadd.f32 %v1934, 3.0
        %v1967 = vadd.f32 %v1935, 3.0
        %v1968 = vadd.f32 %v1936, 3.0
        %v1969 = vadd.f32 %v1937, 3.0
        %v1970 = vadd.f32 %v1938, 3.0
        %v1971 = vadd.f32 %v1939, 3.0
        %v1972 = vadd.f32 %v1940, 3.0
        %v1973 = vadd.f32 %v1941, 3.0
        %v1974 = vadd.f32 %v1942, 3.0
        %v1975 = vadd.f32 %v1943, 3.0
        %v1976 = vmax.f32 %v1944, 0.0
        %v1977 = vmax.f32 %v1945, 0.0
        %v1978 = vmax.f32 %v1946, 0.0
        %v1979 = vmax.f32 %v1947, 0.0
        %v1980 = vmax.f32 %v1948, 0.0
        %v1981 = vmax.f32 %v1949, 0.0
        %v1982 = vmax.f32 %v1950, 0.0
        %v1983 = vmax.f32 %v1951, 0.0
        %v1984 = vmax.f32 %v1952, 0.0
        %v1985 = vmax.f32 %v1953, 0.0
        %v1986 = vmax.f32 %v1954, 0.0
        %v1987 = vmax.f32 %v1955, 0.0
        %v1988 = vmax.f32 %v1956, 0.0
        %v1989 = vmax.f32 %v1957, 0.0
        %v1990 = vmax.f32 %v1958, 0.0
        %v1991 = vmax.f32 %v1959, 0.0
        %v1992 = vmax.f32 %v1960, 0.0
        %v1993 = vmax.f32 %v1961, 0.0
        %v1994 = vmax.f32 %v1962, 0.0
        %v1995 = vmax.f32 %v1963, 0.0
        %v1996 = vmax.f32 %v1964, 0.0
        %v1997 = vmax.f32 %v1965, 0.0
        %v1998 = vmax.f32 %v1966, 0.0
        %v1999 = vmax.f32 %v1967, 0.0
        %v2000 = vmax.f32 %v1968, 0.0
        %v2001 = vmax.f32 %v1969, 0.0
        %v2002 = vmax.f32 %v1970, 0.0
        %v2003 = vmax.f32 %v1971, 0.0
        %v2004 = vmax.f32 %v1972, 0.0
        %v2005 = vmax.f32 %v1973, 0.0
        %v2006 = vmax.f32 %v1974, 0.0
        %v2007 = vmax.f32 %v1975, 0.0
        %v2008 = vmin.f32 %v1976, 6.0
        %v2009 = vmin.f32 %v1977, 6.0
        %v2010 = vmin.f32 %v1978, 6.0
        %v2011 = vmin.f32 %v1979, 6.0
        %v2012 = vmin.f32 %v1980, 6.0
        %v2013 = vmin.f32 %v1981, 6.0
        %v2014 = vmin.f32 %v1982, 6.0
        %v2015 = vmin.f32 %v1983, 6.0
        %v2016 = vmin.f32 %v1984, 6.0
        %v2017 = vmin.f32 %v1985, 6.0
        %v2018 = vmin.f32 %v1986, 6.0
        %v2019 = vmin.f32 %v1987, 6.0
        %v2020 = vmin.f32 %v1988, 6.0
        %v2021 = vmin.f32 %v1989, 6.0
        %v2022 = vmin.f32 %v1990, 6.0
        %v2023 = vmin.f32 %v1991, 6.0
        %v2024 = vmin.f32 %v1992, 6.0
        %v2025 = vmin.f32 %v1993, 6.0
        %v2026 = vmin.f32 %v1994, 6.0
        %v2027 = vmin.f32 %v1995, 6.0
        %v2028 = vmin.f32 %v1996, 6.0
        %v2029 = vmin.f32 %v1997, 6.0
        %v2030 = vmin.f32 %v1998, 6.0
        %v2031 = vmin.f32 %v1999, 6.0
        %v2032 = vmin.f32 %v2000, 6.0
        %v2033 = vmin.f32 %v2001, 6.0
        %v2034 = vmin.f32 %v2002, 6.0
        %v2035 = vmin.f32 %v2003, 6.0
        %v2036 = vmin.f32 %v2004, 6.0
        %v2037 = vmin.f32 %v2005, 6.0
        %v2038 = vmin.f32 %v2006, 6.0
        %v2039 = vmin.f32 %v2007, 6.0
        %v2040 = vmul.f32 %v2008, 0.16666667
        %v2041 = vmul.f32 %v2009, 0.16666667
        %v2042 = vmul.f32 %v2010, 0.16666667
        %v2043 = vmul.f32 %v2011, 0.16666667
        %v2044 = vmul.f32 %v2012, 0.16666667
        %v2045 = vmul.f32 %v2013, 0.16666667
        %v2046 = vmul.f32 %v2014, 0.16666667
        %v2047 = vmul.f32 %v2015, 0.16666667
        %v2048 = vmul.f32 %v2016, 0.16666667
        %v2049 = vmul.f32 %v2017, 0.16666667
        %v2050 = vmul.f32 %v2018, 0.16666667
        %v2051 = vmul.f32 %v2019, 0.16666667
        %v2052 = vmul.f32 %v2020, 0.16666667
        %v2053 = vmul.f32 %v2021, 0.16666667
        %v2054 = vmul.f32 %v2022, 0.16666667
        %v2055 = vmul.f32 %v2023, 0.16666667
        %v2056 = vmul.f32 %v2024, 0.16666667
        %v2057 = vmul.f32 %v2025, 0.16666667
        %v2058 = vmul.f32 %v2026, 0.16666667
        %v2059 = vmul.f32 %v2027, 0.16666667
        %v2060 = vmul.f32 %v2028, 0.16666667
        %v2061 = vmul.f32 %v2029, 0.16666667
        %v2062 = vmul.f32 %v2030, 0.16666667
        %v2063 = vmul.f32 %v2031, 0.16666667
        %v2064 = vmul.f32 %v2032, 0.16666667
        %v2065 = vmul.f32 %v2033, 0.16666667
        %v2066 = vmul.f32 %v2034, 0.16666667
        %v2067 = vmul.f32 %v2035, 0.16666667
        %v2068 = vmul.f32 %v2036, 0.16666667
        %v2069 = vmul.f32 %v2037, 0.16666667
        %v2070 = vmul.f32 %v2038, 0.16666667
        %v2071 = vmul.f32 %v2039, 0.16666667
        %v2072 = vmul.f32 %v1912, %v2040
        %v2073 = vmul.f32 %v1913, %v2041
        %v2074 = vmul.f32 %v1914, %v2042
        %v2075 = vmul.f32 %v1915, %v2043
        %v2076 = vmul.f32 %v1916, %v2044
        %v2077 = vmul.f32 %v1917, %v2045
        %v2078 = vmul.f32 %v1918, %v2046
        %v2079 = vmul.f32 %v1919, %v2047
        %v2080 = vmul.f32 %v1920, %v2048
        %v2081 = vmul.f32 %v1921, %v2049
        %v2082 = vmul.f32 %v1922, %v2050
        %v2083 = vmul.f32 %v1923, %v2051
        %v2084 = vmul.f32 %v1924, %v2052
        %v2085 = vmul.f32 %v1925, %v2053
        %v2086 = vmul.f32 %v1926, %v2054
        %v2087 = vmul.f32 %v1927, %v2055
        %v2088 = vmul.f32 %v1928, %v2056
        %v2089 = vmul.f32 %v1929, %v2057
        %v2090 = vmul.f32 %v1930, %v2058
        %v2091 = vmul.f32 %v1931, %v2059
        %v2092 = vmul.f32 %v1932, %v2060
        %v2093 = vmul.f32 %v1933, %v2061
        %v2094 = vmul.f32 %v1934, %v2062
        %v2095 = vmul.f32 %v1935, %v2063
        %v2096 = vmul.f32 %v1936, %v2064
        %v2097 = vmul.f32 %v1937, %v2065
        %v2098 = vmul.f32 %v1938, %v2066
        %v2099 = vmul.f32 %v1939, %v2067
        %v2100 = vmul.f32 %v1940, %v2068
        %v2101 = vmul.f32 %v1941, %v2069
        %v2102 = vmul.f32 %v1942, %v2070
        %v2103 = vmul.f32 %v1943, %v2071
        %v2104 = vadd.f32 %v2072, %v2073
        %v2105 = vadd.f32 %v2104, %v2074
        %v2106 = vadd.f32 %v2105, %v2075
        %v2107 = vadd.f32 %v2106, %v2076
        %v2108 = vadd.f32 %v2107, %v2077
        %v2109 = vadd.f32 %v2108, %v2078
        %v2110 = vadd.f32 %v2109, %v2079
        %v2111 = vadd.f32 %v2110, %v2080
        %v2112 = vadd.f32 %v2111, %v2081
        %v2113 = vadd.f32 %v2112, %v2082
        %v2114 = vadd.f32 %v2113, %v2083
        %v2115 = vadd.f32 %v2114, %v2084
        %v2116 = vadd.f32 %v2115, %v2085
        %v2117 = vadd.f32 %v2116, %v2086
        %v2118 = vadd.f32 %v2117, %v2087
        %v2119 = vadd.f32 %v2118, %v2088
        %v2120 = vadd.f32 %v2119, %v2089
        %v2121 = vadd.f32 %v2120, %v2090
        %v2122 = vadd.f32 %v2121, %v2091
        %v2123 = vadd.f32 %v2122, %v2092
        %v2124 = vadd.f32 %v2123, %v2093
        %v2125 = vadd.f32 %v2124, %v2094
        %v2126 = vadd.f32 %v2125, %v2095
        %v2127 = vadd.f32 %v2126, %v2096
        %v2128 = vadd.f32 %v2127, %v2097
        %v2129 = vadd.f32 %v2128, %v2098
        %v2130 = vadd.f32 %v2129, %v2099
        %v2131 = vadd.f32 %v2130, %v2100
        %v2132 = vadd.f32 %v2131, %v2101
        %v2133 = vadd.f32 %v2132, %v2102
        %v2134 = vadd.f32 %v2133, %v2103
        %v2135 = vrot.slane %v2134, 4
        %v2136 = vadd.f32 %v2134, %v2135
        %v2137 = vrot.slane %v2136, 2
        %v2138 = vadd.f32 %v2136, %v2137
        %v2139 = vrot.slane %v2138, 1
        %v2140 = vadd.f32 %v2138, %v2139
        %v2141 = vmul.f32 %v2140, 0.00390625
        %v2142 = vld [vmem:[#allocation9] sm:$0xff]
        %v2143 = vld [vmem:[#allocation9 + $0x8] sm:$0xff]
        %v2144 = vld [vmem:[#allocation9 + $0x10] sm:$0xff]
        %v2145 = vld [vmem:[#allocation9 + $0x18] sm:$0xff]
        %v2146 = vld [vmem:[#allocation9 + $0x20] sm:$0xff]
        %v2147 = vld [vmem:[#allocation9 + $0x28] sm:$0xff]
        %v2148 = vld [vmem:[#allocation9 + $0x30] sm:$0xff]
        %v2149 = vld [vmem:[#allocation9 + $0x38] sm:$0xff]
        %v2150 = vld [vmem:[#allocation9 + $0x40] sm:$0xff]
        %v2151 = vld [vmem:[#allocation9 + $0x48] sm:$0xff]
        %v2152 = vld [vmem:[#allocation9 + $0x50] sm:$0xff]
        %v2153 = vld [vmem:[#allocation9 + $0x58] sm:$0xff]
        %v2154 = vld [vmem:[#allocation9 + $0x60] sm:$0xff]
        %v2155 = vld [vmem:[#allocation9 + $0x68] sm:$0xff]
        %v2156 = vld [vmem:[#allocation9 + $0x70] sm:$0xff]
        %v2157 = vld [vmem:[#allocation9 + $0x78] sm:$0xff]
        %v2158 = vld [vmem:[%s6] sm:$0x1]
        %2159 = vmatprep.subr.mxu0 0.0
        %2160 = vmatpush1.msra.mxu0 %v2157
        %2161 = vmatprep.subr.mxu0 0.0
        %2162 = vmatpush1.msra.mxu0 %v2156
        %2163 = vmatprep.subr.mxu0 0.0
        %2164 = vmatpush1.msra.mxu0 %v2155
        %2165 = vmatprep.subr.mxu0 0.0
        %2166 = vmatpush1.msra.mxu0 %v2154
        %2167 = vmatprep.subr.mxu0 0.0
        %2168 = vmatpush1.msra.mxu0 %v2153
        %2169 = vmatprep.subr.mxu0 0.0
        %2170 = vmatpush1.msra.mxu0 %v2152
        %2171 = vmatprep.subr.mxu0 0.0
        %2172 = vmatpush1.msra.mxu0 %v2151
        %2173 = vmatprep.subr.mxu0 0.0
        %2174 = vmatpush1.msra.mxu0 %v2150
        %2175 = vmatprep.subr.mxu0 0.0
        %2176 = vmatpush1.msra.mxu0 %v2149
        %2177 = vmatprep.subr.mxu0 0.0
        %2178 = vmatpush1.msra.mxu0 %v2148
        %2179 = vmatprep.subr.mxu0 0.0
        %2180 = vmatpush1.msra.mxu0 %v2147
        %2181 = vmatprep.subr.mxu0 0.0
        %2182 = vmatpush1.msra.mxu0 %v2146
        %2183 = vmatprep.subr.mxu0 0.0
        %2184 = vmatpush1.msra.mxu0 %v2145
        %2185 = vmatprep.subr.mxu0 0.0
        %2186 = vmatpush1.msra.mxu0 %v2144
        %2187 = vmatprep.subr.mxu0 0.0
        %2188 = vmatpush1.msra.mxu0 %v2143
        %2189 = vmatprep.subr.mxu0 0.0
        %2190 = vmatpush1.msra.mxu0 %v2142
        %2191 = vmatprep.subr.mxu0 0.0
        %2192 = vmatpush2.msra.mxu0 0.0
        %2193 = vmatprep.subr.mxu0 0.0
        %2194 = vmatpush2.msra.mxu0 0.0
        %2195 = vmatprep.subr.mxu0 0.0
        %2196 = vmatpush2.msra.mxu0 0.0
        %2197 = vmatprep.subr.mxu0 0.0
        %2198 = vmatpush2.msra.mxu0 0.0
        %2199 = vmatprep.subr.mxu0 0.0
        %2200 = vmatpush2.msra.mxu0 0.0
        %2201 = vmatprep.subr.mxu0 0.0
        %2202 = vmatpush2.msra.mxu0 0.0
        %2203 = vmatprep.subr.mxu0 0.0
        %2204 = vmatpush2.msra.mxu0 0.0
        %2205 = vmatprep.subr.mxu0 0.0
        %2206 = vmatpush2.msra.mxu0 0.0
        %2207 = vmatprep.subr.mxu0 0.0
        %2208 = vmatpush2.msra.mxu0 0.0
        %2209 = vmatprep.subr.mxu0 0.0
        %2210 = vmatpush2.msra.mxu0 0.0
        %2211 = vmatprep.subr.mxu0 0.0
        %2212 = vmatpush2.msra.mxu0 0.0
        %2213 = vmatprep.subr.mxu0 0.0
        %2214 = vmatpush2.msra.mxu0 0.0
        %2215 = vmatprep.subr.mxu0 0.0
        %2216 = vmatpush2.msra.mxu0 0.0
        %2217 = vmatprep.subr.mxu0 0.0
        %2218 = vmatpush2.msra.mxu0 0.0
        %2219 = vmatprep.subr.mxu0 0.0
        %2220 = vmatpush2.msra.mxu0 0.0
        %2221 = vmatprep.subr.mxu0 0.0
        %2222 = vmatpush2.msra.mxu0 0.0
        %2223 = vmatprep.mubr.f32.mxu0 0.0
        %2224 = vmatmul.mubr.f32.gmra.mxu0 %v2141
        %v2225 = vpop.f32.mrf.mxu0
        %v2226 = vadd.f32 %v2158, %v2225
        %v2227 = vpop.f32.mrf.mxu0
        %2228 = vdwg.mxu0
        %v2229 = vmax.f32 %v2226, 0.0
        %v2230 = vld [vmem:[#allocation11] sm:$0xff]
        %v2231 = vld [vmem:[#allocation11 + $0x8] sm:$0xff]
        %v2232 = vld [vmem:[#allocation11 + $0x10] sm:$0xff]
        %v2233 = vld [vmem:[#allocation11 + $0x18] sm:$0xff]
        %v2234 = vld [vmem:[#allocation11 + $0x20] sm:$0xff]
        %v2235 = vld [vmem:[#allocation11 + $0x28] sm:$0xff]
        %v2236 = vld [vmem:[#allocation11 + $0x30] sm:$0xff]
        %v2237 = vld [vmem:[#allocation11 + $0x38] sm:$0xff]
        %v2238 = vld [vmem:[#allocation11 + $0x40] sm:$0xff]
        %v2239 = vld [vmem:[#allocation11 + $0x48] sm:$0xff]
        %v2240 = vld [vmem:[#allocation11 + $0x50] sm:$0xff]
        %v2241 = vld [vmem:[#allocation11 + $0x58] sm:$0xff]
        %v2242 = vld [vmem:[#allocation11 + $0x60] sm:$0xff]
        %v2243 = vld [vmem:[#allocation11 + $0x68] sm:$0xff]
        %v2244 = vld [vmem:[#allocation11 + $0x70] sm:$0xff]
        %v2245 = vld [vmem:[#allocation11 + $0x78] sm:$0xff]
        %v2246 = vld [vmem:[%s8] sm:$0x1]
        %2247 = vmatprep.subr.mxu0 0.0
        %2248 = vmatpush1.msra.mxu0 %v2245
        %2249 = vmatprep.subr.mxu0 0.0
        %2250 = vmatpush1.msra.mxu0 %v2244
        %2251 = vmatprep.subr.mxu0 0.0
        %2252 = vmatpush1.msra.mxu0 %v2243
        %2253 = vmatprep.subr.mxu0 0.0
        %2254 = vmatpush1.msra.mxu0 %v2242
        %2255 = vmatprep.subr.mxu0 0.0
        %2256 = vmatpush1.msra.mxu0 %v2241
        %2257 = vmatprep.subr.mxu0 0.0
        %2258 = vmatpush1.msra.mxu0 %v2240
        %2259 = vmatprep.subr.mxu0 0.0
        %2260 = vmatpush1.msra.mxu0 %v2239
        %2261 = vmatprep.subr.mxu0 0.0
        %2262 = vmatpush1.msra.mxu0 %v2238
        %2263 = vmatprep.subr.mxu0 0.0
        %2264 = vmatpush1.msra.mxu0 %v2237
        %2265 = vmatprep.subr.mxu0 0.0
        %2266 = vmatpush1.msra.mxu0 %v2236
        %2267 = vmatprep.subr.mxu0 0.0
        %2268 = vmatpush1.msra.mxu0 %v2235
        %2269 = vmatprep.subr.mxu0 0.0
        %2270 = vmatpush1.msra.mxu0 %v2234
        %2271 = vmatprep.subr.mxu0 0.0
        %2272 = vmatpush1.msra.mxu0 %v2233
        %2273 = vmatprep.subr.mxu0 0.0
        %2274 = vmatpush1.msra.mxu0 %v2232
        %2275 = vmatprep.subr.mxu0 0.0
        %2276 = vmatpush1.msra.mxu0 %v2231
        %2277 = vmatprep.subr.mxu0 0.0
        %2278 = vmatpush1.msra.mxu0 %v2230
        %2279 = vmatprep.subr.mxu0 0.0
        %2280 = vmatpush2.msra.mxu0 0.0
        %2281 = vmatprep.subr.mxu0 0.0
        %2282 = vmatpush2.msra.mxu0 0.0
        %2283 = vmatprep.subr.mxu0 0.0
        %2284 = vmatpush2.msra.mxu0 0.0
        %2285 = vmatprep.subr.mxu0 0.0
        %2286 = vmatpush2.msra.mxu0 0.0
        %2287 = vmatprep.subr.mxu0 0.0
        %2288 = vmatpush2.msra.mxu0 0.0
        %2289 = vmatprep.subr.mxu0 0.0
        %2290 = vmatpush2.msra.mxu0 0.0
        %2291 = vmatprep.subr.mxu0 0.0
        %2292 = vmatpush2.msra.mxu0 0.0
        %2293 = vmatprep.subr.mxu0 0.0
        %2294 = vmatpush2.msra.mxu0 0.0
        %2295 = vmatprep.subr.mxu0 0.0
        %2296 = vmatpush2.msra.mxu0 0.0
        %2297 = vmatprep.subr.mxu0 0.0
        %2298 = vmatpush2.msra.mxu0 0.0
        %2299 = vmatprep.subr.mxu0 0.0
        %2300 = vmatpush2.msra.mxu0 0.0
        %2301 = vmatprep.subr.mxu0 0.0
        %2302 = vmatpush2.msra.mxu0 0.0
        %2303 = vmatprep.subr.mxu0 0.0
        %2304 = vmatpush2.msra.mxu0 0.0
        %2305 = vmatprep.subr.mxu0 0.0
        %2306 = vmatpush2.msra.mxu0 0.0
        %2307 = vmatprep.subr.mxu0 0.0
        %2308 = vmatpush2.msra.mxu0 0.0
        %2309 = vmatprep.subr.mxu0 0.0
        %2310 = vmatpush2.msra.mxu0 0.0
        %2311 = vmatprep.mubr.f32.mxu0 0.0
        %2312 = vmatmul.mubr.f32.gmra.mxu0 %v2229
        %v2313 = vpop.f32.mrf.mxu0
        %v2314 = vadd.f32 %v2246, %v2313
        %v2315 = vpop.f32.mrf.mxu0
        %2316 = vdwg.mxu0
        %v2317 = vadd.f32 %v2314, 3.0
        %v2318 = vmax.f32 %v2317, 0.0
        %v2319 = vmin.f32 %v2318, 6.0
        %v2320 = vmul.f32 %v2319, 0.16666667
        %v2321 = vld [vmem:[#allocation12] sm:$0xff]
        %v2322 = vld [vmem:[#allocation12 + $0x8] sm:$0xff]
        %v2323 = vld [vmem:[#allocation12 + $0x10] sm:$0xff]
        %v2324 = vld [vmem:[#allocation12 + $0x18] sm:$0xff]
        %v2325 = vld [vmem:[#allocation12 + $0x20] sm:$0xff]
        %v2326 = vld [vmem:[#allocation12 + $0x28] sm:$0xff]
        %v2327 = vld [vmem:[#allocation12 + $0x30] sm:$0xff]
        %v2328 = vld [vmem:[#allocation12 + $0x38] sm:$0xff]
        %v2329 = vld [vmem:[#allocation12 + $0x40] sm:$0xff]
        %v2330 = vld [vmem:[#allocation12 + $0x48] sm:$0xff]
        %v2331 = vld [vmem:[#allocation12 + $0x50] sm:$0xff]
        %v2332 = vld [vmem:[#allocation12 + $0x58] sm:$0xff]
        %v2333 = vld [vmem:[#allocation12 + $0x60] sm:$0xff]
        %v2334 = vld [vmem:[#allocation12 + $0x68] sm:$0xff]
        %v2335 = vld [vmem:[#allocation12 + $0x70] sm:$0xff]
        %v2336 = vld [vmem:[#allocation12 + $0x78] sm:$0xff]
        %v2337 = vlaneseq
        %v2338 = vshrl.u32 %v2337, 7
        %v2339 = vsub.s32 0, %v2338
        %v2340 = vrot.slane %v2320, %v2339
        %2342 = vbcast.lane.b32.xlu0 %v2340, 256
        %v2343 = vpop.permute.xlu0 %2342
        %s2345 = sor.u32 256, 8
        %2346 = vbcast.lane.b32.xlu0 %v2340, %s2345
        %v2347 = vpop.permute.xlu0 %2346
        %s2349 = sor.u32 256, 16
        %2350 = vbcast.lane.b32.xlu0 %v2340, %s2349
        %v2351 = vpop.permute.xlu0 %2350
        %s2353 = sor.u32 256, 24
        %2354 = vbcast.lane.b32.xlu0 %v2340, %s2353
        %v2355 = vpop.permute.xlu0 %2354
        %s2357 = sor.u32 256, 32
        %2358 = vbcast.lane.b32.xlu0 %v2340, %s2357
        %v2359 = vpop.permute.xlu0 %2358
        %s2361 = sor.u32 256, 40
        %2362 = vbcast.lane.b32.xlu0 %v2340, %s2361
        %v2363 = vpop.permute.xlu0 %2362
        %s2365 = sor.u32 256, 48
        %2366 = vbcast.lane.b32.xlu0 %v2340, %s2365
        %v2367 = vpop.permute.xlu0 %2366
        %s2369 = sor.u32 256, 56
        %2370 = vbcast.lane.b32.xlu0 %v2340, %s2369
        %v2371 = vpop.permute.xlu0 %2370
        %s2373 = sor.u32 256, 64
        %2374 = vbcast.lane.b32.xlu0 %v2340, %s2373
        %v2375 = vpop.permute.xlu0 %2374
        %s2377 = sor.u32 256, 72
        %2378 = vbcast.lane.b32.xlu0 %v2340, %s2377
        %v2379 = vpop.permute.xlu0 %2378
        %s2381 = sor.u32 256, 80
        %2382 = vbcast.lane.b32.xlu0 %v2340, %s2381
        %v2383 = vpop.permute.xlu0 %2382
        %s2385 = sor.u32 256, 88
        %2386 = vbcast.lane.b32.xlu0 %v2340, %s2385
        %v2387 = vpop.permute.xlu0 %2386
        %s2389 = sor.u32 256, 96
        %2390 = vbcast.lane.b32.xlu0 %v2340, %s2389
        %v2391 = vpop.permute.xlu0 %2390
        %s2393 = sor.u32 256, 104
        %2394 = vbcast.lane.b32.xlu0 %v2340, %s2393
        %v2395 = vpop.permute.xlu0 %2394
        %s2397 = sor.u32 256, 112
        %2398 = vbcast.lane.b32.xlu0 %v2340, %s2397
        %v2399 = vpop.permute.xlu0 %2398
        %s2401 = sor.u32 256, 120
        %2402 = vbcast.lane.b32.xlu0 %v2340, %s2401
        %v2403 = vpop.permute.xlu0 %2402
        %v2404 = vmul.f32 %v2321, %v2343
        %v2405 = vmul.f32 %v2322, %v2347
        %v2406 = vmul.f32 %v2323, %v2351
        %v2407 = vmul.f32 %v2324, %v2355
        %v2408 = vmul.f32 %v2325, %v2359
        %v2409 = vmul.f32 %v2326, %v2363
        %v2410 = vmul.f32 %v2327, %v2367
        %v2411 = vmul.f32 %v2328, %v2371
        %v2412 = vmul.f32 %v2329, %v2375
        %v2413 = vmul.f32 %v2330, %v2379
        %v2414 = vmul.f32 %v2331, %v2383
        %v2415 = vmul.f32 %v2332, %v2387
        %v2416 = vmul.f32 %v2333, %v2391
        %v2417 = vmul.f32 %v2334, %v2395
        %v2418 = vmul.f32 %v2335, %v2399
        %v2419 = vmul.f32 %v2336, %v2403
        %v2420 = vpack.c.bf16 %v2405, %v2404
        %v2421 = vpack.c.bf16 %v2407, %v2406
        %v2422 = vpack.c.bf16 %v2409, %v2408
        %v2423 = vpack.c.bf16 %v2411, %v2410
        %v2424 = vpack.c.bf16 %v2413, %v2412
        %v2425 = vpack.c.bf16 %v2415, %v2414
        %v2426 = vpack.c.bf16 %v2417, %v2416
        %v2427 = vpack.c.bf16 %v2419, %v2418
        %v2428 = vpack.c.bf16 %v2073, %v2072
        %v2429 = vpack.c.bf16 %v2075, %v2074
        %v2430 = vpack.c.bf16 %v2077, %v2076
        %v2431 = vpack.c.bf16 %v2079, %v2078
        %v2432 = vpack.c.bf16 %v2081, %v2080
        %v2433 = vpack.c.bf16 %v2083, %v2082
        %v2434 = vpack.c.bf16 %v2085, %v2084
        %v2435 = vpack.c.bf16 %v2087, %v2086
        %v2436 = vpack.c.bf16 %v2089, %v2088
        %v2437 = vpack.c.bf16 %v2091, %v2090
        %v2438 = vpack.c.bf16 %v2093, %v2092
        %v2439 = vpack.c.bf16 %v2095, %v2094
        %v2440 = vpack.c.bf16 %v2097, %v2096
        %v2441 = vpack.c.bf16 %v2099, %v2098
        %v2442 = vpack.c.bf16 %v2101, %v2100
        %v2443 = vpack.c.bf16 %v2103, %v2102
        %v2444 = vld [vmem:[%s10] sm:$0x1]
        %v2446 = vlaneseq
        %v2447 = vshrl.u32 %v2446, 7
        %v2448 = vsub.s32 0, %v2447
        %v2449 = vrot.slane %v2444, %v2448
        %2451 = vmatprep.subr.bf16.mxu0 0
        %2452 = vmatpush1.bf16.msra.mxu0 %v2427
        %2453 = vmatprep.subr.bf16.mxu0 0
        %2454 = vmatpush1.bf16.msra.mxu0 %v2426
        %2455 = vmatprep.subr.bf16.mxu0 0
        %2456 = vmatpush1.bf16.msra.mxu0 %v2425
        %2457 = vmatprep.subr.bf16.mxu0 0
        %2458 = vmatpush1.bf16.msra.mxu0 %v2424
        %2459 = vmatprep.subr.bf16.mxu0 0
        %2460 = vmatpush1.bf16.msra.mxu0 %v2423
        %2461 = vmatprep.subr.bf16.mxu0 0
        %2462 = vmatpush1.bf16.msra.mxu0 %v2422
        %2463 = vmatprep.subr.bf16.mxu0 0
        %2464 = vmatpush1.bf16.msra.mxu0 %v2421
        %2465 = vmatprep.subr.bf16.mxu0 0
        %2466 = vmatpush1.bf16.msra.mxu0 %v2420
        %2467 = vmatprep.subr.bf16.mxu0 0
        %2468 = vmatpush2.bf16.msra.mxu0 0
        %2469 = vmatprep.subr.bf16.mxu0 0
        %2470 = vmatpush2.bf16.msra.mxu0 0
        %2471 = vmatprep.subr.bf16.mxu0 0
        %2472 = vmatpush2.bf16.msra.mxu0 0
        %2473 = vmatprep.subr.bf16.mxu0 0
        %2474 = vmatpush2.bf16.msra.mxu0 0
        %2475 = vmatprep.subr.bf16.mxu0 0
        %2476 = vmatpush2.bf16.msra.mxu0 0
        %2477 = vmatprep.subr.bf16.mxu0 0
        %2478 = vmatpush2.bf16.msra.mxu0 0
        %2479 = vmatprep.subr.bf16.mxu0 0
        %2480 = vmatpush2.bf16.msra.mxu0 0
        %2481 = vmatprep.subr.bf16.mxu0 0
        %2482 = vmatpush2.bf16.msra.mxu0 0
        %2483 = vmatprep.mubr.bf16.mxu0 0
        %2484 = vmatmul.mubr.bf16.gmra.mxu0 %v2428
        %v2485 = vpop.f32.mrf.mxu0
        %v2486 = vadd.f32 %v2449, %v2485
        %v2487 = vpop.f32.mrf.mxu0
        %v2488 = vpop.f32.mrf.mxu0
        %v2489 = vadd.f32 %v2449, %v2488
        %v2490 = vpop.f32.mrf.mxu0
        %2491 = vmatprep.mubr.bf16.mxu0 0
        %2492 = vmatmul.mubr.bf16.gmra.mxu0 %v2429
        %v2493 = vpop.f32.mrf.mxu0
        %v2494 = vadd.f32 %v2449, %v2493
        %v2495 = vpop.f32.mrf.mxu0
        %v2496 = vpop.f32.mrf.mxu0
        %v2497 = vadd.f32 %v2449, %v2496
        %v2498 = vpop.f32.mrf.mxu0
        %2499 = vmatprep.mubr.bf16.mxu0 0
        %2500 = vmatmul.mubr.bf16.gmra.mxu0 %v2430
        %v2501 = vpop.f32.mrf.mxu0
        %v2502 = vadd.f32 %v2449, %v2501
        %v2503 = vpop.f32.mrf.mxu0
        %v2504 = vpop.f32.mrf.mxu0
        %v2505 = vadd.f32 %v2449, %v2504
        %v2506 = vpop.f32.mrf.mxu0
        %2507 = vmatprep.mubr.bf16.mxu0 0
        %2508 = vmatmul.mubr.bf16.gmra.mxu0 %v2431
        %v2509 = vpop.f32.mrf.mxu0
        %v2510 = vadd.f32 %v2449, %v2509
        %v2511 = vpop.f32.mrf.mxu0
        %v2512 = vpop.f32.mrf.mxu0
        %v2513 = vadd.f32 %v2449, %v2512
        %v2514 = vpop.f32.mrf.mxu0
        %2515 = vmatprep.mubr.bf16.mxu0 0
        %2516 = vmatmul.mubr.bf16.gmra.mxu0 %v2432
        %v2517 = vpop.f32.mrf.mxu0
        %v2518 = vadd.f32 %v2449, %v2517
        %v2519 = vpop.f32.mrf.mxu0
        %v2520 = vpop.f32.mrf.mxu0
        %v2521 = vadd.f32 %v2449, %v2520
        %v2522 = vpop.f32.mrf.mxu0
        %2523 = vmatprep.mubr.bf16.mxu0 0
        %2524 = vmatmul.mubr.bf16.gmra.mxu0 %v2433
        %v2525 = vpop.f32.mrf.mxu0
        %v2526 = vadd.f32 %v2449, %v2525
        %v2527 = vpop.f32.mrf.mxu0
        %v2528 = vpop.f32.mrf.mxu0
        %v2529 = vadd.f32 %v2449, %v2528
        %v2530 = vpop.f32.mrf.mxu0
        %2531 = vmatprep.mubr.bf16.mxu0 0
        %2532 = vmatmul.mubr.bf16.gmra.mxu0 %v2434
        %v2533 = vpop.f32.mrf.mxu0
        %v2534 = vadd.f32 %v2449, %v2533
        %v2535 = vpop.f32.mrf.mxu0
        %v2536 = vpop.f32.mrf.mxu0
        %v2537 = vadd.f32 %v2449, %v2536
        %v2538 = vpop.f32.mrf.mxu0
        %2539 = vmatprep.mubr.bf16.mxu0 0
        %2540 = vmatmul.mubr.bf16.gmra.mxu0 %v2435
        %v2541 = vpop.f32.mrf.mxu0
        %v2542 = vadd.f32 %v2449, %v2541
        %v2543 = vpop.f32.mrf.mxu0
        %v2544 = vpop.f32.mrf.mxu0
        %v2545 = vadd.f32 %v2449, %v2544
        %v2546 = vpop.f32.mrf.mxu0
        %2547 = vmatprep.mubr.bf16.mxu0 0
        %2548 = vmatmul.mubr.bf16.gmra.mxu0 %v2436
        %v2549 = vpop.f32.mrf.mxu0
        %v2550 = vadd.f32 %v2449, %v2549
        %v2551 = vpop.f32.mrf.mxu0
        %v2552 = vpop.f32.mrf.mxu0
        %v2553 = vadd.f32 %v2449, %v2552
        %v2554 = vpop.f32.mrf.mxu0
        %2555 = vmatprep.mubr.bf16.mxu0 0
        %2556 = vmatmul.mubr.bf16.gmra.mxu0 %v2437
        %v2557 = vpop.f32.mrf.mxu0
        %v2558 = vadd.f32 %v2449, %v2557
        %v2559 = vpop.f32.mrf.mxu0
        %v2560 = vpop.f32.mrf.mxu0
        %v2561 = vadd.f32 %v2449, %v2560
        %v2562 = vpop.f32.mrf.mxu0
        %2563 = vmatprep.mubr.bf16.mxu0 0
        %2564 = vmatmul.mubr.bf16.gmra.mxu0 %v2438
        %v2565 = vpop.f32.mrf.mxu0
        %v2566 = vadd.f32 %v2449, %v2565
        %v2567 = vpop.f32.mrf.mxu0
        %v2568 = vpop.f32.mrf.mxu0
        %v2569 = vadd.f32 %v2449, %v2568
        %v2570 = vpop.f32.mrf.mxu0
        %2571 = vmatprep.mubr.bf16.mxu0 0
        %2572 = vmatmul.mubr.bf16.gmra.mxu0 %v2439
        %v2573 = vpop.f32.mrf.mxu0
        %v2574 = vadd.f32 %v2449, %v2573
        %v2575 = vpop.f32.mrf.mxu0
        %v2576 = vpop.f32.mrf.mxu0
        %v2577 = vadd.f32 %v2449, %v2576
        %v2578 = vpop.f32.mrf.mxu0
        %2579 = vmatprep.mubr.bf16.mxu0 0
        %2580 = vmatmul.mubr.bf16.gmra.mxu0 %v2440
        %v2581 = vpop.f32.mrf.mxu0
        %v2582 = vadd.f32 %v2449, %v2581
        %v2583 = vpop.f32.mrf.mxu0
        %v2584 = vpop.f32.mrf.mxu0
        %v2585 = vadd.f32 %v2449, %v2584
        %v2586 = vpop.f32.mrf.mxu0
        %2587 = vmatprep.mubr.bf16.mxu0 0
        %2588 = vmatmul.mubr.bf16.gmra.mxu0 %v2441
        %v2589 = vpop.f32.mrf.mxu0
        %v2590 = vadd.f32 %v2449, %v2589
        %v2591 = vpop.f32.mrf.mxu0
        %v2592 = vpop.f32.mrf.mxu0
        %v2593 = vadd.f32 %v2449, %v2592
        %v2594 = vpop.f32.mrf.mxu0
        %2595 = vmatprep.mubr.bf16.mxu0 0
        %2596 = vmatmul.mubr.bf16.gmra.mxu0 %v2442
        %v2597 = vpop.f32.mrf.mxu0
        %v2598 = vadd.f32 %v2449, %v2597
        %v2599 = vpop.f32.mrf.mxu0
        %v2600 = vpop.f32.mrf.mxu0
        %v2601 = vadd.f32 %v2449, %v2600
        %v2602 = vpop.f32.mrf.mxu0
        %2603 = vmatprep.mubr.bf16.mxu0 0
        %2604 = vmatmul.mubr.bf16.gmra.mxu0 %v2443
        %v2605 = vpop.f32.mrf.mxu0
        %v2606 = vadd.f32 %v2449, %v2605
        %v2607 = vpop.f32.mrf.mxu0
        %v2608 = vpop.f32.mrf.mxu0
        %v2609 = vadd.f32 %v2449, %v2608
        %v2610 = vpop.f32.mrf.mxu0
        %2611 = vdwg.mxu0
        %v2612 = vadd.f32 %v2486, %v479
        %v2613 = vadd.f32 %v2489, %v480
        %v2614 = vadd.f32 %v2494, %v481
        %v2615 = vadd.f32 %v2497, %v482
        %v2616 = vadd.f32 %v2502, %v483
        %v2617 = vadd.f32 %v2505, %v484
        %v2618 = vadd.f32 %v2510, %v485
        %v2619 = vadd.f32 %v2513, %v486
        %v2620 = vadd.f32 %v2518, %v487
        %v2621 = vadd.f32 %v2521, %v488
        %v2622 = vadd.f32 %v2526, %v489
        %v2623 = vadd.f32 %v2529, %v490
        %v2624 = vadd.f32 %v2534, %v491
        %v2625 = vadd.f32 %v2537, %v492
        %v2626 = vadd.f32 %v2542, %v493
        %v2627 = vadd.f32 %v2545, %v494
        %v2628 = vadd.f32 %v2550, %v495
        %v2629 = vadd.f32 %v2553, %v496
        %v2630 = vadd.f32 %v2558, %v497
        %v2631 = vadd.f32 %v2561, %v498
        %v2632 = vadd.f32 %v2566, %v499
        %v2633 = vadd.f32 %v2569, %v500
        %v2634 = vadd.f32 %v2574, %v501
        %v2635 = vadd.f32 %v2577, %v502
        %v2636 = vadd.f32 %v2582, %v503
        %v2637 = vadd.f32 %v2585, %v504
        %v2638 = vadd.f32 %v2590, %v505
        %v2639 = vadd.f32 %v2593, %v506
        %v2640 = vadd.f32 %v2598, %v507
        %v2641 = vadd.f32 %v2601, %v508
        %v2642 = vadd.f32 %v2606, %v509
        %v2643 = vadd.f32 %v2609, %v510
        %2644 = vst [vmem:[%s477] sm:$0xff] %v2612
        %2645 = vst [vmem:[%s477 + $0x8] sm:$0xff] %v2613
        %2646 = vst [vmem:[%s477 + $0x10] sm:$0xff] %v2614
        %2647 = vst [vmem:[%s477 + $0x18] sm:$0xff] %v2615
        %2648 = vst [vmem:[%s477 + $0x20] sm:$0xff] %v2616
        %2649 = vst [vmem:[%s477 + $0x28] sm:$0xff] %v2617
        %2650 = vst [vmem:[%s477 + $0x30] sm:$0xff] %v2618
        %2651 = vst [vmem:[%s477 + $0x38] sm:$0xff] %v2619
        %2652 = vst [vmem:[%s477 + $0x40] sm:$0xff] %v2620
        %2653 = vst [vmem:[%s477 + $0x48] sm:$0xff] %v2621
        %2654 = vst [vmem:[%s477 + $0x50] sm:$0xff] %v2622
        %2655 = vst [vmem:[%s477 + $0x58] sm:$0xff] %v2623
        %2656 = vst [vmem:[%s477 + $0x60] sm:$0xff] %v2624
        %2657 = vst [vmem:[%s477 + $0x68] sm:$0xff] %v2625
        %2658 = vst [vmem:[%s477 + $0x70] sm:$0xff] %v2626
        %2659 = vst [vmem:[%s477 + $0x78] sm:$0xff] %v2627
        %2660 = vst [vmem:[%s477 + $0x80] sm:$0xff] %v2628
        %2661 = vst [vmem:[%s477 + $0x88] sm:$0xff] %v2629
        %2662 = vst [vmem:[%s477 + $0x90] sm:$0xff] %v2630
        %2663 = vst [vmem:[%s477 + $0x98] sm:$0xff] %v2631
        %2664 = vst [vmem:[%s477 + $0xa0] sm:$0xff] %v2632
        %2665 = vst [vmem:[%s477 + $0xa8] sm:$0xff] %v2633
        %2666 = vst [vmem:[%s477 + $0xb0] sm:$0xff] %v2634
        %2667 = vst [vmem:[%s477 + $0xb8] sm:$0xff] %v2635
        %2668 = vst [vmem:[%s477 + $0xc0] sm:$0xff] %v2636
        %2669 = vst [vmem:[%s477 + $0xc8] sm:$0xff] %v2637
        %2670 = vst [vmem:[%s477 + $0xd0] sm:$0xff] %v2638
        %2671 = vst [vmem:[%s477 + $0xd8] sm:$0xff] %v2639
        %2672 = vst [vmem:[%s477 + $0xe0] sm:$0xff] %v2640
        %2673 = vst [vmem:[%s477 + $0xe8] sm:$0xff] %v2641
        %2674 = vst [vmem:[%s477 + $0xf0] sm:$0xff] %v2642
        %2675 = vst [vmem:[%s477 + $0xf8] sm:$0xff] %v2643
        %s2676 = sand.u32 %s275, 1
        %s2677 = scalar_lea.sflag [#allocation5], %s2676
        %s2678 = sand.u32 %s275, 1
        %s2679 = smul.addr %s2678, 256
        %s2680 = scalar_lea.vmem [#allocation14], %s2679
        // Predicated region
        $region89: #{tpu_custom_call.1} parent=63 // pred_check
          %p2681 = pneg %p285
        $region90: #{tpu_custom_call.1} parent=63 // pred_check_branch
          %2683 = sbr.rel (%p2681) target = $region92
        $region91: #{tpu_custom_call.1} parent=63 // pred_region
          %s2685 = ssub.s32 4096, 4096
          %2686 = vsyncadd %s2677, %s2685
          %s2687 = smul.addr %s31, 32
          %s2688 = smul.addr %s2687, 128
          %s2689 = scalar_lea.hbm %s11, %s2688
          %s2690 = sshll.u32 %s2680, 4
          %s2691 = int_to_ptr.vmem [resolvable:$true] %s2690
          %2696 = dma.vmem_to_hbm [thread:$0]  %s2691, 4096, %s2689, %s2677, 128, 128, 8
        $region92: #{tpu_custom_call.1} parent=63 // pred_fallthru
          _
      $region64: #{tpu_custom_call.1} parent=5 // pred_fallthru
        _
      %p2697 = scmp.le.s32.totalorder 2, %s26
      // Predicated region
      $region93: #{tpu_custom_call.1} parent=5 // pred_check
        %p2698 = pneg %p2697
      $region94: #{tpu_custom_call.1} parent=5 // pred_check_branch
        %2700 = sbr.rel (%p2698) target = $region96
      $region95: #{tpu_custom_call.1} parent=5 // pred_region
        %s2701 = ssub.s32 %s26, 2
        // Predicated region
        $region97: #{tpu_custom_call.1} parent=95 // pred_check
          %p2702 = pneg %p291
        $region98: #{tpu_custom_call.1} parent=95 // pred_check_branch
          %2704 = sbr.rel (%p2702) target = $region100
        $region99: #{tpu_custom_call.1} parent=95 // pred_region
          %s2705 = sand.u32 %s276, 1
          %s2706 = scalar_lea.sflag [#allocation5], %s2705
          %s2707 = sand.u32 %s276, 1
          %s2708 = smul.addr %s2707, 256
          %s2709 = scalar_lea.vmem [#allocation14], %s2708
          %2710 = dma.done %s2706, 4096
        $region100: #{tpu_custom_call.1} parent=95 // pred_fallthru
          _
      $region96: #{tpu_custom_call.1} parent=5 // pred_fallthru
        _
    $region6: #{tpu_custom_call.1} parent=1 // loop_footer
      %s30 = sadd.s32 1, %s26
    $region7: #{tpu_custom_call.1} parent=1 // loop_footer_branch
      %25 = sbr.rel target = $region3
    $region8: #{tpu_custom_call.1} parent=1 // loop_exit
      _
    %2711 = vsyncpa [#allocation4], 1
    %s2712 = scalar_lea.sflag [#allocation4], 1
    %2713 = vsyncpa %s2712, 1
    %2714 = vsyncpa [#allocation7], 1
    %2715 = vsyncpa [#allocation10], 1
    %2716 = vsyncpa [#allocation13], 1
    %2717 = vsyncpa [#allocation5], 1
    %s2718 = scalar_lea.sflag [#allocation5], 1
    %2719 = vsyncpa %s2718, 1

</llo_original>
